<compile_context>
chip_gen: v6e
topology: v6e:2x2x1
jax: 0.10.0
libtpu: 0.0.40
codegen_flags: <defaults>
</compile_context>

<pallas_src>
import functools
import math

import jax
import jax.numpy as jnp
from jax import lax
from jax.experimental import pallas as pl
from jax.experimental.pallas import tpu as pltpu

NEG_INF = -1e10

# Row layout of the packed f32 parameter table (per-layer block of 13 rows).
ROWS_PER_LAYER = 13
R_SBQKV, R_SBO, R_EBQ, R_EBKV, R_EBO, R_B1, R_B2 = range(7)
R_LNG = 7    # rows 7,8,9   : LayerNorm gammas (self-attn, enc-attn, ff)
R_LNB = 10   # rows 10,11,12: LayerNorm betas


# ----------------------------- in-kernel helpers -----------------------------

def _layer_norm(y, gamma, beta, eps=1e-5):
    mu = jnp.mean(y, axis=-1, keepdims=True)
    var = jnp.mean((y - mu) ** 2, axis=-1, keepdims=True)
    return (y - mu) * lax.rsqrt(var + eps) * gamma + beta


def _mm(a, w, b):
    """bf16 MXU matmul with f32 accumulation; `w` is bf16 (in,out), `b` is (1,out) f32."""
    return jnp.dot(a.astype(jnp.bfloat16), w, preferred_element_type=jnp.float32) + b


def _attention(q2, k2, v2, bias, wo, n_heads, hd, *, exact, want_maps):
    """Batch-folded multi-head attention.

    q2: (Tq, H) bf16 queries (1/sqrt(hd) already folded into the projection).
    k2, v2: (Tk, H) bf16 keys / values, Tq = B*Lq, Tk = B*Lk (batch folded into
    rows).  bias: (Tq, Tk) f32 additive mask that also carries the block-diagonal
    -1e10 term killing cross-batch attention, so every matmul is one 2-D op over
    the whole batch (M >= 16 MXU rows).  wo: (H, H) bf16 output projection;
    per-head outputs are lane-concatenated so Wo is applied with ONE matmul.
    Returns ((Tq, H) f32 output WITHOUT the output bias,
             (Tq, n_heads*Tk) lane-concatenated probability maps or None).
    """
    outs, maps = [], []
    for h in range(n_heads):
        lo = h * hd
        qh = q2[:, lo:lo + hd]
        kh = k2[:, lo:lo + hd]
        vh = v2[:, lo:lo + hd]
        # energy = Qh @ Kh^T (already scaled); mask applied as an additive bias.
        s = lax.dot_general(qh, kh, (((1,), (1,)), ((), ())),
                            preferred_element_type=jnp.float32) + bias
        s = s - jnp.max(s, axis=-1, keepdims=True)
        p = jnp.exp(s)
        a = p * pl.reciprocal(jnp.sum(p, axis=-1, keepdims=True), approx=not exact)
        if want_maps:
            maps.append(a)
        outs.append(jnp.dot(a.astype(jnp.bfloat16), vh,
                            preferred_element_type=jnp.float32))
    o = jnp.concatenate(outs, axis=-1)                    # (Tq, H) f32, lane concat
    proj = jnp.dot(o.astype(jnp.bfloat16), wo, preferred_element_type=jnp.float32)
    amap = jnp.concatenate(maps, axis=-1) if want_maps else None
    return proj, amap


# ----------------------------- fused decoder kernel --------------------------

def fused_decoder_kernel(x_ref, enc_ref, tbias_ref, sbias_ref, fp_ref,
                         sWqkv_ref, sWo_ref, eWq_ref, eWkv_ref, eWo_ref,
                         W1_ref, W2_ref, fcW_ref,
                         out_ref, attn_ref,
                         *, n_layers, n_heads):
    H = x_ref.shape[-1]
    hd = H // n_heads
    P = W1_ref.shape[-1]
    Opad = fcW_ref.shape[-1]

    x = x_ref[...]          # (T, H)  f32, T  = B*Lt
    enc = enc_ref[...]      # (Tk, H) f32, Tk = B*Ls
    tb = tbias_ref[...]     # (T, T)  additive causal + block-diag bias
    sb = sbias_ref[...]     # (T, Tk) additive source + block-diag bias

    def fp(row, width):     # one (1, width) f32 row of the packed parameter table
        return fp_ref[row:row + 1, :width]

    for l in range(n_layers):
        r = ROWS_PER_LAYER * l
        last = (l == n_layers - 1)

        # ---- self attention (packed QKV projection) + residual + LN ----
        qkv = _mm(x, sWqkv_ref[l], fp(r + R_SBQKV, 3 * H)).astype(jnp.bfloat16)
        sa, _ = _attention(qkv[:, :H], qkv[:, H:2 * H], qkv[:, 2 * H:],
                           tb, sWo_ref[l], n_heads, hd,
                           exact=False, want_maps=False)
        x = _layer_norm(x + sa + fp(r + R_SBO, H),
                        fp(r + R_LNG, H), fp(r + R_LNB, H))

        # ---- encoder (cross) attention + residual + LN ----
        q = _mm(x, eWq_ref[l], fp(r + R_EBQ, H)).astype(jnp.bfloat16)
        kv = _mm(enc, eWkv_ref[l], fp(r + R_EBKV, 2 * H)).astype(jnp.bfloat16)
        ea, amap = _attention(q, kv[:, :H], kv[:, H:], sb, eWo_ref[l],
                              n_heads, hd, exact=last, want_maps=last)
        x = _layer_norm(x + ea + fp(r + R_EBO, H),
                        fp(r + R_LNG + 1, H), fp(r + R_LNB + 1, H))
        if last:
            # Only the last layer's map is consumed: ONE lane-dense (T, nh*Tk) store.
            attn_ref[...] = amap

        # ---- position-wise feed-forward + residual + LN ----
        h1 = jnp.maximum(_mm(x, W1_ref[l], fp(r + R_B1, P)), 0.0)
        ff = _mm(h1, W2_ref[l], fp(r + R_B2, H))
        x = _layer_norm(x + ff, fp(r + R_LNG + 2, H), fp(r + R_LNB + 2, H))

    # ---- final vocabulary projection (output dim zero-padded to 128 lanes) ----
    out_ref[...] = _mm(x, fcW_ref[...], fp(ROWS_PER_LAYER * n_layers, Opad))


def run_fused_decoder(x2d, enc2d, tbias, sbias, packed, n_layers, n_heads, o_pad):
    T, _ = x2d.shape
    Tk = enc2d.shape[0]
    operands = [x2d, enc2d, tbias, sbias] + packed
    # Single grid step (batch folded into rows); every block is the full array,
    # so weights are DMA'd once and everything stays resident in VMEM.
    in_specs = [pl.BlockSpec(op.shape, lambda i, n=op.ndim: (0,) * n)
                for op in operands]
    out_specs = [pl.BlockSpec((T, o_pad), lambda i: (0, 0)),
                 pl.BlockSpec((T, n_heads * Tk), lambda i: (0, 0))]
    out_shape = [jax.ShapeDtypeStruct((T, o_pad), jnp.float32),
                 jax.ShapeDtypeStruct((T, n_heads * Tk), jnp.float32)]

    kernel = functools.partial(fused_decoder_kernel,
                               n_layers=n_layers, n_heads=n_heads)
    return pl.pallas_call(
        kernel,
        out_shape=out_shape,
        grid=(1,),
        in_specs=in_specs,
        out_specs=out_specs,
        compiler_params=pltpu.CompilerParams(
            dimension_semantics=("arbitrary",),
            # Above v5e's 16 MiB default; well under v7x's 64 MiB/TC physical VMEM.
            # At realistic sizes (H>=512, vocab>=32k) fc_out would need its own
            # vocab-tiled pallas_call on v7x.
            vmem_limit_bytes=32 * 1024 * 1024),
    )(*operands)


# ----------------------------- parameter init / packing ----------------------

def init_params(key, output_dim, hid_dim, n_layers, n_heads, pf_dim, max_length):
    keys = iter(jax.random.split(key, 8 + n_layers * 16))

    def dense(in_d, out_d):
        W = 0.02 * jax.random.normal(next(keys), (in_d, out_d), jnp.float32)
        b = jnp.zeros((1, out_d), jnp.float32)
        return W, b

    params = {
        "tok_emb": 0.02 * jax.random.normal(next(keys), (output_dim, hid_dim), jnp.float32),
        "pos_emb": 0.02 * jax.random.normal(next(keys), (max_length, hid_dim), jnp.float32),
        "layers": [],
    }
    for _ in range(n_layers):
        lp = {}
        for pre in ("s", "e"):          # self-attn / enc-attn
            for nm in ("q", "k", "v", "o"):
                W, b = dense(hid_dim, hid_dim)
                lp[f"{pre}W{nm}"] = W
                lp[f"{pre}b{nm}"] = b
        lp["W1"], lp["b1"] = dense(hid_dim, pf_dim)
        lp["W2"], lp["b2"] = dense(pf_dim, hid_dim)
        for i in (1, 2, 3):             # 1=self-attn LN, 2=enc-attn LN, 3=ff LN
            lp[f"g{i}"] = jnp.ones((1, hid_dim), jnp.float32)
            lp[f"be{i}"] = jnp.zeros((1, hid_dim), jnp.float32)
        params["layers"].append(lp)
    params["fc_out_W"], params["fc_out_b"] = dense(hid_dim, output_dim)
    return params


def pack_params(params, n_heads, output_dim):
    """Pack parameters into kernel operands.

    * Q/K/V fused into (H, 3H) (K/V into (H, 2H) for cross-attn); 1/sqrt(hd)
      folded into the Q projection; matmul weights cast to bf16.
    * fc_out's output dim zero-padded to a multiple of 128 lanes (lane-dense store).
    * ALL small f32 params (biases + LayerNorm) packed into ONE (rows, 128) table.
    """
    layers = params["layers"]
    L = len(layers)
    H = params["tok_emb"].shape[1]
    P = layers[0]["W1"].shape[1]
    hd = H // n_heads
    inv = 1.0 / math.sqrt(hd)
    wdt = jnp.bfloat16

    o_pad = ((output_dim + 127) // 128) * 128
    w_pad = ((max(3 * H, 2 * H, P, o_pad) + 127) // 128) * 128

    def st(fn):
        return jnp.stack([fn(lp) for lp in layers], axis=0)

    sWqkv = st(lambda lp: jnp.concatenate([lp["sWq"] * inv, lp["sWk"], lp["sWv"]], axis=1)).astype(wdt)
    sWo = st(lambda lp: lp["sWo"]).astype(wdt)
    eWq = st(lambda lp: lp["eWq"] * inv).astype(wdt)
    eWkv = st(lambda lp: jnp.concatenate([lp["eWk"], lp["eWv"]], axis=1)).astype(wdt)
    eWo = st(lambda lp: lp["eWo"]).astype(wdt)
    W1 = st(lambda lp: lp["W1"]).astype(wdt)
    W2 = st(lambda lp: lp["W2"]).astype(wdt)
    fcW = jnp.pad(params["fc_out_W"], ((0, 0), (0, o_pad - output_dim))).astype(wdt)

    def row(v):
        v = jnp.reshape(v, (1, -1)).astype(jnp.float32)
        return jnp.pad(v, ((0, 0), (0, w_pad - v.shape[1])))

    rows = []
    for lp in layers:
        rows.append(row(jnp.concatenate([lp["sbq"] * inv, lp["sbk"], lp["sbv"]], axis=1)))
        rows.append(row(lp["sbo"]))
        rows.append(row(lp["ebq"] * inv))
        rows.append(row(jnp.concatenate([lp["ebk"], lp["ebv"]], axis=1)))
        rows.append(row(lp["ebo"]))
        rows.append(row(lp["b1"]))
        rows.append(row(lp["b2"]))
        rows.extend(row(lp[f"g{i}"]) for i in (1, 2, 3))
        rows.extend(row(lp[f"be{i}"]) for i in (1, 2, 3))
    rows.append(row(jnp.pad(params["fc_out_b"], ((0, 0), (0, o_pad - output_dim)))))
    fp = jnp.concatenate(rows, axis=0)            # (ROWS_PER_LAYER*L + 1, w_pad)

    packed = [fp, sWqkv, sWo, eWq, eWkv, eWo, W1, W2, fcW]
    return packed, o_pad


# ----------------------------- top-level forward ------------------------------

def _fold_mask_bias(mask):
    """(B, Lq, Lk) 1/0 keep-mask -> (B*Lq, B*Lk) additive bias.

    In-batch masked pairs and ALL cross-batch pairs get -1e10, so the batch-folded
    softmax matches per-batch PyTorch masked_fill(-1e10) + softmax.
    """
    mask = mask.astype(jnp.float32)
    B = mask.shape[0]
    eye = jnp.eye(B, dtype=jnp.float32)
    full = jnp.einsum("bqk,bc->bqck", mask, eye)
    full = full.reshape(B * mask.shape[1], B * mask.shape[2])
    return jnp.where(full == 0, NEG_INF, 0.0).astype(jnp.float32)


def transformer_decoder_forward(target_ids, enc_src, trg_mask, src_mask, params, n_heads):
    B, Lt = target_ids.shape
    H = params["tok_emb"].shape[1]
    Ls = enc_src.shape[1]
    n_layers = len(params["layers"])
    output_dim = params["fc_out_W"].shape[1]

    # Embedding lookups (gathers) + scale/add are glue in plain JAX; dropout = identity (eval).
    tok = jnp.take(params["tok_emb"], target_ids, axis=0)             # (B, Lt, H)
    pos = params["pos_emb"][:Lt][None, :, :]
    x = tok * jnp.sqrt(jnp.float32(H)) + pos

    tbias = _fold_mask_bias(trg_mask)                                  # (B*Lt, B*Lt)
    sbias = _fold_mask_bias(src_mask)                                  # (B*Lt, B*Ls)

    packed, o_pad = pack_params(params, n_heads, output_dim)
    out_flat, attn_flat = run_fused_decoder(
        x.reshape(B * Lt, H).astype(jnp.float32),
        enc_src.reshape(B * Ls, H).astype(jnp.float32),
        tbias, sbias, packed, n_layers, n_heads, o_pad)

    output = out_flat[:, :output_dim].reshape(B, Lt, output_dim)
    # attn_flat: (B*Lt, n_heads*B*Ls), head-major lanes; keep per-batch diagonal blocks.
    amap = attn_flat.reshape(B, Lt, n_heads, B, Ls)
    attention = amap[jnp.arange(B), :, :, jnp.arange(B), :]            # (B, Lt, nh, Ls)
    attention = attention.transpose(0, 2, 1, 3)                        # (B, nh, Lt, Ls)
    return output, attention


# ----------------------------- main -------------------------------------------

if __name__ == "__main__":
    output_dim = 50
    hid_dim = 32
    n_layers = 2
    n_heads = 4
    pf_dim = 64
    dropout = 0.1          # unused at inference (eval mode)
    max_length = 100

    B, Lt, Ls = 2, 8, 12

    key = jax.random.PRNGKey(0)
    k_param, k_ids, k_enc = jax.random.split(key, 3)
    params = init_params(k_param, output_dim, hid_dim, n_layers, n_heads, pf_dim, max_length)

    target_ids = jax.random.randint(k_ids, (B, Lt), 0, output_dim, dtype=jnp.int32)
    enc_src = 0.1 * jax.random.normal(k_enc, (B, Ls, hid_dim), jnp.float32)

    # trg_mask: causal lower-triangular [B, Lt, Lt]; src_mask: all-ones [B, Lt, Ls]
    trg_mask = jnp.broadcast_to(jnp.tril(jnp.ones((Lt, Lt), jnp.float32))[None], (B, Lt, Lt))
    src_mask = jnp.ones((B, Lt, Ls), jnp.float32)

    output, attention = transformer_decoder_forward(
        target_ids, enc_src, trg_mask, src_mask, params, n_heads)

    output = jax.block_until_ready(output)
    attention = jax.block_until_ready(attention)

    assert output.shape == (B, Lt, output_dim)
    assert attention.shape == (B, n_heads, Lt, Ls)
    assert bool(jnp.all(jnp.isfinite(output)))
    assert bool(jnp.all(jnp.isfinite(attention)))
    # The emitted (last-layer) attention maps are normalized with an exact
    # reciprocal, so their rows sum to 1 within f32 precision.
    assert bool(jnp.allclose(attention.sum(-1), 1.0, atol=1e-4))

    print("KERNEL_OK")
</pallas_src>

<mosaic_0001>
module attributes {stable_mosaic.version = 11 : i64} {
  func.func @fused_decoder_kernel(%arg0: i32, %arg1: memref<16x32xf32, #tpu.memory_space<vmem>>, %arg2: memref<24x32xf32, #tpu.memory_space<vmem>>, %arg3: memref<16x16xf32, #tpu.memory_space<vmem>>, %arg4: memref<16x24xf32, #tpu.memory_space<vmem>>, %arg5: memref<27x128xf32, #tpu.memory_space<vmem>>, %arg6: memref<2x32x96xbf16, #tpu.memory_space<vmem>>, %arg7: memref<2x32x32xbf16, #tpu.memory_space<vmem>>, %arg8: memref<2x32x32xbf16, #tpu.memory_space<vmem>>, %arg9: memref<2x32x64xbf16, #tpu.memory_space<vmem>>, %arg10: memref<2x32x32xbf16, #tpu.memory_space<vmem>>, %arg11: memref<2x32x64xbf16, #tpu.memory_space<vmem>>, %arg12: memref<2x64x32xbf16, #tpu.memory_space<vmem>>, %arg13: memref<32x128xbf16, #tpu.memory_space<vmem>>, %arg14: memref<16x128xf32, #tpu.memory_space<vmem>>, %arg15: memref<16x96xf32, #tpu.memory_space<vmem>>) attributes {dimension_semantics = [#tpu.dimension_semantics<arbitrary>], iteration_bounds = array<i64: 1>, scalar_prefetch = 0 : i64, scratch_operands = 0 : i64, tpu.core_type = #tpu.core_type<tc>, window_params = [{pipeline_mode = #tpu.pipeline_mode<synchronous>, transform_indices = @transform_0, window_bounds = array<i64: 16, 32>}, {pipeline_mode = #tpu.pipeline_mode<synchronous>, transform_indices = @transform_1, window_bounds = array<i64: 24, 32>}, {pipeline_mode = #tpu.pipeline_mode<synchronous>, transform_indices = @transform_2, window_bounds = array<i64: 16, 16>}, {pipeline_mode = #tpu.pipeline_mode<synchronous>, transform_indices = @transform_3, window_bounds = array<i64: 16, 24>}, {pipeline_mode = #tpu.pipeline_mode<synchronous>, transform_indices = @transform_4, window_bounds = array<i64: 27, 128>}, {pipeline_mode = #tpu.pipeline_mode<synchronous>, transform_indices = @transform_5, window_bounds = array<i64: 2, 32, 96>}, {pipeline_mode = #tpu.pipeline_mode<synchronous>, transform_indices = @transform_6, window_bounds = array<i64: 2, 32, 32>}, {pipeline_mode = #tpu.pipeline_mode<synchronous>, transform_indices = @transform_7, window_bounds = array<i64: 2, 32, 32>}, {pipeline_mode = #tpu.pipeline_mode<synchronous>, transform_indices = @transform_8, window_bounds = array<i64: 2, 32, 64>}, {pipeline_mode = #tpu.pipeline_mode<synchronous>, transform_indices = @transform_9, window_bounds = array<i64: 2, 32, 32>}, {pipeline_mode = #tpu.pipeline_mode<synchronous>, transform_indices = @transform_10, window_bounds = array<i64: 2, 32, 64>}, {pipeline_mode = #tpu.pipeline_mode<synchronous>, transform_indices = @transform_11, window_bounds = array<i64: 2, 64, 32>}, {pipeline_mode = #tpu.pipeline_mode<synchronous>, transform_indices = @transform_12, window_bounds = array<i64: 32, 128>}, {pipeline_mode = #tpu.pipeline_mode<synchronous>, transform_indices = @transform_13, window_bounds = array<i64: 16, 128>}, {pipeline_mode = #tpu.pipeline_mode<synchronous>, transform_indices = @transform_14, window_bounds = array<i64: 16, 96>}]} {
    %c0 = arith.constant 0 : index
    %c0_0 = arith.constant 0 : index
    %0 = vector.load %arg1[%c0, %c0_0] : memref<16x32xf32, #tpu.memory_space<vmem>>, vector<16x32xf32>
    %c0_1 = arith.constant 0 : index
    %c0_2 = arith.constant 0 : index
    %1 = vector.load %arg2[%c0_1, %c0_2] : memref<24x32xf32, #tpu.memory_space<vmem>>, vector<24x32xf32>
    %c0_3 = arith.constant 0 : index
    %c0_4 = arith.constant 0 : index
    %2 = vector.load %arg3[%c0_3, %c0_4] : memref<16x16xf32, #tpu.memory_space<vmem>>, vector<16x16xf32>
    %c0_5 = arith.constant 0 : index
    %c0_6 = arith.constant 0 : index
    %3 = vector.load %arg4[%c0_5, %c0_6] : memref<16x24xf32, #tpu.memory_space<vmem>>, vector<16x24xf32>
    %c0_7 = arith.constant 0 : index
    %c0_8 = arith.constant 0 : index
    %c0_9 = arith.constant 0 : index
    %4 = vector.load %arg6[%c0_7, %c0_8, %c0_9] : memref<2x32x96xbf16, #tpu.memory_space<vmem>>, vector<1x32x96xbf16>
    %5 = vector.shape_cast %4 : vector<1x32x96xbf16> to vector<32x96xbf16>
    %c0_10 = arith.constant 0 : index
    %c0_11 = arith.constant 0 : index
    %6 = vector.load %arg5[%c0_10, %c0_11] : memref<27x128xf32, #tpu.memory_space<vmem>>, vector<1x96xf32>
    %7 = arith.truncf %0 : vector<16x32xf32> to vector<16x32xbf16>
    %cst = arith.constant dense<0.000000e+00> : vector<16x96xf32>
    %8 = tpu.matmul %7, %5, %cst {dimension_numbers = #tpu.dot_dimension_numbers<[1], [0], [0], [1], [0, 0, 1, 1], [], []>} : vector<16x32xbf16>, vector<32x96xbf16>, vector<16x96xf32> -> vector<16x96xf32>
    %9 = vector.broadcast %6 : vector<1x96xf32> to vector<16x96xf32>
    %10 = arith.addf %8, %9 : vector<16x96xf32>
    %11 = arith.truncf %10 : vector<16x96xf32> to vector<16x96xbf16>
    %12 = vector.extract_strided_slice %11 {offsets = [0, 0], sizes = [16, 32], strides = [1, 1]} : vector<16x96xbf16> to vector<16x32xbf16>
    %13 = vector.extract_strided_slice %11 {offsets = [0, 32], sizes = [16, 32], strides = [1, 1]} : vector<16x96xbf16> to vector<16x32xbf16>
    %14 = vector.extract_strided_slice %11 {offsets = [0, 64], sizes = [16, 32], strides = [1, 1]} : vector<16x96xbf16> to vector<16x32xbf16>
    %c0_12 = arith.constant 0 : index
    %c0_13 = arith.constant 0 : index
    %c0_14 = arith.constant 0 : index
    %15 = vector.load %arg7[%c0_12, %c0_13, %c0_14] : memref<2x32x32xbf16, #tpu.memory_space<vmem>>, vector<1x32x32xbf16>
    %16 = vector.shape_cast %15 : vector<1x32x32xbf16> to vector<32x32xbf16>
    %17 = vector.extract_strided_slice %12 {offsets = [0, 0], sizes = [16, 8], strides = [1, 1]} : vector<16x32xbf16> to vector<16x8xbf16>
    %18 = vector.extract_strided_slice %13 {offsets = [0, 0], sizes = [16, 8], strides = [1, 1]} : vector<16x32xbf16> to vector<16x8xbf16>
    %19 = vector.extract_strided_slice %14 {offsets = [0, 0], sizes = [16, 8], strides = [1, 1]} : vector<16x32xbf16> to vector<16x8xbf16>
    %cst_15 = arith.constant dense<0.000000e+00> : vector<16x16xf32>
    %20 = tpu.matmul %17, %18, %cst_15 {dimension_numbers = #tpu.dot_dimension_numbers<[1], [1], [0], [0], [0, 0, 1, 0], [], []>} : vector<16x8xbf16>, vector<16x8xbf16>, vector<16x16xf32> -> vector<16x16xf32>
    %21 = arith.addf %20, %2 : vector<16x16xf32>
    %cst_16 = arith.constant dense<0xFF800000> : vector<16xf32>
    %22 = vector.multi_reduction <maximumf>, %21, %cst_16 [1] : vector<16x16xf32> to vector<16xf32>
    %23 = vector.shape_cast %22 : vector<16xf32> to vector<16x1xf32>
    %24 = vector.broadcast %23 : vector<16x1xf32> to vector<16x16xf32>
    %25 = arith.subf %21, %24 : vector<16x16xf32>
    %26 = math.exp %25 : vector<16x16xf32>
    %cst_17 = arith.constant dense<0.000000e+00> : vector<16xf32>
    %27 = vector.multi_reduction <add>, %26, %cst_17 [1] : vector<16x16xf32> to vector<16xf32>
    %28 = vector.shape_cast %27 : vector<16xf32> to vector<16x1xf32>
    %29 = tpu.reciprocal %28 {approx = true} : vector<16x1xf32> -> vector<16x1xf32>
    %30 = vector.broadcast %29 : vector<16x1xf32> to vector<16x16xf32>
    %31 = arith.mulf %26, %30 : vector<16x16xf32>
    %32 = arith.truncf %31 : vector<16x16xf32> to vector<16x16xbf16>
    %cst_18 = arith.constant dense<0.000000e+00> : vector<16x8xf32>
    %33 = tpu.matmul %32, %19, %cst_18 {dimension_numbers = #tpu.dot_dimension_numbers<[1], [0], [0], [1], [0, 0, 1, 1], [], []>} : vector<16x16xbf16>, vector<16x8xbf16>, vector<16x8xf32> -> vector<16x8xf32>
    %34 = vector.extract_strided_slice %12 {offsets = [0, 8], sizes = [16, 8], strides = [1, 1]} : vector<16x32xbf16> to vector<16x8xbf16>
    %35 = vector.extract_strided_slice %13 {offsets = [0, 8], sizes = [16, 8], strides = [1, 1]} : vector<16x32xbf16> to vector<16x8xbf16>
    %36 = vector.extract_strided_slice %14 {offsets = [0, 8], sizes = [16, 8], strides = [1, 1]} : vector<16x32xbf16> to vector<16x8xbf16>
    %cst_19 = arith.constant dense<0.000000e+00> : vector<16x16xf32>
    %37 = tpu.matmul %34, %35, %cst_19 {dimension_numbers = #tpu.dot_dimension_numbers<[1], [1], [0], [0], [0, 0, 1, 0], [], []>} : vector<16x8xbf16>, vector<16x8xbf16>, vector<16x16xf32> -> vector<16x16xf32>
    %38 = arith.addf %37, %2 : vector<16x16xf32>
    %cst_20 = arith.constant dense<0xFF800000> : vector<16xf32>
    %39 = vector.multi_reduction <maximumf>, %38, %cst_20 [1] : vector<16x16xf32> to vector<16xf32>
    %40 = vector.shape_cast %39 : vector<16xf32> to vector<16x1xf32>
    %41 = vector.broadcast %40 : vector<16x1xf32> to vector<16x16xf32>
    %42 = arith.subf %38, %41 : vector<16x16xf32>
    %43 = math.exp %42 : vector<16x16xf32>
    %cst_21 = arith.constant dense<0.000000e+00> : vector<16xf32>
    %44 = vector.multi_reduction <add>, %43, %cst_21 [1] : vector<16x16xf32> to vector<16xf32>
    %45 = vector.shape_cast %44 : vector<16xf32> to vector<16x1xf32>
    %46 = tpu.reciprocal %45 {approx = true} : vector<16x1xf32> -> vector<16x1xf32>
    %47 = vector.broadcast %46 : vector<16x1xf32> to vector<16x16xf32>
    %48 = arith.mulf %43, %47 : vector<16x16xf32>
    %49 = arith.truncf %48 : vector<16x16xf32> to vector<16x16xbf16>
    %cst_22 = arith.constant dense<0.000000e+00> : vector<16x8xf32>
    %50 = tpu.matmul %49, %36, %cst_22 {dimension_numbers = #tpu.dot_dimension_numbers<[1], [0], [0], [1], [0, 0, 1, 1], [], []>} : vector<16x16xbf16>, vector<16x8xbf16>, vector<16x8xf32> -> vector<16x8xf32>
    %51 = vector.extract_strided_slice %12 {offsets = [0, 16], sizes = [16, 8], strides = [1, 1]} : vector<16x32xbf16> to vector<16x8xbf16>
    %52 = vector.extract_strided_slice %13 {offsets = [0, 16], sizes = [16, 8], strides = [1, 1]} : vector<16x32xbf16> to vector<16x8xbf16>
    %53 = vector.extract_strided_slice %14 {offsets = [0, 16], sizes = [16, 8], strides = [1, 1]} : vector<16x32xbf16> to vector<16x8xbf16>
    %cst_23 = arith.constant dense<0.000000e+00> : vector<16x16xf32>
    %54 = tpu.matmul %51, %52, %cst_23 {dimension_numbers = #tpu.dot_dimension_numbers<[1], [1], [0], [0], [0, 0, 1, 0], [], []>} : vector<16x8xbf16>, vector<16x8xbf16>, vector<16x16xf32> -> vector<16x16xf32>
    %55 = arith.addf %54, %2 : vector<16x16xf32>
    %cst_24 = arith.constant dense<0xFF800000> : vector<16xf32>
    %56 = vector.multi_reduction <maximumf>, %55, %cst_24 [1] : vector<16x16xf32> to vector<16xf32>
    %57 = vector.shape_cast %56 : vector<16xf32> to vector<16x1xf32>
    %58 = vector.broadcast %57 : vector<16x1xf32> to vector<16x16xf32>
    %59 = arith.subf %55, %58 : vector<16x16xf32>
    %60 = math.exp %59 : vector<16x16xf32>
    %cst_25 = arith.constant dense<0.000000e+00> : vector<16xf32>
    %61 = vector.multi_reduction <add>, %60, %cst_25 [1] : vector<16x16xf32> to vector<16xf32>
    %62 = vector.shape_cast %61 : vector<16xf32> to vector<16x1xf32>
    %63 = tpu.reciprocal %62 {approx = true} : vector<16x1xf32> -> vector<16x1xf32>
    %64 = vector.broadcast %63 : vector<16x1xf32> to vector<16x16xf32>
    %65 = arith.mulf %60, %64 : vector<16x16xf32>
    %66 = arith.truncf %65 : vector<16x16xf32> to vector<16x16xbf16>
    %cst_26 = arith.constant dense<0.000000e+00> : vector<16x8xf32>
    %67 = tpu.matmul %66, %53, %cst_26 {dimension_numbers = #tpu.dot_dimension_numbers<[1], [0], [0], [1], [0, 0, 1, 1], [], []>} : vector<16x16xbf16>, vector<16x8xbf16>, vector<16x8xf32> -> vector<16x8xf32>
    %68 = vector.extract_strided_slice %12 {offsets = [0, 24], sizes = [16, 8], strides = [1, 1]} : vector<16x32xbf16> to vector<16x8xbf16>
    %69 = vector.extract_strided_slice %13 {offsets = [0, 24], sizes = [16, 8], strides = [1, 1]} : vector<16x32xbf16> to vector<16x8xbf16>
    %70 = vector.extract_strided_slice %14 {offsets = [0, 24], sizes = [16, 8], strides = [1, 1]} : vector<16x32xbf16> to vector<16x8xbf16>
    %cst_27 = arith.constant dense<0.000000e+00> : vector<16x16xf32>
    %71 = tpu.matmul %68, %69, %cst_27 {dimension_numbers = #tpu.dot_dimension_numbers<[1], [1], [0], [0], [0, 0, 1, 0], [], []>} : vector<16x8xbf16>, vector<16x8xbf16>, vector<16x16xf32> -> vector<16x16xf32>
    %72 = arith.addf %71, %2 : vector<16x16xf32>
    %cst_28 = arith.constant dense<0xFF800000> : vector<16xf32>
    %73 = vector.multi_reduction <maximumf>, %72, %cst_28 [1] : vector<16x16xf32> to vector<16xf32>
    %74 = vector.shape_cast %73 : vector<16xf32> to vector<16x1xf32>
    %75 = vector.broadcast %74 : vector<16x1xf32> to vector<16x16xf32>
    %76 = arith.subf %72, %75 : vector<16x16xf32>
    %77 = math.exp %76 : vector<16x16xf32>
    %cst_29 = arith.constant dense<0.000000e+00> : vector<16xf32>
    %78 = vector.multi_reduction <add>, %77, %cst_29 [1] : vector<16x16xf32> to vector<16xf32>
    %79 = vector.shape_cast %78 : vector<16xf32> to vector<16x1xf32>
    %80 = tpu.reciprocal %79 {approx = true} : vector<16x1xf32> -> vector<16x1xf32>
    %81 = vector.broadcast %80 : vector<16x1xf32> to vector<16x16xf32>
    %82 = arith.mulf %77, %81 : vector<16x16xf32>
    %83 = arith.truncf %82 : vector<16x16xf32> to vector<16x16xbf16>
    %cst_30 = arith.constant dense<0.000000e+00> : vector<16x8xf32>
    %84 = tpu.matmul %83, %70, %cst_30 {dimension_numbers = #tpu.dot_dimension_numbers<[1], [0], [0], [1], [0, 0, 1, 1], [], []>} : vector<16x16xbf16>, vector<16x8xbf16>, vector<16x8xf32> -> vector<16x8xf32>
    %85 = tpu.concatenate %33, %50, %67, %84 in 1 : vector<16x8xf32>, vector<16x8xf32>, vector<16x8xf32>, vector<16x8xf32> -> vector<16x32xf32>
    %86 = arith.truncf %85 : vector<16x32xf32> to vector<16x32xbf16>
    %cst_31 = arith.constant dense<0.000000e+00> : vector<16x32xf32>
    %87 = tpu.matmul %86, %16, %cst_31 {dimension_numbers = #tpu.dot_dimension_numbers<[1], [0], [0], [1], [0, 0, 1, 1], [], []>} : vector<16x32xbf16>, vector<32x32xbf16>, vector<16x32xf32> -> vector<16x32xf32>
    %88 = arith.addf %0, %87 : vector<16x32xf32>
    %c1 = arith.constant 1 : index
    %c0_32 = arith.constant 0 : index
    %89 = vector.load %arg5[%c1, %c0_32] : memref<27x128xf32, #tpu.memory_space<vmem>>, vector<1x32xf32>
    %90 = vector.broadcast %89 : vector<1x32xf32> to vector<16x32xf32>
    %91 = arith.addf %88, %90 : vector<16x32xf32>
    %c7 = arith.constant 7 : index
    %c0_33 = arith.constant 0 : index
    %92 = vector.load %arg5[%c7, %c0_33] : memref<27x128xf32, #tpu.memory_space<vmem>>, vector<1x32xf32>
    %c10 = arith.constant 10 : index
    %c0_34 = arith.constant 0 : index
    %93 = vector.load %arg5[%c10, %c0_34] : memref<27x128xf32, #tpu.memory_space<vmem>>, vector<1x32xf32>
    %cst_35 = arith.constant dense<0.000000e+00> : vector<16xf32>
    %94 = vector.multi_reduction <add>, %91, %cst_35 [1] : vector<16x32xf32> to vector<16xf32>
    %95 = vector.shape_cast %94 : vector<16xf32> to vector<16x1xf32>
    %cst_36 = arith.constant 3.200000e+01 : f32
    %96 = vector.broadcast %cst_36 : f32 to vector<16x1xf32>
    %97 = arith.divf %95, %96 : vector<16x1xf32>
    %98 = vector.broadcast %97 : vector<16x1xf32> to vector<16x32xf32>
    %99 = arith.subf %91, %98 : vector<16x32xf32>
    %100 = arith.mulf %99, %99 : vector<16x32xf32>
    %cst_37 = arith.constant dense<0.000000e+00> : vector<16xf32>
    %101 = vector.multi_reduction <add>, %100, %cst_37 [1] : vector<16x32xf32> to vector<16xf32>
    %102 = vector.shape_cast %101 : vector<16xf32> to vector<16x1xf32>
    %cst_38 = arith.constant 3.200000e+01 : f32
    %103 = vector.broadcast %cst_38 : f32 to vector<16x1xf32>
    %104 = arith.divf %102, %103 : vector<16x1xf32>
    %105 = vector.broadcast %97 : vector<16x1xf32> to vector<16x32xf32>
    %106 = arith.subf %91, %105 : vector<16x32xf32>
    %cst_39 = arith.constant 9.99999974E-6 : f32
    %107 = vector.broadcast %cst_39 : f32 to vector<16x1xf32>
    %108 = arith.addf %104, %107 : vector<16x1xf32>
    %109 = math.rsqrt %108 : vector<16x1xf32>
    %110 = vector.broadcast %109 : vector<16x1xf32> to vector<16x32xf32>
    %111 = arith.mulf %106, %110 : vector<16x32xf32>
    %112 = vector.broadcast %92 : vector<1x32xf32> to vector<16x32xf32>
    %113 = arith.mulf %111, %112 : vector<16x32xf32>
    %114 = vector.broadcast %93 : vector<1x32xf32> to vector<16x32xf32>
    %115 = arith.addf %113, %114 : vector<16x32xf32>
    %c0_40 = arith.constant 0 : index
    %c0_41 = arith.constant 0 : index
    %c0_42 = arith.constant 0 : index
    %116 = vector.load %arg8[%c0_40, %c0_41, %c0_42] : memref<2x32x32xbf16, #tpu.memory_space<vmem>>, vector<1x32x32xbf16>
    %117 = vector.shape_cast %116 : vector<1x32x32xbf16> to vector<32x32xbf16>
    %c2 = arith.constant 2 : index
    %c0_43 = arith.constant 0 : index
    %118 = vector.load %arg5[%c2, %c0_43] : memref<27x128xf32, #tpu.memory_space<vmem>>, vector<1x32xf32>
    %119 = arith.truncf %115 : vector<16x32xf32> to vector<16x32xbf16>
    %cst_44 = arith.constant dense<0.000000e+00> : vector<16x32xf32>
    %120 = tpu.matmul %119, %117, %cst_44 {dimension_numbers = #tpu.dot_dimension_numbers<[1], [0], [0], [1], [0, 0, 1, 1], [], []>} : vector<16x32xbf16>, vector<32x32xbf16>, vector<16x32xf32> -> vector<16x32xf32>
    %121 = vector.broadcast %118 : vector<1x32xf32> to vector<16x32xf32>
    %122 = arith.addf %120, %121 : vector<16x32xf32>
    %123 = arith.truncf %122 : vector<16x32xf32> to vector<16x32xbf16>
    %c0_45 = arith.constant 0 : index
    %c0_46 = arith.constant 0 : index
    %c0_47 = arith.constant 0 : index
    %124 = vector.load %arg9[%c0_45, %c0_46, %c0_47] : memref<2x32x64xbf16, #tpu.memory_space<vmem>>, vector<1x32x64xbf16>
    %125 = vector.shape_cast %124 : vector<1x32x64xbf16> to vector<32x64xbf16>
    %c3 = arith.constant 3 : index
    %c0_48 = arith.constant 0 : index
    %126 = vector.load %arg5[%c3, %c0_48] : memref<27x128xf32, #tpu.memory_space<vmem>>, vector<1x64xf32>
    %127 = arith.truncf %1 : vector<24x32xf32> to vector<24x32xbf16>
    %cst_49 = arith.constant dense<0.000000e+00> : vector<24x64xf32>
    %128 = tpu.matmul %127, %125, %cst_49 {dimension_numbers = #tpu.dot_dimension_numbers<[1], [0], [0], [1], [0, 0, 1, 1], [], []>} : vector<24x32xbf16>, vector<32x64xbf16>, vector<24x64xf32> -> vector<24x64xf32>
    %129 = vector.broadcast %126 : vector<1x64xf32> to vector<24x64xf32>
    %130 = arith.addf %128, %129 : vector<24x64xf32>
    %131 = arith.truncf %130 : vector<24x64xf32> to vector<24x64xbf16>
    %132 = vector.extract_strided_slice %131 {offsets = [0, 0], sizes = [24, 32], strides = [1, 1]} : vector<24x64xbf16> to vector<24x32xbf16>
    %133 = vector.extract_strided_slice %131 {offsets = [0, 32], sizes = [24, 32], strides = [1, 1]} : vector<24x64xbf16> to vector<24x32xbf16>
    %c0_50 = arith.constant 0 : index
    %c0_51 = arith.constant 0 : index
    %c0_52 = arith.constant 0 : index
    %134 = vector.load %arg10[%c0_50, %c0_51, %c0_52] : memref<2x32x32xbf16, #tpu.memory_space<vmem>>, vector<1x32x32xbf16>
    %135 = vector.shape_cast %134 : vector<1x32x32xbf16> to vector<32x32xbf16>
    %136 = vector.extract_strided_slice %123 {offsets = [0, 0], sizes = [16, 8], strides = [1, 1]} : vector<16x32xbf16> to vector<16x8xbf16>
    %137 = vector.extract_strided_slice %132 {offsets = [0, 0], sizes = [24, 8], strides = [1, 1]} : vector<24x32xbf16> to vector<24x8xbf16>
    %138 = vector.extract_strided_slice %133 {offsets = [0, 0], sizes = [24, 8], strides = [1, 1]} : vector<24x32xbf16> to vector<24x8xbf16>
    %cst_53 = arith.constant dense<0.000000e+00> : vector<16x24xf32>
    %139 = tpu.matmul %136, %137, %cst_53 {dimension_numbers = #tpu.dot_dimension_numbers<[1], [1], [0], [0], [0, 0, 1, 0], [], []>} : vector<16x8xbf16>, vector<24x8xbf16>, vector<16x24xf32> -> vector<16x24xf32>
    %140 = arith.addf %139, %3 : vector<16x24xf32>
    %cst_54 = arith.constant dense<0xFF800000> : vector<16xf32>
    %141 = vector.multi_reduction <maximumf>, %140, %cst_54 [1] : vector<16x24xf32> to vector<16xf32>
    %142 = vector.shape_cast %141 : vector<16xf32> to vector<16x1xf32>
    %143 = vector.broadcast %142 : vector<16x1xf32> to vector<16x24xf32>
    %144 = arith.subf %140, %143 : vector<16x24xf32>
    %145 = math.exp %144 : vector<16x24xf32>
    %cst_55 = arith.constant dense<0.000000e+00> : vector<16xf32>
    %146 = vector.multi_reduction <add>, %145, %cst_55 [1] : vector<16x24xf32> to vector<16xf32>
    %147 = vector.shape_cast %146 : vector<16xf32> to vector<16x1xf32>
    %148 = tpu.reciprocal %147 {approx = true} : vector<16x1xf32> -> vector<16x1xf32>
    %149 = vector.broadcast %148 : vector<16x1xf32> to vector<16x24xf32>
    %150 = arith.mulf %145, %149 : vector<16x24xf32>
    %151 = arith.truncf %150 : vector<16x24xf32> to vector<16x24xbf16>
    %cst_56 = arith.constant dense<0.000000e+00> : vector<16x8xf32>
    %152 = tpu.matmul %151, %138, %cst_56 {dimension_numbers = #tpu.dot_dimension_numbers<[1], [0], [0], [1], [0, 0, 1, 1], [], []>} : vector<16x24xbf16>, vector<24x8xbf16>, vector<16x8xf32> -> vector<16x8xf32>
    %153 = vector.extract_strided_slice %123 {offsets = [0, 8], sizes = [16, 8], strides = [1, 1]} : vector<16x32xbf16> to vector<16x8xbf16>
    %154 = vector.extract_strided_slice %132 {offsets = [0, 8], sizes = [24, 8], strides = [1, 1]} : vector<24x32xbf16> to vector<24x8xbf16>
    %155 = vector.extract_strided_slice %133 {offsets = [0, 8], sizes = [24, 8], strides = [1, 1]} : vector<24x32xbf16> to vector<24x8xbf16>
    %cst_57 = arith.constant dense<0.000000e+00> : vector<16x24xf32>
    %156 = tpu.matmul %153, %154, %cst_57 {dimension_numbers = #tpu.dot_dimension_numbers<[1], [1], [0], [0], [0, 0, 1, 0], [], []>} : vector<16x8xbf16>, vector<24x8xbf16>, vector<16x24xf32> -> vector<16x24xf32>
    %157 = arith.addf %156, %3 : vector<16x24xf32>
    %cst_58 = arith.constant dense<0xFF800000> : vector<16xf32>
    %158 = vector.multi_reduction <maximumf>, %157, %cst_58 [1] : vector<16x24xf32> to vector<16xf32>
    %159 = vector.shape_cast %158 : vector<16xf32> to vector<16x1xf32>
    %160 = vector.broadcast %159 : vector<16x1xf32> to vector<16x24xf32>
    %161 = arith.subf %157, %160 : vector<16x24xf32>
    %162 = math.exp %161 : vector<16x24xf32>
    %cst_59 = arith.constant dense<0.000000e+00> : vector<16xf32>
    %163 = vector.multi_reduction <add>, %162, %cst_59 [1] : vector<16x24xf32> to vector<16xf32>
    %164 = vector.shape_cast %163 : vector<16xf32> to vector<16x1xf32>
    %165 = tpu.reciprocal %164 {approx = true} : vector<16x1xf32> -> vector<16x1xf32>
    %166 = vector.broadcast %165 : vector<16x1xf32> to vector<16x24xf32>
    %167 = arith.mulf %162, %166 : vector<16x24xf32>
    %168 = arith.truncf %167 : vector<16x24xf32> to vector<16x24xbf16>
    %cst_60 = arith.constant dense<0.000000e+00> : vector<16x8xf32>
    %169 = tpu.matmul %168, %155, %cst_60 {dimension_numbers = #tpu.dot_dimension_numbers<[1], [0], [0], [1], [0, 0, 1, 1], [], []>} : vector<16x24xbf16>, vector<24x8xbf16>, vector<16x8xf32> -> vector<16x8xf32>
    %170 = vector.extract_strided_slice %123 {offsets = [0, 16], sizes = [16, 8], strides = [1, 1]} : vector<16x32xbf16> to vector<16x8xbf16>
    %171 = vector.extract_strided_slice %132 {offsets = [0, 16], sizes = [24, 8], strides = [1, 1]} : vector<24x32xbf16> to vector<24x8xbf16>
    %172 = vector.extract_strided_slice %133 {offsets = [0, 16], sizes = [24, 8], strides = [1, 1]} : vector<24x32xbf16> to vector<24x8xbf16>
    %cst_61 = arith.constant dense<0.000000e+00> : vector<16x24xf32>
    %173 = tpu.matmul %170, %171, %cst_61 {dimension_numbers = #tpu.dot_dimension_numbers<[1], [1], [0], [0], [0, 0, 1, 0], [], []>} : vector<16x8xbf16>, vector<24x8xbf16>, vector<16x24xf32> -> vector<16x24xf32>
    %174 = arith.addf %173, %3 : vector<16x24xf32>
    %cst_62 = arith.constant dense<0xFF800000> : vector<16xf32>
    %175 = vector.multi_reduction <maximumf>, %174, %cst_62 [1] : vector<16x24xf32> to vector<16xf32>
    %176 = vector.shape_cast %175 : vector<16xf32> to vector<16x1xf32>
    %177 = vector.broadcast %176 : vector<16x1xf32> to vector<16x24xf32>
    %178 = arith.subf %174, %177 : vector<16x24xf32>
    %179 = math.exp %178 : vector<16x24xf32>
    %cst_63 = arith.constant dense<0.000000e+00> : vector<16xf32>
    %180 = vector.multi_reduction <add>, %179, %cst_63 [1] : vector<16x24xf32> to vector<16xf32>
    %181 = vector.shape_cast %180 : vector<16xf32> to vector<16x1xf32>
    %182 = tpu.reciprocal %181 {approx = true} : vector<16x1xf32> -> vector<16x1xf32>
    %183 = vector.broadcast %182 : vector<16x1xf32> to vector<16x24xf32>
    %184 = arith.mulf %179, %183 : vector<16x24xf32>
    %185 = arith.truncf %184 : vector<16x24xf32> to vector<16x24xbf16>
    %cst_64 = arith.constant dense<0.000000e+00> : vector<16x8xf32>
    %186 = tpu.matmul %185, %172, %cst_64 {dimension_numbers = #tpu.dot_dimension_numbers<[1], [0], [0], [1], [0, 0, 1, 1], [], []>} : vector<16x24xbf16>, vector<24x8xbf16>, vector<16x8xf32> -> vector<16x8xf32>
    %187 = vector.extract_strided_slice %123 {offsets = [0, 24], sizes = [16, 8], strides = [1, 1]} : vector<16x32xbf16> to vector<16x8xbf16>
    %188 = vector.extract_strided_slice %132 {offsets = [0, 24], sizes = [24, 8], strides = [1, 1]} : vector<24x32xbf16> to vector<24x8xbf16>
    %189 = vector.extract_strided_slice %133 {offsets = [0, 24], sizes = [24, 8], strides = [1, 1]} : vector<24x32xbf16> to vector<24x8xbf16>
    %cst_65 = arith.constant dense<0.000000e+00> : vector<16x24xf32>
    %190 = tpu.matmul %187, %188, %cst_65 {dimension_numbers = #tpu.dot_dimension_numbers<[1], [1], [0], [0], [0, 0, 1, 0], [], []>} : vector<16x8xbf16>, vector<24x8xbf16>, vector<16x24xf32> -> vector<16x24xf32>
    %191 = arith.addf %190, %3 : vector<16x24xf32>
    %cst_66 = arith.constant dense<0xFF800000> : vector<16xf32>
    %192 = vector.multi_reduction <maximumf>, %191, %cst_66 [1] : vector<16x24xf32> to vector<16xf32>
    %193 = vector.shape_cast %192 : vector<16xf32> to vector<16x1xf32>
    %194 = vector.broadcast %193 : vector<16x1xf32> to vector<16x24xf32>
    %195 = arith.subf %191, %194 : vector<16x24xf32>
    %196 = math.exp %195 : vector<16x24xf32>
    %cst_67 = arith.constant dense<0.000000e+00> : vector<16xf32>
    %197 = vector.multi_reduction <add>, %196, %cst_67 [1] : vector<16x24xf32> to vector<16xf32>
    %198 = vector.shape_cast %197 : vector<16xf32> to vector<16x1xf32>
    %199 = tpu.reciprocal %198 {approx = true} : vector<16x1xf32> -> vector<16x1xf32>
    %200 = vector.broadcast %199 : vector<16x1xf32> to vector<16x24xf32>
    %201 = arith.mulf %196, %200 : vector<16x24xf32>
    %202 = arith.truncf %201 : vector<16x24xf32> to vector<16x24xbf16>
    %cst_68 = arith.constant dense<0.000000e+00> : vector<16x8xf32>
    %203 = tpu.matmul %202, %189, %cst_68 {dimension_numbers = #tpu.dot_dimension_numbers<[1], [0], [0], [1], [0, 0, 1, 1], [], []>} : vector<16x24xbf16>, vector<24x8xbf16>, vector<16x8xf32> -> vector<16x8xf32>
    %204 = tpu.concatenate %152, %169, %186, %203 in 1 : vector<16x8xf32>, vector<16x8xf32>, vector<16x8xf32>, vector<16x8xf32> -> vector<16x32xf32>
    %205 = arith.truncf %204 : vector<16x32xf32> to vector<16x32xbf16>
    %cst_69 = arith.constant dense<0.000000e+00> : vector<16x32xf32>
    %206 = tpu.matmul %205, %135, %cst_69 {dimension_numbers = #tpu.dot_dimension_numbers<[1], [0], [0], [1], [0, 0, 1, 1], [], []>} : vector<16x32xbf16>, vector<32x32xbf16>, vector<16x32xf32> -> vector<16x32xf32>
    %207 = arith.addf %115, %206 : vector<16x32xf32>
    %c4 = arith.constant 4 : index
    %c0_70 = arith.constant 0 : index
    %208 = vector.load %arg5[%c4, %c0_70] : memref<27x128xf32, #tpu.memory_space<vmem>>, vector<1x32xf32>
    %209 = vector.broadcast %208 : vector<1x32xf32> to vector<16x32xf32>
    %210 = arith.addf %207, %209 : vector<16x32xf32>
    %c8 = arith.constant 8 : index
    %c0_71 = arith.constant 0 : index
    %211 = vector.load %arg5[%c8, %c0_71] : memref<27x128xf32, #tpu.memory_space<vmem>>, vector<1x32xf32>
    %c11 = arith.constant 11 : index
    %c0_72 = arith.constant 0 : index
    %212 = vector.load %arg5[%c11, %c0_72] : memref<27x128xf32, #tpu.memory_space<vmem>>, vector<1x32xf32>
    %cst_73 = arith.constant dense<0.000000e+00> : vector<16xf32>
    %213 = vector.multi_reduction <add>, %210, %cst_73 [1] : vector<16x32xf32> to vector<16xf32>
    %214 = vector.shape_cast %213 : vector<16xf32> to vector<16x1xf32>
    %cst_74 = arith.constant 3.200000e+01 : f32
    %215 = vector.broadcast %cst_74 : f32 to vector<16x1xf32>
    %216 = arith.divf %214, %215 : vector<16x1xf32>
    %217 = vector.broadcast %216 : vector<16x1xf32> to vector<16x32xf32>
    %218 = arith.subf %210, %217 : vector<16x32xf32>
    %219 = arith.mulf %218, %218 : vector<16x32xf32>
    %cst_75 = arith.constant dense<0.000000e+00> : vector<16xf32>
    %220 = vector.multi_reduction <add>, %219, %cst_75 [1] : vector<16x32xf32> to vector<16xf32>
    %221 = vector.shape_cast %220 : vector<16xf32> to vector<16x1xf32>
    %cst_76 = arith.constant 3.200000e+01 : f32
    %222 = vector.broadcast %cst_76 : f32 to vector<16x1xf32>
    %223 = arith.divf %221, %222 : vector<16x1xf32>
    %224 = vector.broadcast %216 : vector<16x1xf32> to vector<16x32xf32>
    %225 = arith.subf %210, %224 : vector<16x32xf32>
    %cst_77 = arith.constant 9.99999974E-6 : f32
    %226 = vector.broadcast %cst_77 : f32 to vector<16x1xf32>
    %227 = arith.addf %223, %226 : vector<16x1xf32>
    %228 = math.rsqrt %227 : vector<16x1xf32>
    %229 = vector.broadcast %228 : vector<16x1xf32> to vector<16x32xf32>
    %230 = arith.mulf %225, %229 : vector<16x32xf32>
    %231 = vector.broadcast %211 : vector<1x32xf32> to vector<16x32xf32>
    %232 = arith.mulf %230, %231 : vector<16x32xf32>
    %233 = vector.broadcast %212 : vector<1x32xf32> to vector<16x32xf32>
    %234 = arith.addf %232, %233 : vector<16x32xf32>
    %c0_78 = arith.constant 0 : index
    %c0_79 = arith.constant 0 : index
    %c0_80 = arith.constant 0 : index
    %235 = vector.load %arg11[%c0_78, %c0_79, %c0_80] : memref<2x32x64xbf16, #tpu.memory_space<vmem>>, vector<1x32x64xbf16>
    %236 = vector.shape_cast %235 : vector<1x32x64xbf16> to vector<32x64xbf16>
    %c5 = arith.constant 5 : index
    %c0_81 = arith.constant 0 : index
    %237 = vector.load %arg5[%c5, %c0_81] : memref<27x128xf32, #tpu.memory_space<vmem>>, vector<1x64xf32>
    %238 = arith.truncf %234 : vector<16x32xf32> to vector<16x32xbf16>
    %cst_82 = arith.constant dense<0.000000e+00> : vector<16x64xf32>
    %239 = tpu.matmul %238, %236, %cst_82 {dimension_numbers = #tpu.dot_dimension_numbers<[1], [0], [0], [1], [0, 0, 1, 1], [], []>} : vector<16x32xbf16>, vector<32x64xbf16>, vector<16x64xf32> -> vector<16x64xf32>
    %240 = vector.broadcast %237 : vector<1x64xf32> to vector<16x64xf32>
    %241 = arith.addf %239, %240 : vector<16x64xf32>
    %cst_83 = arith.constant 0.000000e+00 : f32
    %242 = vector.broadcast %cst_83 : f32 to vector<16x64xf32>
    %243 = arith.maximumf %241, %242 : vector<16x64xf32>
    %c0_84 = arith.constant 0 : index
    %c0_85 = arith.constant 0 : index
    %c0_86 = arith.constant 0 : index
    %244 = vector.load %arg12[%c0_84, %c0_85, %c0_86] : memref<2x64x32xbf16, #tpu.memory_space<vmem>>, vector<1x64x32xbf16>
    %245 = vector.shape_cast %244 : vector<1x64x32xbf16> to vector<64x32xbf16>
    %c6 = arith.constant 6 : index
    %c0_87 = arith.constant 0 : index
    %246 = vector.load %arg5[%c6, %c0_87] : memref<27x128xf32, #tpu.memory_space<vmem>>, vector<1x32xf32>
    %247 = arith.truncf %243 : vector<16x64xf32> to vector<16x64xbf16>
    %cst_88 = arith.constant dense<0.000000e+00> : vector<16x32xf32>
    %248 = tpu.matmul %247, %245, %cst_88 {dimension_numbers = #tpu.dot_dimension_numbers<[1], [0], [0], [1], [0, 0, 1, 1], [], []>} : vector<16x64xbf16>, vector<64x32xbf16>, vector<16x32xf32> -> vector<16x32xf32>
    %249 = vector.broadcast %246 : vector<1x32xf32> to vector<16x32xf32>
    %250 = arith.addf %248, %249 : vector<16x32xf32>
    %251 = arith.addf %234, %250 : vector<16x32xf32>
    %c9 = arith.constant 9 : index
    %c0_89 = arith.constant 0 : index
    %252 = vector.load %arg5[%c9, %c0_89] : memref<27x128xf32, #tpu.memory_space<vmem>>, vector<1x32xf32>
    %c12 = arith.constant 12 : index
    %c0_90 = arith.constant 0 : index
    %253 = vector.load %arg5[%c12, %c0_90] : memref<27x128xf32, #tpu.memory_space<vmem>>, vector<1x32xf32>
    %cst_91 = arith.constant dense<0.000000e+00> : vector<16xf32>
    %254 = vector.multi_reduction <add>, %251, %cst_91 [1] : vector<16x32xf32> to vector<16xf32>
    %255 = vector.shape_cast %254 : vector<16xf32> to vector<16x1xf32>
    %cst_92 = arith.constant 3.200000e+01 : f32
    %256 = vector.broadcast %cst_92 : f32 to vector<16x1xf32>
    %257 = arith.divf %255, %256 : vector<16x1xf32>
    %258 = vector.broadcast %257 : vector<16x1xf32> to vector<16x32xf32>
    %259 = arith.subf %251, %258 : vector<16x32xf32>
    %260 = arith.mulf %259, %259 : vector<16x32xf32>
    %cst_93 = arith.constant dense<0.000000e+00> : vector<16xf32>
    %261 = vector.multi_reduction <add>, %260, %cst_93 [1] : vector<16x32xf32> to vector<16xf32>
    %262 = vector.shape_cast %261 : vector<16xf32> to vector<16x1xf32>
    %cst_94 = arith.constant 3.200000e+01 : f32
    %263 = vector.broadcast %cst_94 : f32 to vector<16x1xf32>
    %264 = arith.divf %262, %263 : vector<16x1xf32>
    %265 = vector.broadcast %257 : vector<16x1xf32> to vector<16x32xf32>
    %266 = arith.subf %251, %265 : vector<16x32xf32>
    %cst_95 = arith.constant 9.99999974E-6 : f32
    %267 = vector.broadcast %cst_95 : f32 to vector<16x1xf32>
    %268 = arith.addf %264, %267 : vector<16x1xf32>
    %269 = math.rsqrt %268 : vector<16x1xf32>
    %270 = vector.broadcast %269 : vector<16x1xf32> to vector<16x32xf32>
    %271 = arith.mulf %266, %270 : vector<16x32xf32>
    %272 = vector.broadcast %252 : vector<1x32xf32> to vector<16x32xf32>
    %273 = arith.mulf %271, %272 : vector<16x32xf32>
    %274 = vector.broadcast %253 : vector<1x32xf32> to vector<16x32xf32>
    %275 = arith.addf %273, %274 : vector<16x32xf32>
    %c1_96 = arith.constant 1 : index
    %c0_97 = arith.constant 0 : index
    %c0_98 = arith.constant 0 : index
    %276 = vector.load %arg6[%c1_96, %c0_97, %c0_98] : memref<2x32x96xbf16, #tpu.memory_space<vmem>>, vector<1x32x96xbf16>
    %277 = vector.shape_cast %276 : vector<1x32x96xbf16> to vector<32x96xbf16>
    %c13 = arith.constant 13 : index
    %c0_99 = arith.constant 0 : index
    %278 = vector.load %arg5[%c13, %c0_99] : memref<27x128xf32, #tpu.memory_space<vmem>>, vector<1x96xf32>
    %279 = arith.truncf %275 : vector<16x32xf32> to vector<16x32xbf16>
    %cst_100 = arith.constant dense<0.000000e+00> : vector<16x96xf32>
    %280 = tpu.matmul %279, %277, %cst_100 {dimension_numbers = #tpu.dot_dimension_numbers<[1], [0], [0], [1], [0, 0, 1, 1], [], []>} : vector<16x32xbf16>, vector<32x96xbf16>, vector<16x96xf32> -> vector<16x96xf32>
    %281 = vector.broadcast %278 : vector<1x96xf32> to vector<16x96xf32>
    %282 = arith.addf %280, %281 : vector<16x96xf32>
    %283 = arith.truncf %282 : vector<16x96xf32> to vector<16x96xbf16>
    %284 = vector.extract_strided_slice %283 {offsets = [0, 0], sizes = [16, 32], strides = [1, 1]} : vector<16x96xbf16> to vector<16x32xbf16>
    %285 = vector.extract_strided_slice %283 {offsets = [0, 32], sizes = [16, 32], strides = [1, 1]} : vector<16x96xbf16> to vector<16x32xbf16>
    %286 = vector.extract_strided_slice %283 {offsets = [0, 64], sizes = [16, 32], strides = [1, 1]} : vector<16x96xbf16> to vector<16x32xbf16>
    %c1_101 = arith.constant 1 : index
    %c0_102 = arith.constant 0 : index
    %c0_103 = arith.constant 0 : index
    %287 = vector.load %arg7[%c1_101, %c0_102, %c0_103] : memref<2x32x32xbf16, #tpu.memory_space<vmem>>, vector<1x32x32xbf16>
    %288 = vector.shape_cast %287 : vector<1x32x32xbf16> to vector<32x32xbf16>
    %289 = vector.extract_strided_slice %284 {offsets = [0, 0], sizes = [16, 8], strides = [1, 1]} : vector<16x32xbf16> to vector<16x8xbf16>
    %290 = vector.extract_strided_slice %285 {offsets = [0, 0], sizes = [16, 8], strides = [1, 1]} : vector<16x32xbf16> to vector<16x8xbf16>
    %291 = vector.extract_strided_slice %286 {offsets = [0, 0], sizes = [16, 8], strides = [1, 1]} : vector<16x32xbf16> to vector<16x8xbf16>
    %cst_104 = arith.constant dense<0.000000e+00> : vector<16x16xf32>
    %292 = tpu.matmul %289, %290, %cst_104 {dimension_numbers = #tpu.dot_dimension_numbers<[1], [1], [0], [0], [0, 0, 1, 0], [], []>} : vector<16x8xbf16>, vector<16x8xbf16>, vector<16x16xf32> -> vector<16x16xf32>
    %293 = arith.addf %292, %2 : vector<16x16xf32>
    %cst_105 = arith.constant dense<0xFF800000> : vector<16xf32>
    %294 = vector.multi_reduction <maximumf>, %293, %cst_105 [1] : vector<16x16xf32> to vector<16xf32>
    %295 = vector.shape_cast %294 : vector<16xf32> to vector<16x1xf32>
    %296 = vector.broadcast %295 : vector<16x1xf32> to vector<16x16xf32>
    %297 = arith.subf %293, %296 : vector<16x16xf32>
    %298 = math.exp %297 : vector<16x16xf32>
    %cst_106 = arith.constant dense<0.000000e+00> : vector<16xf32>
    %299 = vector.multi_reduction <add>, %298, %cst_106 [1] : vector<16x16xf32> to vector<16xf32>
    %300 = vector.shape_cast %299 : vector<16xf32> to vector<16x1xf32>
    %301 = tpu.reciprocal %300 {approx = true} : vector<16x1xf32> -> vector<16x1xf32>
    %302 = vector.broadcast %301 : vector<16x1xf32> to vector<16x16xf32>
    %303 = arith.mulf %298, %302 : vector<16x16xf32>
    %304 = arith.truncf %303 : vector<16x16xf32> to vector<16x16xbf16>
    %cst_107 = arith.constant dense<0.000000e+00> : vector<16x8xf32>
    %305 = tpu.matmul %304, %291, %cst_107 {dimension_numbers = #tpu.dot_dimension_numbers<[1], [0], [0], [1], [0, 0, 1, 1], [], []>} : vector<16x16xbf16>, vector<16x8xbf16>, vector<16x8xf32> -> vector<16x8xf32>
    %306 = vector.extract_strided_slice %284 {offsets = [0, 8], sizes = [16, 8], strides = [1, 1]} : vector<16x32xbf16> to vector<16x8xbf16>
    %307 = vector.extract_strided_slice %285 {offsets = [0, 8], sizes = [16, 8], strides = [1, 1]} : vector<16x32xbf16> to vector<16x8xbf16>
    %308 = vector.extract_strided_slice %286 {offsets = [0, 8], sizes = [16, 8], strides = [1, 1]} : vector<16x32xbf16> to vector<16x8xbf16>
    %cst_108 = arith.constant dense<0.000000e+00> : vector<16x16xf32>
    %309 = tpu.matmul %306, %307, %cst_108 {dimension_numbers = #tpu.dot_dimension_numbers<[1], [1], [0], [0], [0, 0, 1, 0], [], []>} : vector<16x8xbf16>, vector<16x8xbf16>, vector<16x16xf32> -> vector<16x16xf32>
    %310 = arith.addf %309, %2 : vector<16x16xf32>
    %cst_109 = arith.constant dense<0xFF800000> : vector<16xf32>
    %311 = vector.multi_reduction <maximumf>, %310, %cst_109 [1] : vector<16x16xf32> to vector<16xf32>
    %312 = vector.shape_cast %311 : vector<16xf32> to vector<16x1xf32>
    %313 = vector.broadcast %312 : vector<16x1xf32> to vector<16x16xf32>
    %314 = arith.subf %310, %313 : vector<16x16xf32>
    %315 = math.exp %314 : vector<16x16xf32>
    %cst_110 = arith.constant dense<0.000000e+00> : vector<16xf32>
    %316 = vector.multi_reduction <add>, %315, %cst_110 [1] : vector<16x16xf32> to vector<16xf32>
    %317 = vector.shape_cast %316 : vector<16xf32> to vector<16x1xf32>
    %318 = tpu.reciprocal %317 {approx = true} : vector<16x1xf32> -> vector<16x1xf32>
    %319 = vector.broadcast %318 : vector<16x1xf32> to vector<16x16xf32>
    %320 = arith.mulf %315, %319 : vector<16x16xf32>
    %321 = arith.truncf %320 : vector<16x16xf32> to vector<16x16xbf16>
    %cst_111 = arith.constant dense<0.000000e+00> : vector<16x8xf32>
    %322 = tpu.matmul %321, %308, %cst_111 {dimension_numbers = #tpu.dot_dimension_numbers<[1], [0], [0], [1], [0, 0, 1, 1], [], []>} : vector<16x16xbf16>, vector<16x8xbf16>, vector<16x8xf32> -> vector<16x8xf32>
    %323 = vector.extract_strided_slice %284 {offsets = [0, 16], sizes = [16, 8], strides = [1, 1]} : vector<16x32xbf16> to vector<16x8xbf16>
    %324 = vector.extract_strided_slice %285 {offsets = [0, 16], sizes = [16, 8], strides = [1, 1]} : vector<16x32xbf16> to vector<16x8xbf16>
    %325 = vector.extract_strided_slice %286 {offsets = [0, 16], sizes = [16, 8], strides = [1, 1]} : vector<16x32xbf16> to vector<16x8xbf16>
    %cst_112 = arith.constant dense<0.000000e+00> : vector<16x16xf32>
    %326 = tpu.matmul %323, %324, %cst_112 {dimension_numbers = #tpu.dot_dimension_numbers<[1], [1], [0], [0], [0, 0, 1, 0], [], []>} : vector<16x8xbf16>, vector<16x8xbf16>, vector<16x16xf32> -> vector<16x16xf32>
    %327 = arith.addf %326, %2 : vector<16x16xf32>
    %cst_113 = arith.constant dense<0xFF800000> : vector<16xf32>
    %328 = vector.multi_reduction <maximumf>, %327, %cst_113 [1] : vector<16x16xf32> to vector<16xf32>
    %329 = vector.shape_cast %328 : vector<16xf32> to vector<16x1xf32>
    %330 = vector.broadcast %329 : vector<16x1xf32> to vector<16x16xf32>
    %331 = arith.subf %327, %330 : vector<16x16xf32>
    %332 = math.exp %331 : vector<16x16xf32>
    %cst_114 = arith.constant dense<0.000000e+00> : vector<16xf32>
    %333 = vector.multi_reduction <add>, %332, %cst_114 [1] : vector<16x16xf32> to vector<16xf32>
    %334 = vector.shape_cast %333 : vector<16xf32> to vector<16x1xf32>
    %335 = tpu.reciprocal %334 {approx = true} : vector<16x1xf32> -> vector<16x1xf32>
    %336 = vector.broadcast %335 : vector<16x1xf32> to vector<16x16xf32>
    %337 = arith.mulf %332, %336 : vector<16x16xf32>
    %338 = arith.truncf %337 : vector<16x16xf32> to vector<16x16xbf16>
    %cst_115 = arith.constant dense<0.000000e+00> : vector<16x8xf32>
    %339 = tpu.matmul %338, %325, %cst_115 {dimension_numbers = #tpu.dot_dimension_numbers<[1], [0], [0], [1], [0, 0, 1, 1], [], []>} : vector<16x16xbf16>, vector<16x8xbf16>, vector<16x8xf32> -> vector<16x8xf32>
    %340 = vector.extract_strided_slice %284 {offsets = [0, 24], sizes = [16, 8], strides = [1, 1]} : vector<16x32xbf16> to vector<16x8xbf16>
    %341 = vector.extract_strided_slice %285 {offsets = [0, 24], sizes = [16, 8], strides = [1, 1]} : vector<16x32xbf16> to vector<16x8xbf16>
    %342 = vector.extract_strided_slice %286 {offsets = [0, 24], sizes = [16, 8], strides = [1, 1]} : vector<16x32xbf16> to vector<16x8xbf16>
    %cst_116 = arith.constant dense<0.000000e+00> : vector<16x16xf32>
    %343 = tpu.matmul %340, %341, %cst_116 {dimension_numbers = #tpu.dot_dimension_numbers<[1], [1], [0], [0], [0, 0, 1, 0], [], []>} : vector<16x8xbf16>, vector<16x8xbf16>, vector<16x16xf32> -> vector<16x16xf32>
    %344 = arith.addf %343, %2 : vector<16x16xf32>
    %cst_117 = arith.constant dense<0xFF800000> : vector<16xf32>
    %345 = vector.multi_reduction <maximumf>, %344, %cst_117 [1] : vector<16x16xf32> to vector<16xf32>
    %346 = vector.shape_cast %345 : vector<16xf32> to vector<16x1xf32>
    %347 = vector.broadcast %346 : vector<16x1xf32> to vector<16x16xf32>
    %348 = arith.subf %344, %347 : vector<16x16xf32>
    %349 = math.exp %348 : vector<16x16xf32>
    %cst_118 = arith.constant dense<0.000000e+00> : vector<16xf32>
    %350 = vector.multi_reduction <add>, %349, %cst_118 [1] : vector<16x16xf32> to vector<16xf32>
    %351 = vector.shape_cast %350 : vector<16xf32> to vector<16x1xf32>
    %352 = tpu.reciprocal %351 {approx = true} : vector<16x1xf32> -> vector<16x1xf32>
    %353 = vector.broadcast %352 : vector<16x1xf32> to vector<16x16xf32>
    %354 = arith.mulf %349, %353 : vector<16x16xf32>
    %355 = arith.truncf %354 : vector<16x16xf32> to vector<16x16xbf16>
    %cst_119 = arith.constant dense<0.000000e+00> : vector<16x8xf32>
    %356 = tpu.matmul %355, %342, %cst_119 {dimension_numbers = #tpu.dot_dimension_numbers<[1], [0], [0], [1], [0, 0, 1, 1], [], []>} : vector<16x16xbf16>, vector<16x8xbf16>, vector<16x8xf32> -> vector<16x8xf32>
    %357 = tpu.concatenate %305, %322, %339, %356 in 1 : vector<16x8xf32>, vector<16x8xf32>, vector<16x8xf32>, vector<16x8xf32> -> vector<16x32xf32>
    %358 = arith.truncf %357 : vector<16x32xf32> to vector<16x32xbf16>
    %cst_120 = arith.constant dense<0.000000e+00> : vector<16x32xf32>
    %359 = tpu.matmul %358, %288, %cst_120 {dimension_numbers = #tpu.dot_dimension_numbers<[1], [0], [0], [1], [0, 0, 1, 1], [], []>} : vector<16x32xbf16>, vector<32x32xbf16>, vector<16x32xf32> -> vector<16x32xf32>
    %360 = arith.addf %275, %359 : vector<16x32xf32>
    %c14 = arith.constant 14 : index
    %c0_121 = arith.constant 0 : index
    %361 = vector.load %arg5[%c14, %c0_121] : memref<27x128xf32, #tpu.memory_space<vmem>>, vector<1x32xf32>
    %362 = vector.broadcast %361 : vector<1x32xf32> to vector<16x32xf32>
    %363 = arith.addf %360, %362 : vector<16x32xf32>
    %c20 = arith.constant 20 : index
    %c0_122 = arith.constant 0 : index
    %364 = vector.load %arg5[%c20, %c0_122] : memref<27x128xf32, #tpu.memory_space<vmem>>, vector<1x32xf32>
    %c23 = arith.constant 23 : index
    %c0_123 = arith.constant 0 : index
    %365 = vector.load %arg5[%c23, %c0_123] : memref<27x128xf32, #tpu.memory_space<vmem>>, vector<1x32xf32>
    %cst_124 = arith.constant dense<0.000000e+00> : vector<16xf32>
    %366 = vector.multi_reduction <add>, %363, %cst_124 [1] : vector<16x32xf32> to vector<16xf32>
    %367 = vector.shape_cast %366 : vector<16xf32> to vector<16x1xf32>
    %cst_125 = arith.constant 3.200000e+01 : f32
    %368 = vector.broadcast %cst_125 : f32 to vector<16x1xf32>
    %369 = arith.divf %367, %368 : vector<16x1xf32>
    %370 = vector.broadcast %369 : vector<16x1xf32> to vector<16x32xf32>
    %371 = arith.subf %363, %370 : vector<16x32xf32>
    %372 = arith.mulf %371, %371 : vector<16x32xf32>
    %cst_126 = arith.constant dense<0.000000e+00> : vector<16xf32>
    %373 = vector.multi_reduction <add>, %372, %cst_126 [1] : vector<16x32xf32> to vector<16xf32>
    %374 = vector.shape_cast %373 : vector<16xf32> to vector<16x1xf32>
    %cst_127 = arith.constant 3.200000e+01 : f32
    %375 = vector.broadcast %cst_127 : f32 to vector<16x1xf32>
    %376 = arith.divf %374, %375 : vector<16x1xf32>
    %377 = vector.broadcast %369 : vector<16x1xf32> to vector<16x32xf32>
    %378 = arith.subf %363, %377 : vector<16x32xf32>
    %cst_128 = arith.constant 9.99999974E-6 : f32
    %379 = vector.broadcast %cst_128 : f32 to vector<16x1xf32>
    %380 = arith.addf %376, %379 : vector<16x1xf32>
    %381 = math.rsqrt %380 : vector<16x1xf32>
    %382 = vector.broadcast %381 : vector<16x1xf32> to vector<16x32xf32>
    %383 = arith.mulf %378, %382 : vector<16x32xf32>
    %384 = vector.broadcast %364 : vector<1x32xf32> to vector<16x32xf32>
    %385 = arith.mulf %383, %384 : vector<16x32xf32>
    %386 = vector.broadcast %365 : vector<1x32xf32> to vector<16x32xf32>
    %387 = arith.addf %385, %386 : vector<16x32xf32>
    %c1_129 = arith.constant 1 : index
    %c0_130 = arith.constant 0 : index
    %c0_131 = arith.constant 0 : index
    %388 = vector.load %arg8[%c1_129, %c0_130, %c0_131] : memref<2x32x32xbf16, #tpu.memory_space<vmem>>, vector<1x32x32xbf16>
    %389 = vector.shape_cast %388 : vector<1x32x32xbf16> to vector<32x32xbf16>
    %c15 = arith.constant 15 : index
    %c0_132 = arith.constant 0 : index
    %390 = vector.load %arg5[%c15, %c0_132] : memref<27x128xf32, #tpu.memory_space<vmem>>, vector<1x32xf32>
    %391 = arith.truncf %387 : vector<16x32xf32> to vector<16x32xbf16>
    %cst_133 = arith.constant dense<0.000000e+00> : vector<16x32xf32>
    %392 = tpu.matmul %391, %389, %cst_133 {dimension_numbers = #tpu.dot_dimension_numbers<[1], [0], [0], [1], [0, 0, 1, 1], [], []>} : vector<16x32xbf16>, vector<32x32xbf16>, vector<16x32xf32> -> vector<16x32xf32>
    %393 = vector.broadcast %390 : vector<1x32xf32> to vector<16x32xf32>
    %394 = arith.addf %392, %393 : vector<16x32xf32>
    %395 = arith.truncf %394 : vector<16x32xf32> to vector<16x32xbf16>
    %c1_134 = arith.constant 1 : index
    %c0_135 = arith.constant 0 : index
    %c0_136 = arith.constant 0 : index
    %396 = vector.load %arg9[%c1_134, %c0_135, %c0_136] : memref<2x32x64xbf16, #tpu.memory_space<vmem>>, vector<1x32x64xbf16>
    %397 = vector.shape_cast %396 : vector<1x32x64xbf16> to vector<32x64xbf16>
    %c16 = arith.constant 16 : index
    %c0_137 = arith.constant 0 : index
    %398 = vector.load %arg5[%c16, %c0_137] : memref<27x128xf32, #tpu.memory_space<vmem>>, vector<1x64xf32>
    %399 = arith.truncf %1 : vector<24x32xf32> to vector<24x32xbf16>
    %cst_138 = arith.constant dense<0.000000e+00> : vector<24x64xf32>
    %400 = tpu.matmul %399, %397, %cst_138 {dimension_numbers = #tpu.dot_dimension_numbers<[1], [0], [0], [1], [0, 0, 1, 1], [], []>} : vector<24x32xbf16>, vector<32x64xbf16>, vector<24x64xf32> -> vector<24x64xf32>
    %401 = vector.broadcast %398 : vector<1x64xf32> to vector<24x64xf32>
    %402 = arith.addf %400, %401 : vector<24x64xf32>
    %403 = arith.truncf %402 : vector<24x64xf32> to vector<24x64xbf16>
    %404 = vector.extract_strided_slice %403 {offsets = [0, 0], sizes = [24, 32], strides = [1, 1]} : vector<24x64xbf16> to vector<24x32xbf16>
    %405 = vector.extract_strided_slice %403 {offsets = [0, 32], sizes = [24, 32], strides = [1, 1]} : vector<24x64xbf16> to vector<24x32xbf16>
    %c1_139 = arith.constant 1 : index
    %c0_140 = arith.constant 0 : index
    %c0_141 = arith.constant 0 : index
    %406 = vector.load %arg10[%c1_139, %c0_140, %c0_141] : memref<2x32x32xbf16, #tpu.memory_space<vmem>>, vector<1x32x32xbf16>
    %407 = vector.shape_cast %406 : vector<1x32x32xbf16> to vector<32x32xbf16>
    %408 = vector.extract_strided_slice %395 {offsets = [0, 0], sizes = [16, 8], strides = [1, 1]} : vector<16x32xbf16> to vector<16x8xbf16>
    %409 = vector.extract_strided_slice %404 {offsets = [0, 0], sizes = [24, 8], strides = [1, 1]} : vector<24x32xbf16> to vector<24x8xbf16>
    %410 = vector.extract_strided_slice %405 {offsets = [0, 0], sizes = [24, 8], strides = [1, 1]} : vector<24x32xbf16> to vector<24x8xbf16>
    %cst_142 = arith.constant dense<0.000000e+00> : vector<16x24xf32>
    %411 = tpu.matmul %408, %409, %cst_142 {dimension_numbers = #tpu.dot_dimension_numbers<[1], [1], [0], [0], [0, 0, 1, 0], [], []>} : vector<16x8xbf16>, vector<24x8xbf16>, vector<16x24xf32> -> vector<16x24xf32>
    %412 = arith.addf %411, %3 : vector<16x24xf32>
    %cst_143 = arith.constant dense<0xFF800000> : vector<16xf32>
    %413 = vector.multi_reduction <maximumf>, %412, %cst_143 [1] : vector<16x24xf32> to vector<16xf32>
    %414 = vector.shape_cast %413 : vector<16xf32> to vector<16x1xf32>
    %415 = vector.broadcast %414 : vector<16x1xf32> to vector<16x24xf32>
    %416 = arith.subf %412, %415 : vector<16x24xf32>
    %417 = math.exp %416 : vector<16x24xf32>
    %cst_144 = arith.constant dense<0.000000e+00> : vector<16xf32>
    %418 = vector.multi_reduction <add>, %417, %cst_144 [1] : vector<16x24xf32> to vector<16xf32>
    %419 = vector.shape_cast %418 : vector<16xf32> to vector<16x1xf32>
    %420 = tpu.reciprocal %419 : vector<16x1xf32> -> vector<16x1xf32>
    %421 = vector.broadcast %420 : vector<16x1xf32> to vector<16x24xf32>
    %422 = arith.mulf %417, %421 : vector<16x24xf32>
    %423 = arith.truncf %422 : vector<16x24xf32> to vector<16x24xbf16>
    %cst_145 = arith.constant dense<0.000000e+00> : vector<16x8xf32>
    %424 = tpu.matmul %423, %410, %cst_145 {dimension_numbers = #tpu.dot_dimension_numbers<[1], [0], [0], [1], [0, 0, 1, 1], [], []>} : vector<16x24xbf16>, vector<24x8xbf16>, vector<16x8xf32> -> vector<16x8xf32>
    %425 = vector.extract_strided_slice %395 {offsets = [0, 8], sizes = [16, 8], strides = [1, 1]} : vector<16x32xbf16> to vector<16x8xbf16>
    %426 = vector.extract_strided_slice %404 {offsets = [0, 8], sizes = [24, 8], strides = [1, 1]} : vector<24x32xbf16> to vector<24x8xbf16>
    %427 = vector.extract_strided_slice %405 {offsets = [0, 8], sizes = [24, 8], strides = [1, 1]} : vector<24x32xbf16> to vector<24x8xbf16>
    %cst_146 = arith.constant dense<0.000000e+00> : vector<16x24xf32>
    %428 = tpu.matmul %425, %426, %cst_146 {dimension_numbers = #tpu.dot_dimension_numbers<[1], [1], [0], [0], [0, 0, 1, 0], [], []>} : vector<16x8xbf16>, vector<24x8xbf16>, vector<16x24xf32> -> vector<16x24xf32>
    %429 = arith.addf %428, %3 : vector<16x24xf32>
    %cst_147 = arith.constant dense<0xFF800000> : vector<16xf32>
    %430 = vector.multi_reduction <maximumf>, %429, %cst_147 [1] : vector<16x24xf32> to vector<16xf32>
    %431 = vector.shape_cast %430 : vector<16xf32> to vector<16x1xf32>
    %432 = vector.broadcast %431 : vector<16x1xf32> to vector<16x24xf32>
    %433 = arith.subf %429, %432 : vector<16x24xf32>
    %434 = math.exp %433 : vector<16x24xf32>
    %cst_148 = arith.constant dense<0.000000e+00> : vector<16xf32>
    %435 = vector.multi_reduction <add>, %434, %cst_148 [1] : vector<16x24xf32> to vector<16xf32>
    %436 = vector.shape_cast %435 : vector<16xf32> to vector<16x1xf32>
    %437 = tpu.reciprocal %436 : vector<16x1xf32> -> vector<16x1xf32>
    %438 = vector.broadcast %437 : vector<16x1xf32> to vector<16x24xf32>
    %439 = arith.mulf %434, %438 : vector<16x24xf32>
    %440 = arith.truncf %439 : vector<16x24xf32> to vector<16x24xbf16>
    %cst_149 = arith.constant dense<0.000000e+00> : vector<16x8xf32>
    %441 = tpu.matmul %440, %427, %cst_149 {dimension_numbers = #tpu.dot_dimension_numbers<[1], [0], [0], [1], [0, 0, 1, 1], [], []>} : vector<16x24xbf16>, vector<24x8xbf16>, vector<16x8xf32> -> vector<16x8xf32>
    %442 = vector.extract_strided_slice %395 {offsets = [0, 16], sizes = [16, 8], strides = [1, 1]} : vector<16x32xbf16> to vector<16x8xbf16>
    %443 = vector.extract_strided_slice %404 {offsets = [0, 16], sizes = [24, 8], strides = [1, 1]} : vector<24x32xbf16> to vector<24x8xbf16>
    %444 = vector.extract_strided_slice %405 {offsets = [0, 16], sizes = [24, 8], strides = [1, 1]} : vector<24x32xbf16> to vector<24x8xbf16>
    %cst_150 = arith.constant dense<0.000000e+00> : vector<16x24xf32>
    %445 = tpu.matmul %442, %443, %cst_150 {dimension_numbers = #tpu.dot_dimension_numbers<[1], [1], [0], [0], [0, 0, 1, 0], [], []>} : vector<16x8xbf16>, vector<24x8xbf16>, vector<16x24xf32> -> vector<16x24xf32>
    %446 = arith.addf %445, %3 : vector<16x24xf32>
    %cst_151 = arith.constant dense<0xFF800000> : vector<16xf32>
    %447 = vector.multi_reduction <maximumf>, %446, %cst_151 [1] : vector<16x24xf32> to vector<16xf32>
    %448 = vector.shape_cast %447 : vector<16xf32> to vector<16x1xf32>
    %449 = vector.broadcast %448 : vector<16x1xf32> to vector<16x24xf32>
    %450 = arith.subf %446, %449 : vector<16x24xf32>
    %451 = math.exp %450 : vector<16x24xf32>
    %cst_152 = arith.constant dense<0.000000e+00> : vector<16xf32>
    %452 = vector.multi_reduction <add>, %451, %cst_152 [1] : vector<16x24xf32> to vector<16xf32>
    %453 = vector.shape_cast %452 : vector<16xf32> to vector<16x1xf32>
    %454 = tpu.reciprocal %453 : vector<16x1xf32> -> vector<16x1xf32>
    %455 = vector.broadcast %454 : vector<16x1xf32> to vector<16x24xf32>
    %456 = arith.mulf %451, %455 : vector<16x24xf32>
    %457 = arith.truncf %456 : vector<16x24xf32> to vector<16x24xbf16>
    %cst_153 = arith.constant dense<0.000000e+00> : vector<16x8xf32>
    %458 = tpu.matmul %457, %444, %cst_153 {dimension_numbers = #tpu.dot_dimension_numbers<[1], [0], [0], [1], [0, 0, 1, 1], [], []>} : vector<16x24xbf16>, vector<24x8xbf16>, vector<16x8xf32> -> vector<16x8xf32>
    %459 = vector.extract_strided_slice %395 {offsets = [0, 24], sizes = [16, 8], strides = [1, 1]} : vector<16x32xbf16> to vector<16x8xbf16>
    %460 = vector.extract_strided_slice %404 {offsets = [0, 24], sizes = [24, 8], strides = [1, 1]} : vector<24x32xbf16> to vector<24x8xbf16>
    %461 = vector.extract_strided_slice %405 {offsets = [0, 24], sizes = [24, 8], strides = [1, 1]} : vector<24x32xbf16> to vector<24x8xbf16>
    %cst_154 = arith.constant dense<0.000000e+00> : vector<16x24xf32>
    %462 = tpu.matmul %459, %460, %cst_154 {dimension_numbers = #tpu.dot_dimension_numbers<[1], [1], [0], [0], [0, 0, 1, 0], [], []>} : vector<16x8xbf16>, vector<24x8xbf16>, vector<16x24xf32> -> vector<16x24xf32>
    %463 = arith.addf %462, %3 : vector<16x24xf32>
    %cst_155 = arith.constant dense<0xFF800000> : vector<16xf32>
    %464 = vector.multi_reduction <maximumf>, %463, %cst_155 [1] : vector<16x24xf32> to vector<16xf32>
    %465 = vector.shape_cast %464 : vector<16xf32> to vector<16x1xf32>
    %466 = vector.broadcast %465 : vector<16x1xf32> to vector<16x24xf32>
    %467 = arith.subf %463, %466 : vector<16x24xf32>
    %468 = math.exp %467 : vector<16x24xf32>
    %cst_156 = arith.constant dense<0.000000e+00> : vector<16xf32>
    %469 = vector.multi_reduction <add>, %468, %cst_156 [1] : vector<16x24xf32> to vector<16xf32>
    %470 = vector.shape_cast %469 : vector<16xf32> to vector<16x1xf32>
    %471 = tpu.reciprocal %470 : vector<16x1xf32> -> vector<16x1xf32>
    %472 = vector.broadcast %471 : vector<16x1xf32> to vector<16x24xf32>
    %473 = arith.mulf %468, %472 : vector<16x24xf32>
    %474 = arith.truncf %473 : vector<16x24xf32> to vector<16x24xbf16>
    %cst_157 = arith.constant dense<0.000000e+00> : vector<16x8xf32>
    %475 = tpu.matmul %474, %461, %cst_157 {dimension_numbers = #tpu.dot_dimension_numbers<[1], [0], [0], [1], [0, 0, 1, 1], [], []>} : vector<16x24xbf16>, vector<24x8xbf16>, vector<16x8xf32> -> vector<16x8xf32>
    %476 = tpu.concatenate %424, %441, %458, %475 in 1 : vector<16x8xf32>, vector<16x8xf32>, vector<16x8xf32>, vector<16x8xf32> -> vector<16x32xf32>
    %477 = arith.truncf %476 : vector<16x32xf32> to vector<16x32xbf16>
    %cst_158 = arith.constant dense<0.000000e+00> : vector<16x32xf32>
    %478 = tpu.matmul %477, %407, %cst_158 {dimension_numbers = #tpu.dot_dimension_numbers<[1], [0], [0], [1], [0, 0, 1, 1], [], []>} : vector<16x32xbf16>, vector<32x32xbf16>, vector<16x32xf32> -> vector<16x32xf32>
    %479 = tpu.concatenate %422, %439, %456, %473 in 1 : vector<16x24xf32>, vector<16x24xf32>, vector<16x24xf32>, vector<16x24xf32> -> vector<16x96xf32>
    %480 = arith.addf %387, %478 : vector<16x32xf32>
    %c17 = arith.constant 17 : index
    %c0_159 = arith.constant 0 : index
    %481 = vector.load %arg5[%c17, %c0_159] : memref<27x128xf32, #tpu.memory_space<vmem>>, vector<1x32xf32>
    %482 = vector.broadcast %481 : vector<1x32xf32> to vector<16x32xf32>
    %483 = arith.addf %480, %482 : vector<16x32xf32>
    %c21 = arith.constant 21 : index
    %c0_160 = arith.constant 0 : index
    %484 = vector.load %arg5[%c21, %c0_160] : memref<27x128xf32, #tpu.memory_space<vmem>>, vector<1x32xf32>
    %c24 = arith.constant 24 : index
    %c0_161 = arith.constant 0 : index
    %485 = vector.load %arg5[%c24, %c0_161] : memref<27x128xf32, #tpu.memory_space<vmem>>, vector<1x32xf32>
    %cst_162 = arith.constant dense<0.000000e+00> : vector<16xf32>
    %486 = vector.multi_reduction <add>, %483, %cst_162 [1] : vector<16x32xf32> to vector<16xf32>
    %487 = vector.shape_cast %486 : vector<16xf32> to vector<16x1xf32>
    %cst_163 = arith.constant 3.200000e+01 : f32
    %488 = vector.broadcast %cst_163 : f32 to vector<16x1xf32>
    %489 = arith.divf %487, %488 : vector<16x1xf32>
    %490 = vector.broadcast %489 : vector<16x1xf32> to vector<16x32xf32>
    %491 = arith.subf %483, %490 : vector<16x32xf32>
    %492 = arith.mulf %491, %491 : vector<16x32xf32>
    %cst_164 = arith.constant dense<0.000000e+00> : vector<16xf32>
    %493 = vector.multi_reduction <add>, %492, %cst_164 [1] : vector<16x32xf32> to vector<16xf32>
    %494 = vector.shape_cast %493 : vector<16xf32> to vector<16x1xf32>
    %cst_165 = arith.constant 3.200000e+01 : f32
    %495 = vector.broadcast %cst_165 : f32 to vector<16x1xf32>
    %496 = arith.divf %494, %495 : vector<16x1xf32>
    %497 = vector.broadcast %489 : vector<16x1xf32> to vector<16x32xf32>
    %498 = arith.subf %483, %497 : vector<16x32xf32>
    %cst_166 = arith.constant 9.99999974E-6 : f32
    %499 = vector.broadcast %cst_166 : f32 to vector<16x1xf32>
    %500 = arith.addf %496, %499 : vector<16x1xf32>
    %501 = math.rsqrt %500 : vector<16x1xf32>
    %502 = vector.broadcast %501 : vector<16x1xf32> to vector<16x32xf32>
    %503 = arith.mulf %498, %502 : vector<16x32xf32>
    %504 = vector.broadcast %484 : vector<1x32xf32> to vector<16x32xf32>
    %505 = arith.mulf %503, %504 : vector<16x32xf32>
    %506 = vector.broadcast %485 : vector<1x32xf32> to vector<16x32xf32>
    %507 = arith.addf %505, %506 : vector<16x32xf32>
    %c0_167 = arith.constant 0 : index
    %c0_168 = arith.constant 0 : index
    %508 = vector.load %arg15[%c0_167, %c0_168] : memref<16x96xf32, #tpu.memory_space<vmem>>, vector<16x96xf32>
    tpu.vector_store %arg15[%c0_167, %c0_168], %479 {strides = array<i32>} : memref<16x96xf32, #tpu.memory_space<vmem>>, vector<16x96xf32>,
    %c1_169 = arith.constant 1 : index
    %c0_170 = arith.constant 0 : index
    %c0_171 = arith.constant 0 : index
    %509 = vector.load %arg11[%c1_169, %c0_170, %c0_171] : memref<2x32x64xbf16, #tpu.memory_space<vmem>>, vector<1x32x64xbf16>
    %510 = vector.shape_cast %509 : vector<1x32x64xbf16> to vector<32x64xbf16>
    %c18 = arith.constant 18 : index
    %c0_172 = arith.constant 0 : index
    %511 = vector.load %arg5[%c18, %c0_172] : memref<27x128xf32, #tpu.memory_space<vmem>>, vector<1x64xf32>
    %512 = arith.truncf %507 : vector<16x32xf32> to vector<16x32xbf16>
    %cst_173 = arith.constant dense<0.000000e+00> : vector<16x64xf32>
    %513 = tpu.matmul %512, %510, %cst_173 {dimension_numbers = #tpu.dot_dimension_numbers<[1], [0], [0], [1], [0, 0, 1, 1], [], []>} : vector<16x32xbf16>, vector<32x64xbf16>, vector<16x64xf32> -> vector<16x64xf32>
    %514 = vector.broadcast %511 : vector<1x64xf32> to vector<16x64xf32>
    %515 = arith.addf %513, %514 : vector<16x64xf32>
    %cst_174 = arith.constant 0.000000e+00 : f32
    %516 = vector.broadcast %cst_174 : f32 to vector<16x64xf32>
    %517 = arith.maximumf %515, %516 : vector<16x64xf32>
    %c1_175 = arith.constant 1 : index
    %c0_176 = arith.constant 0 : index
    %c0_177 = arith.constant 0 : index
    %518 = vector.load %arg12[%c1_175, %c0_176, %c0_177] : memref<2x64x32xbf16, #tpu.memory_space<vmem>>, vector<1x64x32xbf16>
    %519 = vector.shape_cast %518 : vector<1x64x32xbf16> to vector<64x32xbf16>
    %c19 = arith.constant 19 : index
    %c0_178 = arith.constant 0 : index
    %520 = vector.load %arg5[%c19, %c0_178] : memref<27x128xf32, #tpu.memory_space<vmem>>, vector<1x32xf32>
    %521 = arith.truncf %517 : vector<16x64xf32> to vector<16x64xbf16>
    %cst_179 = arith.constant dense<0.000000e+00> : vector<16x32xf32>
    %522 = tpu.matmul %521, %519, %cst_179 {dimension_numbers = #tpu.dot_dimension_numbers<[1], [0], [0], [1], [0, 0, 1, 1], [], []>} : vector<16x64xbf16>, vector<64x32xbf16>, vector<16x32xf32> -> vector<16x32xf32>
    %523 = vector.broadcast %520 : vector<1x32xf32> to vector<16x32xf32>
    %524 = arith.addf %522, %523 : vector<16x32xf32>
    %525 = arith.addf %507, %524 : vector<16x32xf32>
    %c22 = arith.constant 22 : index
    %c0_180 = arith.constant 0 : index
    %526 = vector.load %arg5[%c22, %c0_180] : memref<27x128xf32, #tpu.memory_space<vmem>>, vector<1x32xf32>
    %c25 = arith.constant 25 : index
    %c0_181 = arith.constant 0 : index
    %527 = vector.load %arg5[%c25, %c0_181] : memref<27x128xf32, #tpu.memory_space<vmem>>, vector<1x32xf32>
    %cst_182 = arith.constant dense<0.000000e+00> : vector<16xf32>
    %528 = vector.multi_reduction <add>, %525, %cst_182 [1] : vector<16x32xf32> to vector<16xf32>
    %529 = vector.shape_cast %528 : vector<16xf32> to vector<16x1xf32>
    %cst_183 = arith.constant 3.200000e+01 : f32
    %530 = vector.broadcast %cst_183 : f32 to vector<16x1xf32>
    %531 = arith.divf %529, %530 : vector<16x1xf32>
    %532 = vector.broadcast %531 : vector<16x1xf32> to vector<16x32xf32>
    %533 = arith.subf %525, %532 : vector<16x32xf32>
    %534 = arith.mulf %533, %533 : vector<16x32xf32>
    %cst_184 = arith.constant dense<0.000000e+00> : vector<16xf32>
    %535 = vector.multi_reduction <add>, %534, %cst_184 [1] : vector<16x32xf32> to vector<16xf32>
    %536 = vector.shape_cast %535 : vector<16xf32> to vector<16x1xf32>
    %cst_185 = arith.constant 3.200000e+01 : f32
    %537 = vector.broadcast %cst_185 : f32 to vector<16x1xf32>
    %538 = arith.divf %536, %537 : vector<16x1xf32>
    %539 = vector.broadcast %531 : vector<16x1xf32> to vector<16x32xf32>
    %540 = arith.subf %525, %539 : vector<16x32xf32>
    %cst_186 = arith.constant 9.99999974E-6 : f32
    %541 = vector.broadcast %cst_186 : f32 to vector<16x1xf32>
    %542 = arith.addf %538, %541 : vector<16x1xf32>
    %543 = math.rsqrt %542 : vector<16x1xf32>
    %544 = vector.broadcast %543 : vector<16x1xf32> to vector<16x32xf32>
    %545 = arith.mulf %540, %544 : vector<16x32xf32>
    %546 = vector.broadcast %526 : vector<1x32xf32> to vector<16x32xf32>
    %547 = arith.mulf %545, %546 : vector<16x32xf32>
    %548 = vector.broadcast %527 : vector<1x32xf32> to vector<16x32xf32>
    %549 = arith.addf %547, %548 : vector<16x32xf32>
    %c0_187 = arith.constant 0 : index
    %c0_188 = arith.constant 0 : index
    %550 = vector.load %arg13[%c0_187, %c0_188] : memref<32x128xbf16, #tpu.memory_space<vmem>>, vector<32x128xbf16>
    %c26 = arith.constant 26 : index
    %c0_189 = arith.constant 0 : index
    %551 = vector.load %arg5[%c26, %c0_189] : memref<27x128xf32, #tpu.memory_space<vmem>>, vector<1x128xf32>
    %552 = arith.truncf %549 : vector<16x32xf32> to vector<16x32xbf16>
    %cst_190 = arith.constant dense<0.000000e+00> : vector<16x128xf32>
    %553 = tpu.matmul %552, %550, %cst_190 {dimension_numbers = #tpu.dot_dimension_numbers<[1], [0], [0], [1], [0, 0, 1, 1], [], []>} : vector<16x32xbf16>, vector<32x128xbf16>, vector<16x128xf32> -> vector<16x128xf32>
    %554 = vector.broadcast %551 : vector<1x128xf32> to vector<16x128xf32>
    %555 = arith.addf %553, %554 : vector<16x128xf32>
    %c0_191 = arith.constant 0 : index
    %c0_192 = arith.constant 0 : index
    %556 = vector.load %arg14[%c0_191, %c0_192] : memref<16x128xf32, #tpu.memory_space<vmem>>, vector<16x128xf32>
    tpu.vector_store %arg14[%c0_191, %c0_192], %555 {strides = array<i32>} : memref<16x128xf32, #tpu.memory_space<vmem>>, vector<16x128xf32>,
    return
  }
  func.func @transform_0(%arg0: i32) -> (i32, i32) {
    %c0_i32 = arith.constant 0 : i32
    %c0_i32_0 = arith.constant 0 : i32
    %c0_i32_1 = arith.constant 0 : i32
    return %c0_i32, %c0_i32_0 : i32, i32
  }
  func.func @transform_1(%arg0: i32) -> (i32, i32) {
    %c0_i32 = arith.constant 0 : i32
    %c0_i32_0 = arith.constant 0 : i32
    %c0_i32_1 = arith.constant 0 : i32
    return %c0_i32, %c0_i32_0 : i32, i32
  }
  func.func @transform_2(%arg0: i32) -> (i32, i32) {
    %c0_i32 = arith.constant 0 : i32
    %c0_i32_0 = arith.constant 0 : i32
    %c0_i32_1 = arith.constant 0 : i32
    return %c0_i32, %c0_i32_0 : i32, i32
  }
  func.func @transform_3(%arg0: i32) -> (i32, i32) {
    %c0_i32 = arith.constant 0 : i32
    %c0_i32_0 = arith.constant 0 : i32
    %c0_i32_1 = arith.constant 0 : i32
    return %c0_i32, %c0_i32_0 : i32, i32
  }
  func.func @transform_4(%arg0: i32) -> (i32, i32) {
    %c0_i32 = arith.constant 0 : i32
    %c0_i32_0 = arith.constant 0 : i32
    %c0_i32_1 = arith.constant 0 : i32
    return %c0_i32, %c0_i32_0 : i32, i32
  }
  func.func @transform_5(%arg0: i32) -> (i32, i32, i32) {
    %c0_i32 = arith.constant 0 : i32
    %c0_i32_0 = arith.constant 0 : i32
    %c0_i32_1 = arith.constant 0 : i32
    %c0_i32_2 = arith.constant 0 : i32
    return %c0_i32, %c0_i32_0, %c0_i32_1 : i32, i32, i32
  }
  func.func @transform_6(%arg0: i32) -> (i32, i32, i32) {
    %c0_i32 = arith.constant 0 : i32
    %c0_i32_0 = arith.constant 0 : i32
    %c0_i32_1 = arith.constant 0 : i32
    %c0_i32_2 = arith.constant 0 : i32
    return %c0_i32, %c0_i32_0, %c0_i32_1 : i32, i32, i32
  }
  func.func @transform_7(%arg0: i32) -> (i32, i32, i32) {
    %c0_i32 = arith.constant 0 : i32
    %c0_i32_0 = arith.constant 0 : i32
    %c0_i32_1 = arith.constant 0 : i32
    %c0_i32_2 = arith.constant 0 : i32
    return %c0_i32, %c0_i32_0, %c0_i32_1 : i32, i32, i32
  }
  func.func @transform_8(%arg0: i32) -> (i32, i32, i32) {
    %c0_i32 = arith.constant 0 : i32
    %c0_i32_0 = arith.constant 0 : i32
    %c0_i32_1 = arith.constant 0 : i32
    %c0_i32_2 = arith.constant 0 : i32
    return %c0_i32, %c0_i32_0, %c0_i32_1 : i32, i32, i32
  }
  func.func @transform_9(%arg0: i32) -> (i32, i32, i32) {
    %c0_i32 = arith.constant 0 : i32
    %c0_i32_0 = arith.constant 0 : i32
    %c0_i32_1 = arith.constant 0 : i32
    %c0_i32_2 = arith.constant 0 : i32
    return %c0_i32, %c0_i32_0, %c0_i32_1 : i32, i32, i32
  }
  func.func @transform_10(%arg0: i32) -> (i32, i32, i32) {
    %c0_i32 = arith.constant 0 : i32
    %c0_i32_0 = arith.constant 0 : i32
    %c0_i32_1 = arith.constant 0 : i32
    %c0_i32_2 = arith.constant 0 : i32
    return %c0_i32, %c0_i32_0, %c0_i32_1 : i32, i32, i32
  }
  func.func @transform_11(%arg0: i32) -> (i32, i32, i32) {
    %c0_i32 = arith.constant 0 : i32
    %c0_i32_0 = arith.constant 0 : i32
    %c0_i32_1 = arith.constant 0 : i32
    %c0_i32_2 = arith.constant 0 : i32
    return %c0_i32, %c0_i32_0, %c0_i32_1 : i32, i32, i32
  }
  func.func @transform_12(%arg0: i32) -> (i32, i32) {
    %c0_i32 = arith.constant 0 : i32
    %c0_i32_0 = arith.constant 0 : i32
    %c0_i32_1 = arith.constant 0 : i32
    return %c0_i32, %c0_i32_0 : i32, i32
  }
  func.func @transform_13(%arg0: i32) -> (i32, i32) {
    %c0_i32 = arith.constant 0 : i32
    %c0_i32_0 = arith.constant 0 : i32
    %c0_i32_1 = arith.constant 0 : i32
    return %c0_i32, %c0_i32_0 : i32, i32
  }
  func.func @transform_14(%arg0: i32) -> (i32, i32) {
    %c0_i32 = arith.constant 0 : i32
    %c0_i32_0 = arith.constant 0 : i32
    %c0_i32_1 = arith.constant 0 : i32
    return %c0_i32, %c0_i32_0 : i32, i32
  }
}

</mosaic_0001>

<llo_original>
// kernel: tpu_custom_call.1
$region0: #{tpu_custom_call.1}
  #allocation0 [shape = 'u32[]', space=smem, size = 0x4, offset = 0x4, fixed_abs, tag = 'smem constant byte address 0x4 - core index']
  #allocation1 [shape = 'u32[144,128]{1,0:T(1,128)}', space=vmem, size = 0x12000, scoped, tag = 'internal scratch']
  %s0 = inlined_call_operand.hbm [shape: f32[16,32], index: 0, kind: input, shape index: {}]
  %s1 = inlined_call_operand.hbm [shape: f32[24,32], index: 1, kind: input, shape index: {}]
  %s2 = inlined_call_operand.hbm [shape: f32[16,16], index: 2, kind: input, shape index: {}]
  %s3 = inlined_call_operand.hbm [shape: f32[16,24], index: 3, kind: input, shape index: {}]
  %s4 = inlined_call_operand.vmem [shape: f32[27,128], index: 4, kind: input, shape index: {}]
  %s5 = inlined_call_operand.vmem [shape: bf16[2,32,96], index: 5, kind: input, shape index: {}]
  %s6 = inlined_call_operand.vmem [shape: bf16[2,32,32], index: 6, kind: input, shape index: {}]
  %s7 = inlined_call_operand.hbm [shape: bf16[2,32,32], index: 7, kind: input, shape index: {}]
  %s8 = inlined_call_operand.hbm [shape: bf16[2,32,64], index: 8, kind: input, shape index: {}]
  %s9 = inlined_call_operand.hbm [shape: bf16[2,32,32], index: 9, kind: input, shape index: {}]
  %s10 = inlined_call_operand.hbm [shape: bf16[2,32,64], index: 10, kind: input, shape index: {}]
  %s11 = inlined_call_operand.vmem [shape: bf16[2,64,32], index: 11, kind: input, shape index: {}]
  %s12 = inlined_call_operand.vmem [shape: bf16[32,128], index: 12, kind: input, shape index: {}]
  %s13 = inlined_call_operand.hbm [shape: f32[16,128], index: 13, kind: output, shape index: {0}]
  %s14 = inlined_call_operand.hbm [shape: f32[16,96], index: 14, kind: output, shape index: {1}]
  %15 = xla_tuple %s13, %s14
  %s16 = sld [smem:[#allocation0]]
  $region102: #{tpu_custom_call.1} parent=0
    _
  %s18 = ssub.s32 1, %s16
  %s19 = scalar_select 0, %s18, %s16
  $region1: #{tpu_custom_call.1} parent=0
    #allocation2 [shape = 'u8[8192]{0}', space=vmem, size = 0x2000, scoped, tag = 'input window, operand 0, single buffered']
    #allocation3 [shape = 's32[1]{0}', space=sflag, size = 0x4, scoped, tag = 'scoped memory for tpu_custom_call.1']
    #allocation4 [shape = 's32[1]{0}', space=sflag, size = 0x4, scoped, tag = 'scoped memory for tpu_custom_call.1']
    #allocation5 [shape = 'u8[12288]{0}', space=vmem, size = 0x3000, scoped, tag = 'input window, operand 1, single buffered']
    #allocation6 [shape = 's32[1]{0}', space=sflag, size = 0x4, scoped, tag = 'scoped memory for tpu_custom_call.1']
    #allocation7 [shape = 'u8[8192]{0}', space=vmem, size = 0x2000, scoped, tag = 'input window, operand 2, single buffered']
    #allocation8 [shape = 'u8[8192]{0}', space=vmem, size = 0x2000, scoped, tag = 'input window, operand 3, single buffered']
    #allocation9 [shape = 's32[1]{0}', space=sflag, size = 0x4, scoped, tag = 'scoped memory for tpu_custom_call.1']
    #allocation10 [shape = 'u8[16384]{0}', space=vmem, size = 0x4000, scoped, tag = 'input window, operand 7, single buffered']
    #allocation11 [shape = 'u8[16384]{0}', space=vmem, size = 0x4000, scoped, tag = 'input window, operand 8, single buffered']
    #allocation12 [shape = 's32[1]{0}', space=sflag, size = 0x4, scoped, tag = 'scoped memory for tpu_custom_call.1']
    #allocation13 [shape = 'u8[16384]{0}', space=vmem, size = 0x4000, scoped, tag = 'input window, operand 9, single buffered']
    #allocation14 [shape = 'u8[16384]{0}', space=vmem, size = 0x4000, scoped, tag = 'input window, operand 10, single buffered']
    #allocation15 [shape = 's32[1]{0}', space=sflag, size = 0x4, scoped, tag = 'scoped memory for tpu_custom_call.1']
    #allocation16 [shape = 'u8[8192]{0}', space=vmem, size = 0x2000, scoped, tag = 'output window, operand 0, single buffered']
    #allocation17 [shape = 'u8[8192]{0}', space=vmem, size = 0x2000, scoped, tag = 'output window, operand 1, single buffered']
    #allocation18 [shape = 's32[1]{0}', space=sflag, size = 0x4, scoped, tag = 'scoped memory for tpu_custom_call.1']
    %20 = vsyncpa [#allocation3], 0
    %21 = vsyncpa [#allocation6], 0
    %22 = vsyncpa [#allocation9], 0
    %23 = vsyncpa [#allocation12], 0
    %24 = vsyncpa [#allocation15], 0
    %25 = vsyncpa [#allocation4], 0
    %26 = vsyncpa [#allocation18], 0
    // Predicated region
    $region2: #{tpu_custom_call.1} parent=1 // pred_check
      _
    $region3: #{tpu_custom_call.1} parent=1 // pred_check_branch
      %28 = sbr.rel (0) target = $region5
    $region4: #{tpu_custom_call.1} parent=1 // pred_region
      %s30 = ssub.s32 256, 256
      %31 = vsyncadd [#allocation3], %s30
      %s32 = sshll.u32 [#allocation2], 4
      %s33 = int_to_ptr.vmem [resolvable:$true] %s32
      %38 = dma.hbm_to_vmem [thread:$0]  %s0, 256, %s33, [#allocation3], 128, 128, 8
    $region5: #{tpu_custom_call.1} parent=1 // pred_fallthru
      _
    // Predicated region
    $region6: #{tpu_custom_call.1} parent=1 // pred_check
      _
    $region7: #{tpu_custom_call.1} parent=1 // pred_check_branch
      %40 = sbr.rel (0) target = $region9
    $region8: #{tpu_custom_call.1} parent=1 // pred_region
      %s42 = ssub.s32 384, 384
      %43 = vsyncadd [#allocation6], %s42
      %s44 = sshll.u32 [#allocation5], 4
      %s45 = int_to_ptr.vmem [resolvable:$true] %s44
      %50 = dma.hbm_to_vmem [thread:$0]  %s1, 384, %s45, [#allocation6], 128, 128, 8
    $region9: #{tpu_custom_call.1} parent=1 // pred_fallthru
      _
    // Predicated region
    $region10: #{tpu_custom_call.1} parent=1 // pred_check
      _
    $region11: #{tpu_custom_call.1} parent=1 // pred_check_branch
      %52 = sbr.rel (0) target = $region13
    $region12: #{tpu_custom_call.1} parent=1 // pred_region
      %s54 = ssub.s32 256, 256
      %55 = vsyncadd [#allocation6], %s54
      %s56 = sshll.u32 [#allocation7], 4
      %s57 = int_to_ptr.vmem [resolvable:$true] %s56
      %62 = dma.hbm_to_vmem [thread:$0]  %s2, 256, %s57, [#allocation6], 128, 128, 8
    $region13: #{tpu_custom_call.1} parent=1 // pred_fallthru
      _
    // Predicated region
    $region14: #{tpu_custom_call.1} parent=1 // pred_check
      _
    $region15: #{tpu_custom_call.1} parent=1 // pred_check_branch
      %64 = sbr.rel (0) target = $region17
    $region16: #{tpu_custom_call.1} parent=1 // pred_region
      %s66 = ssub.s32 256, 256
      %67 = vsyncadd [#allocation9], %s66
      %s68 = sshll.u32 [#allocation8], 4
      %s69 = int_to_ptr.vmem [resolvable:$true] %s68
      %74 = dma.hbm_to_vmem [thread:$0]  %s3, 256, %s69, [#allocation9], 128, 128, 8
    $region17: #{tpu_custom_call.1} parent=1 // pred_fallthru
      _
    // Predicated region
    $region18: #{tpu_custom_call.1} parent=1 // pred_check
      _
    $region19: #{tpu_custom_call.1} parent=1 // pred_check_branch
      %76 = sbr.rel (0) target = $region21
    $region20: #{tpu_custom_call.1} parent=1 // pred_region
      _
    $region21: #{tpu_custom_call.1} parent=1 // pred_fallthru
      _
    // Predicated region
    $region22: #{tpu_custom_call.1} parent=1 // pred_check
      _
    $region23: #{tpu_custom_call.1} parent=1 // pred_check_branch
      %78 = sbr.rel (0) target = $region25
    $region24: #{tpu_custom_call.1} parent=1 // pred_region
      _
    $region25: #{tpu_custom_call.1} parent=1 // pred_fallthru
      _
    // Predicated region
    $region26: #{tpu_custom_call.1} parent=1 // pred_check
      _
    $region27: #{tpu_custom_call.1} parent=1 // pred_check_branch
      %80 = sbr.rel (0) target = $region29
    $region28: #{tpu_custom_call.1} parent=1 // pred_region
      _
    $region29: #{tpu_custom_call.1} parent=1 // pred_fallthru
      _
    // Predicated region
    $region30: #{tpu_custom_call.1} parent=1 // pred_check
      _
    $region31: #{tpu_custom_call.1} parent=1 // pred_check_branch
      %82 = sbr.rel (0) target = $region33
    $region32: #{tpu_custom_call.1} parent=1 // pred_region
      %s84 = ssub.s32 512, 512
      %85 = vsyncadd [#allocation9], %s84
      %s86 = sshll.u32 [#allocation10], 4
      %s87 = int_to_ptr.vmem [resolvable:$true] %s86
      %92 = dma.hbm_to_vmem [thread:$0]  %s7, 512, %s87, [#allocation9], 64, 64, 4
    $region33: #{tpu_custom_call.1} parent=1 // pred_fallthru
      _
    // Predicated region
    $region34: #{tpu_custom_call.1} parent=1 // pred_check
      _
    $region35: #{tpu_custom_call.1} parent=1 // pred_check_branch
      %94 = sbr.rel (0) target = $region37
    $region36: #{tpu_custom_call.1} parent=1 // pred_region
      %s96 = ssub.s32 512, 512
      %97 = vsyncadd [#allocation12], %s96
      %s98 = sshll.u32 [#allocation11], 4
      %s99 = int_to_ptr.vmem [resolvable:$true] %s98
      %104 = dma.hbm_to_vmem [thread:$0]  %s8, 512, %s99, [#allocation12], 64, 64, 4
    $region37: #{tpu_custom_call.1} parent=1 // pred_fallthru
      _
    // Predicated region
    $region38: #{tpu_custom_call.1} parent=1 // pred_check
      _
    $region39: #{tpu_custom_call.1} parent=1 // pred_check_branch
      %106 = sbr.rel (0) target = $region41
    $region40: #{tpu_custom_call.1} parent=1 // pred_region
      %s108 = ssub.s32 512, 512
      %109 = vsyncadd [#allocation12], %s108
      %s110 = sshll.u32 [#allocation13], 4
      %s111 = int_to_ptr.vmem [resolvable:$true] %s110
      %116 = dma.hbm_to_vmem [thread:$0]  %s9, 512, %s111, [#allocation12], 64, 64, 4
    $region41: #{tpu_custom_call.1} parent=1 // pred_fallthru
      _
    // Predicated region
    $region42: #{tpu_custom_call.1} parent=1 // pred_check
      _
    $region43: #{tpu_custom_call.1} parent=1 // pred_check_branch
      %118 = sbr.rel (0) target = $region45
    $region44: #{tpu_custom_call.1} parent=1 // pred_region
      %s120 = ssub.s32 512, 512
      %121 = vsyncadd [#allocation15], %s120
      %s122 = sshll.u32 [#allocation14], 4
      %s123 = int_to_ptr.vmem [resolvable:$true] %s122
      %128 = dma.hbm_to_vmem [thread:$0]  %s10, 512, %s123, [#allocation15], 64, 64, 4
    $region45: #{tpu_custom_call.1} parent=1 // pred_fallthru
      _
    // Predicated region
    $region46: #{tpu_custom_call.1} parent=1 // pred_check
      _
    $region47: #{tpu_custom_call.1} parent=1 // pred_check_branch
      %130 = sbr.rel (0) target = $region49
    $region48: #{tpu_custom_call.1} parent=1 // pred_region
      _
    $region49: #{tpu_custom_call.1} parent=1 // pred_fallthru
      _
    // Predicated region
    $region50: #{tpu_custom_call.1} parent=1 // pred_check
      _
    $region51: #{tpu_custom_call.1} parent=1 // pred_check_branch
      %132 = sbr.rel (0) target = $region53
    $region52: #{tpu_custom_call.1} parent=1 // pred_region
      _
    $region53: #{tpu_custom_call.1} parent=1 // pred_fallthru
      _
    // Predicated region
    $region54: #{tpu_custom_call.1} parent=1 // pred_check
      _
    $region55: #{tpu_custom_call.1} parent=1 // pred_check_branch
      %134 = sbr.rel (0) target = $region57
    $region56: #{tpu_custom_call.1} parent=1 // pred_region
      %135 = dma.done [#allocation3], 256
    $region57: #{tpu_custom_call.1} parent=1 // pred_fallthru
      _
    // Predicated region
    $region58: #{tpu_custom_call.1} parent=1 // pred_check
      _
    $region59: #{tpu_custom_call.1} parent=1 // pred_check_branch
      %137 = sbr.rel (0) target = $region61
    $region60: #{tpu_custom_call.1} parent=1 // pred_region
      %138 = dma.done [#allocation6], 384
    $region61: #{tpu_custom_call.1} parent=1 // pred_fallthru
      _
    // Predicated region
    $region62: #{tpu_custom_call.1} parent=1 // pred_check
      _
    $region63: #{tpu_custom_call.1} parent=1 // pred_check_branch
      %140 = sbr.rel (0) target = $region65
    $region64: #{tpu_custom_call.1} parent=1 // pred_region
      %141 = dma.done [#allocation6], 256
    $region65: #{tpu_custom_call.1} parent=1 // pred_fallthru
      _
    // Predicated region
    $region66: #{tpu_custom_call.1} parent=1 // pred_check
      _
    $region67: #{tpu_custom_call.1} parent=1 // pred_check_branch
      %143 = sbr.rel (0) target = $region69
    $region68: #{tpu_custom_call.1} parent=1 // pred_region
      %144 = dma.done [#allocation9], 256
    $region69: #{tpu_custom_call.1} parent=1 // pred_fallthru
      _
    // Predicated region
    $region70: #{tpu_custom_call.1} parent=1 // pred_check
      _
    $region71: #{tpu_custom_call.1} parent=1 // pred_check_branch
      %146 = sbr.rel (0) target = $region73
    $region72: #{tpu_custom_call.1} parent=1 // pred_region
      %147 = dma.done [#allocation9], 512
    $region73: #{tpu_custom_call.1} parent=1 // pred_fallthru
      _
    // Predicated region
    $region74: #{tpu_custom_call.1} parent=1 // pred_check
      _
    $region75: #{tpu_custom_call.1} parent=1 // pred_check_branch
      %149 = sbr.rel (0) target = $region77
    $region76: #{tpu_custom_call.1} parent=1 // pred_region
      %150 = dma.done [#allocation12], 512
    $region77: #{tpu_custom_call.1} parent=1 // pred_fallthru
      _
    // Predicated region
    $region78: #{tpu_custom_call.1} parent=1 // pred_check
      _
    $region79: #{tpu_custom_call.1} parent=1 // pred_check_branch
      %152 = sbr.rel (0) target = $region81
    $region80: #{tpu_custom_call.1} parent=1 // pred_region
      %153 = dma.done [#allocation12], 512
    $region81: #{tpu_custom_call.1} parent=1 // pred_fallthru
      _
    // Predicated region
    $region82: #{tpu_custom_call.1} parent=1 // pred_check
      _
    $region83: #{tpu_custom_call.1} parent=1 // pred_check_branch
      %155 = sbr.rel (0) target = $region85
    $region84: #{tpu_custom_call.1} parent=1 // pred_region
      %156 = dma.done [#allocation15], 512
    $region85: #{tpu_custom_call.1} parent=1 // pred_fallthru
      _
    %v158 = vld [vmem:[#allocation2] sm:$0xff]
    %v159 = vld [vmem:[#allocation2 + $0x8] sm:$0xff]
    %v160 = vld [vmem:[#allocation5] sm:$0xff]
    %v161 = vld [vmem:[#allocation5 + $0x8] sm:$0xff]
    %v162 = vld [vmem:[#allocation5 + $0x10] sm:$0xff]
    %v163 = vld [vmem:[#allocation7] sm:$0xff]
    %v164 = vld [vmem:[#allocation7 + $0x8] sm:$0xff]
    %v165 = vld [vmem:[#allocation8] sm:$0xff]
    %v166 = vld [vmem:[#allocation8 + $0x8] sm:$0xff]
    %v167 = vld [vmem:[%s5] sm:$0xf]
    %v168 = vld [vmem:[%s5 + $0x4] sm:$0xf]
    %v169 = vld [vmem:[%s5 + $0x8] sm:$0xf]
    %v170 = vld [vmem:[%s5 + $0xc] sm:$0xf]
    %v171 = vld [vmem:[%s4] sm:$0x1]
    %v172 = vpack.c.bf16 %v159, %v158
    %v173 = vlaneseq
    %v174 = vshrl.u32 %v173, 7
    %v175 = vsub.s32 0, %v174
    %v176 = vrot.slane %v171, %v175
    %v181 = vunpack.c.l.b16 %v167
    %v182 = vunpack.c.l.b16 %v168
    %v183 = vunpack.c.l.b16 %v169
    %v184 = vunpack.c.l.b16 %v170
    %v185 = vpack.c.b16 %v182, %v181
    %v186 = vpack.c.b16 %v184, %v183
    %vm189 = vcmask 261120
    %v191 = vsel %vm189, %v172, 0
    %193 = vmatprep.subr.bf16.mxu0 0
    %194 = vmatpush1.bf16.msra.mxu0 0
    %195 = vmatprep.subr.bf16.mxu0 0
    %196 = vmatpush1.bf16.msra.mxu0 0
    %197 = vmatprep.subr.bf16.mxu0 0
    %198 = vmatpush1.bf16.msra.mxu0 0
    %199 = vmatprep.subr.bf16.mxu0 0
    %200 = vmatpush1.bf16.msra.mxu0 0
    %201 = vmatprep.subr.bf16.mxu0 0
    %202 = vmatpush1.bf16.msra.mxu0 0
    %203 = vmatprep.subr.bf16.mxu0 0
    %204 = vmatpush1.bf16.msra.mxu0 0
    %205 = vmatprep.subr.bf16.mxu0 0
    %206 = vmatpush1.bf16.msra.mxu0 %v186
    %207 = vmatprep.subr.bf16.mxu0 0
    %208 = vmatpush1.bf16.msra.mxu0 %v185
    %209 = vmatprep.subr.bf16.mxu0 0
    %210 = vmatpush2.bf16.msra.mxu0 0
    %211 = vmatprep.subr.bf16.mxu0 0
    %212 = vmatpush2.bf16.msra.mxu0 0
    %213 = vmatprep.subr.bf16.mxu0 0
    %214 = vmatpush2.bf16.msra.mxu0 0
    %215 = vmatprep.subr.bf16.mxu0 0
    %216 = vmatpush2.bf16.msra.mxu0 0
    %217 = vmatprep.subr.bf16.mxu0 0
    %218 = vmatpush2.bf16.msra.mxu0 0
    %219 = vmatprep.subr.bf16.mxu0 0
    %220 = vmatpush2.bf16.msra.mxu0 0
    %221 = vmatprep.subr.bf16.mxu0 0
    %222 = vmatpush2.bf16.msra.mxu0 0
    %223 = vmatprep.subr.bf16.mxu0 0
    %224 = vmatpush2.bf16.msra.mxu0 0
    %225 = vmatprep.mubr.bf16.mxu0 0
    %226 = vmatmul.mubr.bf16.gmra.mxu0 %v191
    %v227 = vpop.f32.mrf.mxu0
    %v228 = vadd.f32 %v176, %v227
    %v229 = vpop.f32.mrf.mxu0
    %v230 = vpop.f32.mrf.mxu0
    %v231 = vadd.f32 %v176, %v230
    %v232 = vpop.f32.mrf.mxu0
    %233 = vdwg.mxu0
    %v234 = vpack.c.bf16 %v231, %v228
    %v235 = vld [vmem:[%s6] sm:$0xf]
    %v236 = vld [vmem:[%s6 + $0x4] sm:$0xf]
    %v237 = vld [vmem:[%s6 + $0x8] sm:$0xf]
    %v238 = vld [vmem:[%s6 + $0xc] sm:$0xf]
    %240 = vrot.lane.b32.xlu0 %v234, 96
    %v241 = vpop.permute.xlu0 %240
    %vm242 = vcmask 64512
    %v244 = vsel %vm242, %v234, 0
    %v247 = vsel %vm242, %v241, 0
    %249 = vmatprep.subr.bf16.mxu0 0
    %250 = vmatpush1.bf16.xpose.msra.mxu0 0
    %251 = vmatprep.subr.bf16.mxu0 0
    %252 = vmatpush1.bf16.xpose.msra.mxu0 0
    %253 = vmatprep.subr.bf16.mxu0 0
    %254 = vmatpush1.bf16.xpose.msra.mxu0 0
    %255 = vmatprep.subr.bf16.mxu0 0
    %256 = vmatpush1.bf16.xpose.msra.mxu0 0
    %257 = vmatprep.subr.bf16.mxu0 0
    %258 = vmatpush1.bf16.xpose.msra.mxu0 0
    %259 = vmatprep.subr.bf16.mxu0 0
    %260 = vmatpush1.bf16.xpose.msra.mxu0 0
    %261 = vmatprep.subr.bf16.mxu0 0
    %262 = vmatpush1.bf16.xpose.msra.mxu0 0
    %263 = vmatprep.subr.bf16.mxu0 0
    %264 = vmatpush1.bf16.xpose.msra.mxu0 %v247
    %265 = vmatprep.subr.bf16.mxu0 0
    %266 = vmatpush2.bf16.xpose.msra.mxu0 0
    %267 = vmatprep.subr.bf16.mxu0 0
    %268 = vmatpush2.bf16.xpose.msra.mxu0 0
    %269 = vmatprep.subr.bf16.mxu0 0
    %270 = vmatpush2.bf16.xpose.msra.mxu0 0
    %271 = vmatprep.subr.bf16.mxu0 0
    %272 = vmatpush2.bf16.xpose.msra.mxu0 0
    %273 = vmatprep.subr.bf16.mxu0 0
    %274 = vmatpush2.bf16.xpose.msra.mxu0 0
    %275 = vmatprep.subr.bf16.mxu0 0
    %276 = vmatpush2.bf16.xpose.msra.mxu0 0
    %277 = vmatprep.subr.bf16.mxu0 0
    %278 = vmatpush2.bf16.xpose.msra.mxu0 0
    %279 = vmatprep.subr.bf16.mxu0 0
    %280 = vmatpush2.bf16.xpose.msra.mxu0 0
    %281 = vmatprep.mubr.bf16.mxu0 0
    %282 = vmatmul.mubr.bf16.gmra.mxu0 %v244
    %v283 = vpop.f32.mrf.mxu0
    %v284 = vadd.f32 %v163, %v283
    %v285 = vpop.f32.mrf.mxu0
    %v286 = vpop.f32.mrf.mxu0
    %v287 = vadd.f32 %v164, %v286
    %v288 = vpop.f32.mrf.mxu0
    %289 = vdwg.mxu0
    %vm290 = vcmask 130048
    %v291 = vsel %vm290, %v284, -inf
    %292 = vmax.xlane.f32.xlu0 %v291
    %v293 = vpop.xlane.xlu0 %292
    %v294 = vsel %vm290, %v287, -inf
    %295 = vmax.xlane.f32.xlu0 %v294
    %v296 = vpop.xlane.xlu0 %295
    %v297 = vsub.f32 %v284, %v293
    %v298 = vsub.f32 %v287, %v296
    %v299 = vmul.f32 %v297, 1.442695
    %v300 = vpow.pop %v299
    %v301 = vmul.f32 %v298, 1.442695
    %v302 = vpow.pop %v301
    %v303 = vsel %vm290, %v300, 0.0
    %304 = vadd.xlane.f32.xlu0 %v303
    %v305 = vpop.xlane.xlu0 %304
    %v306 = vsel %vm290, %v302, 0.0
    %307 = vadd.xlane.f32.xlu0 %v306
    %v308 = vpop.xlane.xlu0 %307
    %v309 = vrcp.pop %v305
    %v310 = vrcp.pop %v308
    %v311 = vmul.f32 %v300, %v309
    %v312 = vmul.f32 %v302, %v310
    %v313 = vpack.c.bf16 %v312, %v311
    %314 = vrot.lane.b32.xlu0 %v234, 64
    %v315 = vpop.permute.xlu0 %314
    %v318 = vsel %vm290, %v313, 0
    %320 = vmatprep.subr.bf16.mxu0 0
    %321 = vmatpush1.bf16.msra.mxu0 0
    %322 = vmatprep.subr.bf16.mxu0 0
    %323 = vmatpush1.bf16.msra.mxu0 0
    %324 = vmatprep.subr.bf16.mxu0 0
    %325 = vmatpush1.bf16.msra.mxu0 0
    %326 = vmatprep.subr.bf16.mxu0 0
    %327 = vmatpush1.bf16.msra.mxu0 0
    %328 = vmatprep.subr.bf16.mxu0 0
    %329 = vmatpush1.bf16.msra.mxu0 0
    %330 = vmatprep.subr.bf16.mxu0 0
    %331 = vmatpush1.bf16.msra.mxu0 0
    %332 = vmatprep.subr.bf16.mxu0 0
    %333 = vmatpush1.bf16.msra.mxu0 0
    %334 = vmatprep.subr.bf16.mxu0 0
    %335 = vmatpush1.bf16.msra.mxu0 %v315
    %336 = vmatprep.subr.bf16.mxu0 0
    %337 = vmatpush2.bf16.msra.mxu0 0
    %338 = vmatprep.subr.bf16.mxu0 0
    %339 = vmatpush2.bf16.msra.mxu0 0
    %340 = vmatprep.subr.bf16.mxu0 0
    %341 = vmatpush2.bf16.msra.mxu0 0
    %342 = vmatprep.subr.bf16.mxu0 0
    %343 = vmatpush2.bf16.msra.mxu0 0
    %344 = vmatprep.subr.bf16.mxu0 0
    %345 = vmatpush2.bf16.msra.mxu0 0
    %346 = vmatprep.subr.bf16.mxu0 0
    %347 = vmatpush2.bf16.msra.mxu0 0
    %348 = vmatprep.subr.bf16.mxu0 0
    %349 = vmatpush2.bf16.msra.mxu0 0
    %350 = vmatprep.subr.bf16.mxu0 0
    %351 = vmatpush2.bf16.msra.mxu0 0
    %352 = vmatprep.mubr.bf16.mxu0 0
    %353 = vmatmul.mubr.bf16.gmra.mxu0 %v318
    %v354 = vpop.f32.mrf.mxu0
    %v355 = vadd.f32 0.0, %v354
    %v356 = vpop.f32.mrf.mxu0
    %v357 = vpop.f32.mrf.mxu0
    %v358 = vadd.f32 0.0, %v357
    %v359 = vpop.f32.mrf.mxu0
    %360 = vdwg.mxu0
    %361 = vrot.lane.b32.xlu0 %v234, 120
    %v362 = vpop.permute.xlu0 %361
    %363 = vrot.lane.b32.xlu0 %v234, 88
    %v364 = vpop.permute.xlu0 %363
    %v366 = vsel %vm242, %v362, 0
    %v369 = vsel %vm242, %v364, 0
    %371 = vmatprep.subr.bf16.mxu0 0
    %372 = vmatpush1.bf16.xpose.msra.mxu0 0
    %373 = vmatprep.subr.bf16.mxu0 0
    %374 = vmatpush1.bf16.xpose.msra.mxu0 0
    %375 = vmatprep.subr.bf16.mxu0 0
    %376 = vmatpush1.bf16.xpose.msra.mxu0 0
    %377 = vmatprep.subr.bf16.mxu0 0
    %378 = vmatpush1.bf16.xpose.msra.mxu0 0
    %379 = vmatprep.subr.bf16.mxu0 0
    %380 = vmatpush1.bf16.xpose.msra.mxu0 0
    %381 = vmatprep.subr.bf16.mxu0 0
    %382 = vmatpush1.bf16.xpose.msra.mxu0 0
    %383 = vmatprep.subr.bf16.mxu0 0
    %384 = vmatpush1.bf16.xpose.msra.mxu0 0
    %385 = vmatprep.subr.bf16.mxu0 0
    %386 = vmatpush1.bf16.xpose.msra.mxu0 %v369
    %387 = vmatprep.subr.bf16.mxu0 0
    %388 = vmatpush2.bf16.xpose.msra.mxu0 0
    %389 = vmatprep.subr.bf16.mxu0 0
    %390 = vmatpush2.bf16.xpose.msra.mxu0 0
    %391 = vmatprep.subr.bf16.mxu0 0
    %392 = vmatpush2.bf16.xpose.msra.mxu0 0
    %393 = vmatprep.subr.bf16.mxu0 0
    %394 = vmatpush2.bf16.xpose.msra.mxu0 0
    %395 = vmatprep.subr.bf16.mxu0 0
    %396 = vmatpush2.bf16.xpose.msra.mxu0 0
    %397 = vmatprep.subr.bf16.mxu0 0
    %398 = vmatpush2.bf16.xpose.msra.mxu0 0
    %399 = vmatprep.subr.bf16.mxu0 0
    %400 = vmatpush2.bf16.xpose.msra.mxu0 0
    %401 = vmatprep.subr.bf16.mxu0 0
    %402 = vmatpush2.bf16.xpose.msra.mxu0 0
    %403 = vmatprep.mubr.bf16.mxu0 0
    %404 = vmatmul.mubr.bf16.gmra.mxu0 %v366
    %v405 = vpop.f32.mrf.mxu0
    %v406 = vadd.f32 %v163, %v405
    %v407 = vpop.f32.mrf.mxu0
    %v408 = vpop.f32.mrf.mxu0
    %v409 = vadd.f32 %v164, %v408
    %v410 = vpop.f32.mrf.mxu0
    %411 = vdwg.mxu0
    %v412 = vsel %vm290, %v406, -inf
    %413 = vmax.xlane.f32.xlu0 %v412
    %v414 = vpop.xlane.xlu0 %413
    %v415 = vsel %vm290, %v409, -inf
    %416 = vmax.xlane.f32.xlu0 %v415
    %v417 = vpop.xlane.xlu0 %416
    %v418 = vsub.f32 %v406, %v414
    %v419 = vsub.f32 %v409, %v417
    %v420 = vmul.f32 %v418, 1.442695
    %v421 = vpow.pop %v420
    %v422 = vmul.f32 %v419, 1.442695
    %v423 = vpow.pop %v422
    %v424 = vsel %vm290, %v421, 0.0
    %425 = vadd.xlane.f32.xlu0 %v424
    %v426 = vpop.xlane.xlu0 %425
    %v427 = vsel %vm290, %v423, 0.0
    %428 = vadd.xlane.f32.xlu0 %v427
    %v429 = vpop.xlane.xlu0 %428
    %v430 = vrcp.pop %v426
    %v431 = vrcp.pop %v429
    %v432 = vmul.f32 %v421, %v430
    %v433 = vmul.f32 %v423, %v431
    %v434 = vpack.c.bf16 %v433, %v432
    %435 = vrot.lane.b32.xlu0 %v234, 56
    %v436 = vpop.permute.xlu0 %435
    %v439 = vsel %vm290, %v434, 0
    %441 = vmatprep.subr.bf16.mxu0 0
    %442 = vmatpush1.bf16.msra.mxu0 0
    %443 = vmatprep.subr.bf16.mxu0 0
    %444 = vmatpush1.bf16.msra.mxu0 0
    %445 = vmatprep.subr.bf16.mxu0 0
    %446 = vmatpush1.bf16.msra.mxu0 0
    %447 = vmatprep.subr.bf16.mxu0 0
    %448 = vmatpush1.bf16.msra.mxu0 0
    %449 = vmatprep.subr.bf16.mxu0 0
    %450 = vmatpush1.bf16.msra.mxu0 0
    %451 = vmatprep.subr.bf16.mxu0 0
    %452 = vmatpush1.bf16.msra.mxu0 0
    %453 = vmatprep.subr.bf16.mxu0 0
    %454 = vmatpush1.bf16.msra.mxu0 0
    %455 = vmatprep.subr.bf16.mxu0 0
    %456 = vmatpush1.bf16.msra.mxu0 %v436
    %457 = vmatprep.subr.bf16.mxu0 0
    %458 = vmatpush2.bf16.msra.mxu0 0
    %459 = vmatprep.subr.bf16.mxu0 0
    %460 = vmatpush2.bf16.msra.mxu0 0
    %461 = vmatprep.subr.bf16.mxu0 0
    %462 = vmatpush2.bf16.msra.mxu0 0
    %463 = vmatprep.subr.bf16.mxu0 0
    %464 = vmatpush2.bf16.msra.mxu0 0
    %465 = vmatprep.subr.bf16.mxu0 0
    %466 = vmatpush2.bf16.msra.mxu0 0
    %467 = vmatprep.subr.bf16.mxu0 0
    %468 = vmatpush2.bf16.msra.mxu0 0
    %469 = vmatprep.subr.bf16.mxu0 0
    %470 = vmatpush2.bf16.msra.mxu0 0
    %471 = vmatprep.subr.bf16.mxu0 0
    %472 = vmatpush2.bf16.msra.mxu0 0
    %473 = vmatprep.mubr.bf16.mxu0 0
    %474 = vmatmul.mubr.bf16.gmra.mxu0 %v439
    %v475 = vpop.f32.mrf.mxu0
    %v476 = vadd.f32 0.0, %v475
    %v477 = vpop.f32.mrf.mxu0
    %v478 = vpop.f32.mrf.mxu0
    %v479 = vadd.f32 0.0, %v478
    %v480 = vpop.f32.mrf.mxu0
    %481 = vdwg.mxu0
    %482 = vrot.lane.b32.xlu0 %v234, 112
    %v483 = vpop.permute.xlu0 %482
    %484 = vrot.lane.b32.xlu0 %v234, 80
    %v485 = vpop.permute.xlu0 %484
    %v487 = vsel %vm242, %v483, 0
    %v490 = vsel %vm242, %v485, 0
    %492 = vmatprep.subr.bf16.mxu0 0
    %493 = vmatpush1.bf16.xpose.msra.mxu0 0
    %494 = vmatprep.subr.bf16.mxu0 0
    %495 = vmatpush1.bf16.xpose.msra.mxu0 0
    %496 = vmatprep.subr.bf16.mxu0 0
    %497 = vmatpush1.bf16.xpose.msra.mxu0 0
    %498 = vmatprep.subr.bf16.mxu0 0
    %499 = vmatpush1.bf16.xpose.msra.mxu0 0
    %500 = vmatprep.subr.bf16.mxu0 0
    %501 = vmatpush1.bf16.xpose.msra.mxu0 0
    %502 = vmatprep.subr.bf16.mxu0 0
    %503 = vmatpush1.bf16.xpose.msra.mxu0 0
    %504 = vmatprep.subr.bf16.mxu0 0
    %505 = vmatpush1.bf16.xpose.msra.mxu0 0
    %506 = vmatprep.subr.bf16.mxu0 0
    %507 = vmatpush1.bf16.xpose.msra.mxu0 %v490
    %508 = vmatprep.subr.bf16.mxu0 0
    %509 = vmatpush2.bf16.xpose.msra.mxu0 0
    %510 = vmatprep.subr.bf16.mxu0 0
    %511 = vmatpush2.bf16.xpose.msra.mxu0 0
    %512 = vmatprep.subr.bf16.mxu0 0
    %513 = vmatpush2.bf16.xpose.msra.mxu0 0
    %514 = vmatprep.subr.bf16.mxu0 0
    %515 = vmatpush2.bf16.xpose.msra.mxu0 0
    %516 = vmatprep.subr.bf16.mxu0 0
    %517 = vmatpush2.bf16.xpose.msra.mxu0 0
    %518 = vmatprep.subr.bf16.mxu0 0
    %519 = vmatpush2.bf16.xpose.msra.mxu0 0
    %520 = vmatprep.subr.bf16.mxu0 0
    %521 = vmatpush2.bf16.xpose.msra.mxu0 0
    %522 = vmatprep.subr.bf16.mxu0 0
    %523 = vmatpush2.bf16.xpose.msra.mxu0 0
    %524 = vmatprep.mubr.bf16.mxu0 0
    %525 = vmatmul.mubr.bf16.gmra.mxu0 %v487
    %v526 = vpop.f32.mrf.mxu0
    %v527 = vadd.f32 %v163, %v526
    %v528 = vpop.f32.mrf.mxu0
    %v529 = vpop.f32.mrf.mxu0
    %v530 = vadd.f32 %v164, %v529
    %v531 = vpop.f32.mrf.mxu0
    %532 = vdwg.mxu0
    %v533 = vsel %vm290, %v527, -inf
    %534 = vmax.xlane.f32.xlu0 %v533
    %v535 = vpop.xlane.xlu0 %534
    %v536 = vsel %vm290, %v530, -inf
    %537 = vmax.xlane.f32.xlu0 %v536
    %v538 = vpop.xlane.xlu0 %537
    %v539 = vsub.f32 %v527, %v535
    %v540 = vsub.f32 %v530, %v538
    %v541 = vmul.f32 %v539, 1.442695
    %v542 = vpow.pop %v541
    %v543 = vmul.f32 %v540, 1.442695
    %v544 = vpow.pop %v543
    %v545 = vsel %vm290, %v542, 0.0
    %546 = vadd.xlane.f32.xlu0 %v545
    %v547 = vpop.xlane.xlu0 %546
    %v548 = vsel %vm290, %v544, 0.0
    %549 = vadd.xlane.f32.xlu0 %v548
    %v550 = vpop.xlane.xlu0 %549
    %v551 = vrcp.pop %v547
    %v552 = vrcp.pop %v550
    %v553 = vmul.f32 %v542, %v551
    %v554 = vmul.f32 %v544, %v552
    %v555 = vpack.c.bf16 %v554, %v553
    %556 = vrot.lane.b32.xlu0 %v234, 48
    %v557 = vpop.permute.xlu0 %556
    %v560 = vsel %vm290, %v555, 0
    %562 = vmatprep.subr.bf16.mxu0 0
    %563 = vmatpush1.bf16.msra.mxu0 0
    %564 = vmatprep.subr.bf16.mxu0 0
    %565 = vmatpush1.bf16.msra.mxu0 0
    %566 = vmatprep.subr.bf16.mxu0 0
    %567 = vmatpush1.bf16.msra.mxu0 0
    %568 = vmatprep.subr.bf16.mxu0 0
    %569 = vmatpush1.bf16.msra.mxu0 0
    %570 = vmatprep.subr.bf16.mxu0 0
    %571 = vmatpush1.bf16.msra.mxu0 0
    %572 = vmatprep.subr.bf16.mxu0 0
    %573 = vmatpush1.bf16.msra.mxu0 0
    %574 = vmatprep.subr.bf16.mxu0 0
    %575 = vmatpush1.bf16.msra.mxu0 0
    %576 = vmatprep.subr.bf16.mxu0 0
    %577 = vmatpush1.bf16.msra.mxu0 %v557
    %578 = vmatprep.subr.bf16.mxu0 0
    %579 = vmatpush2.bf16.msra.mxu0 0
    %580 = vmatprep.subr.bf16.mxu0 0
    %581 = vmatpush2.bf16.msra.mxu0 0
    %582 = vmatprep.subr.bf16.mxu0 0
    %583 = vmatpush2.bf16.msra.mxu0 0
    %584 = vmatprep.subr.bf16.mxu0 0
    %585 = vmatpush2.bf16.msra.mxu0 0
    %586 = vmatprep.subr.bf16.mxu0 0
    %587 = vmatpush2.bf16.msra.mxu0 0
    %588 = vmatprep.subr.bf16.mxu0 0
    %589 = vmatpush2.bf16.msra.mxu0 0
    %590 = vmatprep.subr.bf16.mxu0 0
    %591 = vmatpush2.bf16.msra.mxu0 0
    %592 = vmatprep.subr.bf16.mxu0 0
    %593 = vmatpush2.bf16.msra.mxu0 0
    %594 = vmatprep.mubr.bf16.mxu0 0
    %595 = vmatmul.mubr.bf16.gmra.mxu0 %v560
    %v596 = vpop.f32.mrf.mxu0
    %v597 = vadd.f32 0.0, %v596
    %v598 = vpop.f32.mrf.mxu0
    %v599 = vpop.f32.mrf.mxu0
    %v600 = vadd.f32 0.0, %v599
    %v601 = vpop.f32.mrf.mxu0
    %602 = vdwg.mxu0
    %603 = vrot.lane.b32.xlu0 %v234, 104
    %v604 = vpop.permute.xlu0 %603
    %605 = vrot.lane.b32.xlu0 %v234, 72
    %v606 = vpop.permute.xlu0 %605
    %v608 = vsel %vm242, %v604, 0
    %v611 = vsel %vm242, %v606, 0
    %613 = vmatprep.subr.bf16.mxu0 0
    %614 = vmatpush1.bf16.xpose.msra.mxu0 0
    %615 = vmatprep.subr.bf16.mxu0 0
    %616 = vmatpush1.bf16.xpose.msra.mxu0 0
    %617 = vmatprep.subr.bf16.mxu0 0
    %618 = vmatpush1.bf16.xpose.msra.mxu0 0
    %619 = vmatprep.subr.bf16.mxu0 0
    %620 = vmatpush1.bf16.xpose.msra.mxu0 0
    %621 = vmatprep.subr.bf16.mxu0 0
    %622 = vmatpush1.bf16.xpose.msra.mxu0 0
    %623 = vmatprep.subr.bf16.mxu0 0
    %624 = vmatpush1.bf16.xpose.msra.mxu0 0
    %625 = vmatprep.subr.bf16.mxu0 0
    %626 = vmatpush1.bf16.xpose.msra.mxu0 0
    %627 = vmatprep.subr.bf16.mxu0 0
    %628 = vmatpush1.bf16.xpose.msra.mxu0 %v611
    %629 = vmatprep.subr.bf16.mxu0 0
    %630 = vmatpush2.bf16.xpose.msra.mxu0 0
    %631 = vmatprep.subr.bf16.mxu0 0
    %632 = vmatpush2.bf16.xpose.msra.mxu0 0
    %633 = vmatprep.subr.bf16.mxu0 0
    %634 = vmatpush2.bf16.xpose.msra.mxu0 0
    %635 = vmatprep.subr.bf16.mxu0 0
    %636 = vmatpush2.bf16.xpose.msra.mxu0 0
    %637 = vmatprep.subr.bf16.mxu0 0
    %638 = vmatpush2.bf16.xpose.msra.mxu0 0
    %639 = vmatprep.subr.bf16.mxu0 0
    %640 = vmatpush2.bf16.xpose.msra.mxu0 0
    %641 = vmatprep.subr.bf16.mxu0 0
    %642 = vmatpush2.bf16.xpose.msra.mxu0 0
    %643 = vmatprep.subr.bf16.mxu0 0
    %644 = vmatpush2.bf16.xpose.msra.mxu0 0
    %645 = vmatprep.mubr.bf16.mxu0 0
    %646 = vmatmul.mubr.bf16.gmra.mxu0 %v608
    %v647 = vpop.f32.mrf.mxu0
    %v648 = vadd.f32 %v163, %v647
    %v649 = vpop.f32.mrf.mxu0
    %v650 = vpop.f32.mrf.mxu0
    %v651 = vadd.f32 %v164, %v650
    %v652 = vpop.f32.mrf.mxu0
    %653 = vdwg.mxu0
    %v654 = vsel %vm290, %v648, -inf
    %655 = vmax.xlane.f32.xlu0 %v654
    %v656 = vpop.xlane.xlu0 %655
    %v657 = vsel %vm290, %v651, -inf
    %658 = vmax.xlane.f32.xlu0 %v657
    %v659 = vpop.xlane.xlu0 %658
    %v660 = vsub.f32 %v648, %v656
    %v661 = vsub.f32 %v651, %v659
    %v662 = vmul.f32 %v660, 1.442695
    %v663 = vpow.pop %v662
    %v664 = vmul.f32 %v661, 1.442695
    %v665 = vpow.pop %v664
    %v666 = vsel %vm290, %v663, 0.0
    %667 = vadd.xlane.f32.xlu0 %v666
    %v668 = vpop.xlane.xlu0 %667
    %v669 = vsel %vm290, %v665, 0.0
    %670 = vadd.xlane.f32.xlu0 %v669
    %v671 = vpop.xlane.xlu0 %670
    %v672 = vrcp.pop %v668
    %v673 = vrcp.pop %v671
    %v674 = vmul.f32 %v663, %v672
    %v675 = vmul.f32 %v665, %v673
    %v676 = vpack.c.bf16 %v675, %v674
    %677 = vrot.lane.b32.xlu0 %v234, 40
    %v678 = vpop.permute.xlu0 %677
    %v681 = vsel %vm290, %v676, 0
    %683 = vmatprep.subr.bf16.mxu0 0
    %684 = vmatpush1.bf16.msra.mxu0 0
    %685 = vmatprep.subr.bf16.mxu0 0
    %686 = vmatpush1.bf16.msra.mxu0 0
    %687 = vmatprep.subr.bf16.mxu0 0
    %688 = vmatpush1.bf16.msra.mxu0 0
    %689 = vmatprep.subr.bf16.mxu0 0
    %690 = vmatpush1.bf16.msra.mxu0 0
    %691 = vmatprep.subr.bf16.mxu0 0
    %692 = vmatpush1.bf16.msra.mxu0 0
    %693 = vmatprep.subr.bf16.mxu0 0
    %694 = vmatpush1.bf16.msra.mxu0 0
    %695 = vmatprep.subr.bf16.mxu0 0
    %696 = vmatpush1.bf16.msra.mxu0 0
    %697 = vmatprep.subr.bf16.mxu0 0
    %698 = vmatpush1.bf16.msra.mxu0 %v678
    %699 = vmatprep.subr.bf16.mxu0 0
    %700 = vmatpush2.bf16.msra.mxu0 0
    %701 = vmatprep.subr.bf16.mxu0 0
    %702 = vmatpush2.bf16.msra.mxu0 0
    %703 = vmatprep.subr.bf16.mxu0 0
    %704 = vmatpush2.bf16.msra.mxu0 0
    %705 = vmatprep.subr.bf16.mxu0 0
    %706 = vmatpush2.bf16.msra.mxu0 0
    %707 = vmatprep.subr.bf16.mxu0 0
    %708 = vmatpush2.bf16.msra.mxu0 0
    %709 = vmatprep.subr.bf16.mxu0 0
    %710 = vmatpush2.bf16.msra.mxu0 0
    %711 = vmatprep.subr.bf16.mxu0 0
    %712 = vmatpush2.bf16.msra.mxu0 0
    %713 = vmatprep.subr.bf16.mxu0 0
    %714 = vmatpush2.bf16.msra.mxu0 0
    %715 = vmatprep.mubr.bf16.mxu0 0
    %716 = vmatmul.mubr.bf16.gmra.mxu0 %v681
    %v717 = vpop.f32.mrf.mxu0
    %v718 = vadd.f32 0.0, %v717
    %v719 = vpop.f32.mrf.mxu0
    %v720 = vpop.f32.mrf.mxu0
    %v721 = vadd.f32 0.0, %v720
    %v722 = vpop.f32.mrf.mxu0
    %723 = vdwg.mxu0
    %726 = vrot.lane.b32.xlu0 %v476, 8
    %v727 = vpop.permute.xlu0 %726
    %728 = vrot.lane.b32.xlu0 %v479, 8
    %v729 = vpop.permute.xlu0 %728
    %734 = vrot.lane.b32.xlu0 %v597, 16
    %v735 = vpop.permute.xlu0 %734
    %736 = vrot.lane.b32.xlu0 %v600, 16
    %v737 = vpop.permute.xlu0 %736
    %742 = vrot.lane.b32.xlu0 %v718, 24
    %v743 = vpop.permute.xlu0 %742
    %744 = vrot.lane.b32.xlu0 %v721, 24
    %v745 = vpop.permute.xlu0 %744
    %v748 = vsel %vm242, %v355, %v727
    %v749 = vsel %vm242, %v358, %v729
    %v750 = vsel %vm290, %v748, %v735
    %v751 = vsel %vm290, %v749, %v737
    %vm752 = vcmask 195584
    %v753 = vsel %vm752, %v750, %v743
    %v754 = vsel %vm752, %v751, %v745
    %v755 = vpack.c.bf16 %v754, %v753
    %v760 = vunpack.c.l.b16 %v235
    %v761 = vunpack.c.l.b16 %v236
    %v762 = vunpack.c.l.b16 %v237
    %v763 = vunpack.c.l.b16 %v238
    %v764 = vpack.c.b16 %v761, %v760
    %v765 = vpack.c.b16 %v763, %v762
    %v769 = vsel %vm189, %v755, 0
    %771 = vmatprep.subr.bf16.mxu0 0
    %772 = vmatpush1.bf16.msra.mxu0 0
    %773 = vmatprep.subr.bf16.mxu0 0
    %774 = vmatpush1.bf16.msra.mxu0 0
    %775 = vmatprep.subr.bf16.mxu0 0
    %776 = vmatpush1.bf16.msra.mxu0 0
    %777 = vmatprep.subr.bf16.mxu0 0
    %778 = vmatpush1.bf16.msra.mxu0 0
    %779 = vmatprep.subr.bf16.mxu0 0
    %780 = vmatpush1.bf16.msra.mxu0 0
    %781 = vmatprep.subr.bf16.mxu0 0
    %782 = vmatpush1.bf16.msra.mxu0 0
    %783 = vmatprep.subr.bf16.mxu0 0
    %784 = vmatpush1.bf16.msra.mxu0 %v765
    %785 = vmatprep.subr.bf16.mxu0 0
    %786 = vmatpush1.bf16.msra.mxu0 %v764
    %787 = vmatprep.subr.bf16.mxu0 0
    %788 = vmatpush2.bf16.msra.mxu0 0
    %789 = vmatprep.subr.bf16.mxu0 0
    %790 = vmatpush2.bf16.msra.mxu0 0
    %791 = vmatprep.subr.bf16.mxu0 0
    %792 = vmatpush2.bf16.msra.mxu0 0
    %793 = vmatprep.subr.bf16.mxu0 0
    %794 = vmatpush2.bf16.msra.mxu0 0
    %795 = vmatprep.subr.bf16.mxu0 0
    %796 = vmatpush2.bf16.msra.mxu0 0
    %797 = vmatprep.subr.bf16.mxu0 0
    %798 = vmatpush2.bf16.msra.mxu0 0
    %799 = vmatprep.subr.bf16.mxu0 0
    %800 = vmatpush2.bf16.msra.mxu0 0
    %801 = vmatprep.subr.bf16.mxu0 0
    %802 = vmatpush2.bf16.msra.mxu0 0
    %803 = vmatprep.mubr.bf16.mxu0 0
    %804 = vmatmul.mubr.bf16.gmra.mxu0 %v769
    %v805 = vpop.f32.mrf.mxu0
    %v806 = vadd.f32 0.0, %v805
    %v807 = vpop.f32.mrf.mxu0
    %v808 = vpop.f32.mrf.mxu0
    %v809 = vadd.f32 0.0, %v808
    %v810 = vpop.f32.mrf.mxu0
    %811 = vdwg.mxu0
    %v812 = vadd.f32 %v158, %v806
    %v813 = vadd.f32 %v159, %v809
    %v814 = vld [vmem:[%s4 + $0x1] sm:$0x1]
    %v815 = vlaneseq
    %v816 = vshrl.u32 %v815, 7
    %v817 = vsub.s32 0, %v816
    %v818 = vrot.slane %v814, %v817
    %v819 = vadd.f32 %v812, %v818
    %v820 = vadd.f32 %v813, %v818
    %v821 = vld [vmem:[%s4 + $0x7] sm:$0x1]
    %v822 = vld [vmem:[%s4 + $0xa] sm:$0x1]
    %v823 = vsel %vm189, %v819, 0.0
    %824 = vadd.xlane.f32.xlu0 %v823
    %v825 = vpop.xlane.xlu0 %824
    %v826 = vsel %vm189, %v820, 0.0
    %827 = vadd.xlane.f32.xlu0 %v826
    %v828 = vpop.xlane.xlu0 %827
    %v829 = vrcp.pop 32.0
    %v830 = vmul.f32 %v825, %v829
    %v831 = vmul.f32 %v828, %v829
    %v832 = vsub.f32 %v819, %v830
    %v833 = vsub.f32 %v820, %v831
    %v834 = vmul.f32 %v832, %v832
    %v835 = vmul.f32 %v833, %v833
    %v836 = vsel %vm189, %v834, 0.0
    %837 = vadd.xlane.f32.xlu0 %v836
    %v838 = vpop.xlane.xlu0 %837
    %v839 = vsel %vm189, %v835, 0.0
    %840 = vadd.xlane.f32.xlu0 %v839
    %v841 = vpop.xlane.xlu0 %840
    %v842 = vmul.f32 %v838, %v829
    %v843 = vmul.f32 %v841, %v829
    %v844 = vadd.f32 %v842, 1e-05
    %v845 = vadd.f32 %v843, 1e-05
    %v846 = vrsqrt.pop %v844
    %v847 = vrsqrt.pop %v845
    %v848 = vmul.f32 %v832, %v846
    %v849 = vmul.f32 %v833, %v847
    %v850 = vlaneseq
    %v851 = vshrl.u32 %v850, 7
    %v852 = vsub.s32 0, %v851
    %v853 = vrot.slane %v821, %v852
    %v854 = vmul.f32 %v848, %v853
    %v855 = vmul.f32 %v849, %v853
    %v856 = vlaneseq
    %v857 = vshrl.u32 %v856, 7
    %v858 = vsub.s32 0, %v857
    %v859 = vrot.slane %v822, %v858
    %v860 = vadd.f32 %v854, %v859
    %v861 = vadd.f32 %v855, %v859
    %v862 = vld [vmem:[#allocation10] sm:$0xf]
    %v863 = vld [vmem:[#allocation10 + $0x4] sm:$0xf]
    %v864 = vld [vmem:[#allocation10 + $0x8] sm:$0xf]
    %v865 = vld [vmem:[#allocation10 + $0xc] sm:$0xf]
    %v866 = vld [vmem:[%s4 + $0x2] sm:$0x1]
    %v867 = vpack.c.bf16 %v861, %v860
    %v868 = vlaneseq
    %v869 = vshrl.u32 %v868, 7
    %v870 = vsub.s32 0, %v869
    %v871 = vrot.slane %v866, %v870
    %v876 = vunpack.c.l.b16 %v862
    %v877 = vunpack.c.l.b16 %v863
    %v878 = vunpack.c.l.b16 %v864
    %v879 = vunpack.c.l.b16 %v865
    %v880 = vpack.c.b16 %v877, %v876
    %v881 = vpack.c.b16 %v879, %v878
    %v885 = vsel %vm189, %v867, 0
    %887 = vmatprep.subr.bf16.mxu0 0
    %888 = vmatpush1.bf16.msra.mxu0 0
    %889 = vmatprep.subr.bf16.mxu0 0
    %890 = vmatpush1.bf16.msra.mxu0 0
    %891 = vmatprep.subr.bf16.mxu0 0
    %892 = vmatpush1.bf16.msra.mxu0 0
    %893 = vmatprep.subr.bf16.mxu0 0
    %894 = vmatpush1.bf16.msra.mxu0 0
    %895 = vmatprep.subr.bf16.mxu0 0
    %896 = vmatpush1.bf16.msra.mxu0 0
    %897 = vmatprep.subr.bf16.mxu0 0
    %898 = vmatpush1.bf16.msra.mxu0 0
    %899 = vmatprep.subr.bf16.mxu0 0
    %900 = vmatpush1.bf16.msra.mxu0 %v881
    %901 = vmatprep.subr.bf16.mxu0 0
    %902 = vmatpush1.bf16.msra.mxu0 %v880
    %903 = vmatprep.subr.bf16.mxu0 0
    %904 = vmatpush2.bf16.msra.mxu0 0
    %905 = vmatprep.subr.bf16.mxu0 0
    %906 = vmatpush2.bf16.msra.mxu0 0
    %907 = vmatprep.subr.bf16.mxu0 0
    %908 = vmatpush2.bf16.msra.mxu0 0
    %909 = vmatprep.subr.bf16.mxu0 0
    %910 = vmatpush2.bf16.msra.mxu0 0
    %911 = vmatprep.subr.bf16.mxu0 0
    %912 = vmatpush2.bf16.msra.mxu0 0
    %913 = vmatprep.subr.bf16.mxu0 0
    %914 = vmatpush2.bf16.msra.mxu0 0
    %915 = vmatprep.subr.bf16.mxu0 0
    %916 = vmatpush2.bf16.msra.mxu0 0
    %917 = vmatprep.subr.bf16.mxu0 0
    %918 = vmatpush2.bf16.msra.mxu0 0
    %919 = vmatprep.mubr.bf16.mxu0 0
    %920 = vmatmul.mubr.bf16.gmra.mxu0 %v885
    %v921 = vpop.f32.mrf.mxu0
    %v922 = vadd.f32 %v871, %v921
    %v923 = vpop.f32.mrf.mxu0
    %v924 = vpop.f32.mrf.mxu0
    %v925 = vadd.f32 %v871, %v924
    %v926 = vpop.f32.mrf.mxu0
    %927 = vdwg.mxu0
    %v928 = vpack.c.bf16 %v925, %v922
    %v929 = vld [vmem:[#allocation11] sm:$0xf]
    %v930 = vld [vmem:[#allocation11 + $0x4] sm:$0xf]
    %v931 = vld [vmem:[#allocation11 + $0x8] sm:$0xf]
    %v932 = vld [vmem:[#allocation11 + $0xc] sm:$0xf]
    %v933 = vld [vmem:[%s4 + $0x3] sm:$0x1]
    %v934 = vpack.c.bf16 %v161, %v160
    %v935 = vpack.c.bf16 %v162, %v162
    %v936 = vlaneseq
    %v937 = vshrl.u32 %v936, 7
    %v938 = vsub.s32 0, %v937
    %v939 = vrot.slane %v933, %v938
    %v944 = vunpack.c.l.b16 %v929
    %v945 = vunpack.c.l.b16 %v930
    %v946 = vunpack.c.l.b16 %v931
    %v947 = vunpack.c.l.b16 %v932
    %v948 = vpack.c.b16 %v945, %v944
    %v949 = vpack.c.b16 %v947, %v946
    %v953 = vsel %vm189, %v934, 0
    %v956 = vsel %vm189, %v935, 0
    %958 = vmatprep.subr.bf16.mxu0 0
    %959 = vmatpush1.bf16.msra.mxu0 0
    %960 = vmatprep.subr.bf16.mxu0 0
    %961 = vmatpush1.bf16.msra.mxu0 0
    %962 = vmatprep.subr.bf16.mxu0 0
    %963 = vmatpush1.bf16.msra.mxu0 0
    %964 = vmatprep.subr.bf16.mxu0 0
    %965 = vmatpush1.bf16.msra.mxu0 0
    %966 = vmatprep.subr.bf16.mxu0 0
    %967 = vmatpush1.bf16.msra.mxu0 0
    %968 = vmatprep.subr.bf16.mxu0 0
    %969 = vmatpush1.bf16.msra.mxu0 0
    %970 = vmatprep.subr.bf16.mxu0 0
    %971 = vmatpush1.bf16.msra.mxu0 %v949
    %972 = vmatprep.subr.bf16.mxu0 0
    %973 = vmatpush1.bf16.msra.mxu0 %v948
    %974 = vmatprep.subr.bf16.mxu0 0
    %975 = vmatpush2.bf16.msra.mxu0 0
    %976 = vmatprep.subr.bf16.mxu0 0
    %977 = vmatpush2.bf16.msra.mxu0 0
    %978 = vmatprep.subr.bf16.mxu0 0
    %979 = vmatpush2.bf16.msra.mxu0 0
    %980 = vmatprep.subr.bf16.mxu0 0
    %981 = vmatpush2.bf16.msra.mxu0 0
    %982 = vmatprep.subr.bf16.mxu0 0
    %983 = vmatpush2.bf16.msra.mxu0 0
    %984 = vmatprep.subr.bf16.mxu0 0
    %985 = vmatpush2.bf16.msra.mxu0 0
    %986 = vmatprep.subr.bf16.mxu0 0
    %987 = vmatpush2.bf16.msra.mxu0 0
    %988 = vmatprep.subr.bf16.mxu0 0
    %989 = vmatpush2.bf16.msra.mxu0 0
    %990 = vmatprep.mubr.bf16.mxu0 0
    %991 = vmatmul.mubr.bf16.gmra.mxu0 %v953
    %v992 = vpop.f32.mrf.mxu0
    %v993 = vadd.f32 %v939, %v992
    %v994 = vpop.f32.mrf.mxu0
    %v995 = vpop.f32.mrf.mxu0
    %v996 = vadd.f32 %v939, %v995
    %v997 = vpop.f32.mrf.mxu0
    %998 = vmatprep.mubr.bf16.mxu0 0
    %999 = vmatmul.mubr.bf16.gmra.mxu0 %v956
    %v1000 = vpop.f32.mrf.mxu0
    %v1001 = vadd.f32 %v939, %v1000
    %v1002 = vpop.f32.mrf.mxu0
    %v1003 = vpop.f32.mrf.mxu0
    %v1004 = vpop.f32.mrf.mxu0
    %1005 = vdwg.mxu0
    %v1006 = vpack.c.bf16 %v996, %v993
    %v1007 = vpack.c.bf16 %v1001, %v1001
    %v1008 = vld [vmem:[#allocation13] sm:$0xf]
    %v1009 = vld [vmem:[#allocation13 + $0x4] sm:$0xf]
    %v1010 = vld [vmem:[#allocation13 + $0x8] sm:$0xf]
    %v1011 = vld [vmem:[#allocation13 + $0xc] sm:$0xf]
    %v1013 = vsel %vm242, %v928, 0
    %v1016 = vsel %vm242, %v1006, 0
    %v1019 = vsel %vm242, %v1007, 0
    %1021 = vmatprep.subr.bf16.mxu0 0
    %1022 = vmatpush1.bf16.xpose.msra.mxu0 0
    %1023 = vmatprep.subr.bf16.mxu0 0
    %1024 = vmatpush1.bf16.xpose.msra.mxu0 0
    %1025 = vmatprep.subr.bf16.mxu0 0
    %1026 = vmatpush1.bf16.xpose.msra.mxu0 0
    %1027 = vmatprep.subr.bf16.mxu0 0
    %1028 = vmatpush1.bf16.xpose.msra.mxu0 0
    %1029 = vmatprep.subr.bf16.mxu0 0
    %1030 = vmatpush1.bf16.xpose.msra.mxu0 0
    %1031 = vmatprep.subr.bf16.mxu0 0
    %1032 = vmatpush1.bf16.xpose.msra.mxu0 0
    %1033 = vmatprep.subr.bf16.mxu0 0
    %1034 = vmatpush1.bf16.xpose.msra.mxu0 %v1019
    %1035 = vmatprep.subr.bf16.mxu0 0
    %1036 = vmatpush1.bf16.xpose.msra.mxu0 %v1016
    %1037 = vmatprep.subr.bf16.mxu0 0
    %1038 = vmatpush2.bf16.xpose.msra.mxu0 0
    %1039 = vmatprep.subr.bf16.mxu0 0
    %1040 = vmatpush2.bf16.xpose.msra.mxu0 0
    %1041 = vmatprep.subr.bf16.mxu0 0
    %1042 = vmatpush2.bf16.xpose.msra.mxu0 0
    %1043 = vmatprep.subr.bf16.mxu0 0
    %1044 = vmatpush2.bf16.xpose.msra.mxu0 0
    %1045 = vmatprep.subr.bf16.mxu0 0
    %1046 = vmatpush2.bf16.xpose.msra.mxu0 0
    %1047 = vmatprep.subr.bf16.mxu0 0
    %1048 = vmatpush2.bf16.xpose.msra.mxu0 0
    %1049 = vmatprep.subr.bf16.mxu0 0
    %1050 = vmatpush2.bf16.xpose.msra.mxu0 0
    %1051 = vmatprep.subr.bf16.mxu0 0
    %1052 = vmatpush2.bf16.xpose.msra.mxu0 0
    %1053 = vmatprep.mubr.bf16.mxu0 0
    %1054 = vmatmul.mubr.bf16.gmra.mxu0 %v1013
    %v1055 = vpop.f32.mrf.mxu0
    %v1056 = vadd.f32 %v165, %v1055
    %v1057 = vpop.f32.mrf.mxu0
    %v1058 = vpop.f32.mrf.mxu0
    %v1059 = vadd.f32 %v166, %v1058
    %v1060 = vpop.f32.mrf.mxu0
    %1061 = vdwg.mxu0
    %v1062 = vsel %vm752, %v1056, -inf
    %1063 = vmax.xlane.f32.xlu0 %v1062
    %v1064 = vpop.xlane.xlu0 %1063
    %v1065 = vsel %vm752, %v1059, -inf
    %1066 = vmax.xlane.f32.xlu0 %v1065
    %v1067 = vpop.xlane.xlu0 %1066
    %v1068 = vsub.f32 %v1056, %v1064
    %v1069 = vsub.f32 %v1059, %v1067
    %v1070 = vmul.f32 %v1068, 1.442695
    %v1071 = vpow.pop %v1070
    %v1072 = vmul.f32 %v1069, 1.442695
    %v1073 = vpow.pop %v1072
    %v1074 = vsel %vm752, %v1071, 0.0
    %1075 = vadd.xlane.f32.xlu0 %v1074
    %v1076 = vpop.xlane.xlu0 %1075
    %v1077 = vsel %vm752, %v1073, 0.0
    %1078 = vadd.xlane.f32.xlu0 %v1077
    %v1079 = vpop.xlane.xlu0 %1078
    %v1080 = vrcp.pop %v1076
    %v1081 = vrcp.pop %v1079
    %v1082 = vmul.f32 %v1071, %v1080
    %v1083 = vmul.f32 %v1073, %v1081
    %v1084 = vpack.c.bf16 %v1083, %v1082
    %1087 = vrot.lane.b32.xlu0 %v1006, 96
    %v1088 = vpop.permute.xlu0 %1087
    %1089 = vrot.lane.b32.xlu0 %v1007, 96
    %v1090 = vpop.permute.xlu0 %1089
    %v1093 = vsel %vm752, %v1084, 0
    %vm1095 = vcmask 1043456
    %v1097 = vsel %vm1095, %v1090, 0
    %1099 = vmatprep.subr.bf16.mxu0 0
    %1100 = vmatpush1.bf16.msra.mxu0 0
    %1101 = vmatprep.subr.bf16.mxu0 0
    %1102 = vmatpush1.bf16.msra.mxu0 0
    %1103 = vmatprep.subr.bf16.mxu0 0
    %1104 = vmatpush1.bf16.msra.mxu0 0
    %1105 = vmatprep.subr.bf16.mxu0 0
    %1106 = vmatpush1.bf16.msra.mxu0 0
    %1107 = vmatprep.subr.bf16.mxu0 0
    %1108 = vmatpush1.bf16.msra.mxu0 0
    %1109 = vmatprep.subr.bf16.mxu0 0
    %1110 = vmatpush1.bf16.msra.mxu0 0
    %1111 = vmatprep.subr.bf16.mxu0 0
    %1112 = vmatpush1.bf16.msra.mxu0 %v1097
    %1113 = vmatprep.subr.bf16.mxu0 0
    %1114 = vmatpush1.bf16.msra.mxu0 %v1088
    %1115 = vmatprep.subr.bf16.mxu0 0
    %1116 = vmatpush2.bf16.msra.mxu0 0
    %1117 = vmatprep.subr.bf16.mxu0 0
    %1118 = vmatpush2.bf16.msra.mxu0 0
    %1119 = vmatprep.subr.bf16.mxu0 0
    %1120 = vmatpush2.bf16.msra.mxu0 0
    %1121 = vmatprep.subr.bf16.mxu0 0
    %1122 = vmatpush2.bf16.msra.mxu0 0
    %1123 = vmatprep.subr.bf16.mxu0 0
    %1124 = vmatpush2.bf16.msra.mxu0 0
    %1125 = vmatprep.subr.bf16.mxu0 0
    %1126 = vmatpush2.bf16.msra.mxu0 0
    %1127 = vmatprep.subr.bf16.mxu0 0
    %1128 = vmatpush2.bf16.msra.mxu0 0
    %1129 = vmatprep.subr.bf16.mxu0 0
    %1130 = vmatpush2.bf16.msra.mxu0 0
    %1131 = vmatprep.mubr.bf16.mxu0 0
    %1132 = vmatmul.mubr.bf16.gmra.mxu0 %v1093
    %v1133 = vpop.f32.mrf.mxu0
    %v1134 = vadd.f32 0.0, %v1133
    %v1135 = vpop.f32.mrf.mxu0
    %v1136 = vpop.f32.mrf.mxu0
    %v1137 = vadd.f32 0.0, %v1136
    %v1138 = vpop.f32.mrf.mxu0
    %1139 = vdwg.mxu0
    %1141 = vrot.lane.b32.xlu0 %v928, 120
    %v1142 = vpop.permute.xlu0 %1141
    %1143 = vrot.lane.b32.xlu0 %v1006, 120
    %v1144 = vpop.permute.xlu0 %1143
    %1145 = vrot.lane.b32.xlu0 %v1007, 120
    %v1146 = vpop.permute.xlu0 %1145
    %v1148 = vsel %vm242, %v1142, 0
    %v1151 = vsel %vm242, %v1144, 0
    %v1154 = vsel %vm242, %v1146, 0
    %1156 = vmatprep.subr.bf16.mxu0 0
    %1157 = vmatpush1.bf16.xpose.msra.mxu0 0
    %1158 = vmatprep.subr.bf16.mxu0 0
    %1159 = vmatpush1.bf16.xpose.msra.mxu0 0
    %1160 = vmatprep.subr.bf16.mxu0 0
    %1161 = vmatpush1.bf16.xpose.msra.mxu0 0
    %1162 = vmatprep.subr.bf16.mxu0 0
    %1163 = vmatpush1.bf16.xpose.msra.mxu0 0
    %1164 = vmatprep.subr.bf16.mxu0 0
    %1165 = vmatpush1.bf16.xpose.msra.mxu0 0
    %1166 = vmatprep.subr.bf16.mxu0 0
    %1167 = vmatpush1.bf16.xpose.msra.mxu0 0
    %1168 = vmatprep.subr.bf16.mxu0 0
    %1169 = vmatpush1.bf16.xpose.msra.mxu0 %v1154
    %1170 = vmatprep.subr.bf16.mxu0 0
    %1171 = vmatpush1.bf16.xpose.msra.mxu0 %v1151
    %1172 = vmatprep.subr.bf16.mxu0 0
    %1173 = vmatpush2.bf16.xpose.msra.mxu0 0
    %1174 = vmatprep.subr.bf16.mxu0 0
    %1175 = vmatpush2.bf16.xpose.msra.mxu0 0
    %1176 = vmatprep.subr.bf16.mxu0 0
    %1177 = vmatpush2.bf16.xpose.msra.mxu0 0
    %1178 = vmatprep.subr.bf16.mxu0 0
    %1179 = vmatpush2.bf16.xpose.msra.mxu0 0
    %1180 = vmatprep.subr.bf16.mxu0 0
    %1181 = vmatpush2.bf16.xpose.msra.mxu0 0
    %1182 = vmatprep.subr.bf16.mxu0 0
    %1183 = vmatpush2.bf16.xpose.msra.mxu0 0
    %1184 = vmatprep.subr.bf16.mxu0 0
    %1185 = vmatpush2.bf16.xpose.msra.mxu0 0
    %1186 = vmatprep.subr.bf16.mxu0 0
    %1187 = vmatpush2.bf16.xpose.msra.mxu0 0
    %1188 = vmatprep.mubr.bf16.mxu0 0
    %1189 = vmatmul.mubr.bf16.gmra.mxu0 %v1148
    %v1190 = vpop.f32.mrf.mxu0
    %v1191 = vadd.f32 %v165, %v1190
    %v1192 = vpop.f32.mrf.mxu0
    %v1193 = vpop.f32.mrf.mxu0
    %v1194 = vadd.f32 %v166, %v1193
    %v1195 = vpop.f32.mrf.mxu0
    %1196 = vdwg.mxu0
    %v1197 = vsel %vm752, %v1191, -inf
    %1198 = vmax.xlane.f32.xlu0 %v1197
    %v1199 = vpop.xlane.xlu0 %1198
    %v1200 = vsel %vm752, %v1194, -inf
    %1201 = vmax.xlane.f32.xlu0 %v1200
    %v1202 = vpop.xlane.xlu0 %1201
    %v1203 = vsub.f32 %v1191, %v1199
    %v1204 = vsub.f32 %v1194, %v1202
    %v1205 = vmul.f32 %v1203, 1.442695
    %v1206 = vpow.pop %v1205
    %v1207 = vmul.f32 %v1204, 1.442695
    %v1208 = vpow.pop %v1207
    %v1209 = vsel %vm752, %v1206, 0.0
    %1210 = vadd.xlane.f32.xlu0 %v1209
    %v1211 = vpop.xlane.xlu0 %1210
    %v1212 = vsel %vm752, %v1208, 0.0
    %1213 = vadd.xlane.f32.xlu0 %v1212
    %v1214 = vpop.xlane.xlu0 %1213
    %v1215 = vrcp.pop %v1211
    %v1216 = vrcp.pop %v1214
    %v1217 = vmul.f32 %v1206, %v1215
    %v1218 = vmul.f32 %v1208, %v1216
    %v1219 = vpack.c.bf16 %v1218, %v1217
    %1220 = vrot.lane.b32.xlu0 %v1006, 88
    %v1221 = vpop.permute.xlu0 %1220
    %1222 = vrot.lane.b32.xlu0 %v1007, 88
    %v1223 = vpop.permute.xlu0 %1222
    %v1226 = vsel %vm752, %v1219, 0
    %v1229 = vsel %vm1095, %v1223, 0
    %1231 = vmatprep.subr.bf16.mxu0 0
    %1232 = vmatpush1.bf16.msra.mxu0 0
    %1233 = vmatprep.subr.bf16.mxu0 0
    %1234 = vmatpush1.bf16.msra.mxu0 0
    %1235 = vmatprep.subr.bf16.mxu0 0
    %1236 = vmatpush1.bf16.msra.mxu0 0
    %1237 = vmatprep.subr.bf16.mxu0 0
    %1238 = vmatpush1.bf16.msra.mxu0 0
    %1239 = vmatprep.subr.bf16.mxu0 0
    %1240 = vmatpush1.bf16.msra.mxu0 0
    %1241 = vmatprep.subr.bf16.mxu0 0
    %1242 = vmatpush1.bf16.msra.mxu0 0
    %1243 = vmatprep.subr.bf16.mxu0 0
    %1244 = vmatpush1.bf16.msra.mxu0 %v1229
    %1245 = vmatprep.subr.bf16.mxu0 0
    %1246 = vmatpush1.bf16.msra.mxu0 %v1221
    %1247 = vmatprep.subr.bf16.mxu0 0
    %1248 = vmatpush2.bf16.msra.mxu0 0
    %1249 = vmatprep.subr.bf16.mxu0 0
    %1250 = vmatpush2.bf16.msra.mxu0 0
    %1251 = vmatprep.subr.bf16.mxu0 0
    %1252 = vmatpush2.bf16.msra.mxu0 0
    %1253 = vmatprep.subr.bf16.mxu0 0
    %1254 = vmatpush2.bf16.msra.mxu0 0
    %1255 = vmatprep.subr.bf16.mxu0 0
    %1256 = vmatpush2.bf16.msra.mxu0 0
    %1257 = vmatprep.subr.bf16.mxu0 0
    %1258 = vmatpush2.bf16.msra.mxu0 0
    %1259 = vmatprep.subr.bf16.mxu0 0
    %1260 = vmatpush2.bf16.msra.mxu0 0
    %1261 = vmatprep.subr.bf16.mxu0 0
    %1262 = vmatpush2.bf16.msra.mxu0 0
    %1263 = vmatprep.mubr.bf16.mxu0 0
    %1264 = vmatmul.mubr.bf16.gmra.mxu0 %v1226
    %v1265 = vpop.f32.mrf.mxu0
    %v1266 = vadd.f32 0.0, %v1265
    %v1267 = vpop.f32.mrf.mxu0
    %v1268 = vpop.f32.mrf.mxu0
    %v1269 = vadd.f32 0.0, %v1268
    %v1270 = vpop.f32.mrf.mxu0
    %1271 = vdwg.mxu0
    %1272 = vrot.lane.b32.xlu0 %v928, 112
    %v1273 = vpop.permute.xlu0 %1272
    %1274 = vrot.lane.b32.xlu0 %v1006, 112
    %v1275 = vpop.permute.xlu0 %1274
    %1276 = vrot.lane.b32.xlu0 %v1007, 112
    %v1277 = vpop.permute.xlu0 %1276
    %v1279 = vsel %vm242, %v1273, 0
    %v1282 = vsel %vm242, %v1275, 0
    %v1285 = vsel %vm242, %v1277, 0
    %1287 = vmatprep.subr.bf16.mxu0 0
    %1288 = vmatpush1.bf16.xpose.msra.mxu0 0
    %1289 = vmatprep.subr.bf16.mxu0 0
    %1290 = vmatpush1.bf16.xpose.msra.mxu0 0
    %1291 = vmatprep.subr.bf16.mxu0 0
    %1292 = vmatpush1.bf16.xpose.msra.mxu0 0
    %1293 = vmatprep.subr.bf16.mxu0 0
    %1294 = vmatpush1.bf16.xpose.msra.mxu0 0
    %1295 = vmatprep.subr.bf16.mxu0 0
    %1296 = vmatpush1.bf16.xpose.msra.mxu0 0
    %1297 = vmatprep.subr.bf16.mxu0 0
    %1298 = vmatpush1.bf16.xpose.msra.mxu0 0
    %1299 = vmatprep.subr.bf16.mxu0 0
    %1300 = vmatpush1.bf16.xpose.msra.mxu0 %v1285
    %1301 = vmatprep.subr.bf16.mxu0 0
    %1302 = vmatpush1.bf16.xpose.msra.mxu0 %v1282
    %1303 = vmatprep.subr.bf16.mxu0 0
    %1304 = vmatpush2.bf16.xpose.msra.mxu0 0
    %1305 = vmatprep.subr.bf16.mxu0 0
    %1306 = vmatpush2.bf16.xpose.msra.mxu0 0
    %1307 = vmatprep.subr.bf16.mxu0 0
    %1308 = vmatpush2.bf16.xpose.msra.mxu0 0
    %1309 = vmatprep.subr.bf16.mxu0 0
    %1310 = vmatpush2.bf16.xpose.msra.mxu0 0
    %1311 = vmatprep.subr.bf16.mxu0 0
    %1312 = vmatpush2.bf16.xpose.msra.mxu0 0
    %1313 = vmatprep.subr.bf16.mxu0 0
    %1314 = vmatpush2.bf16.xpose.msra.mxu0 0
    %1315 = vmatprep.subr.bf16.mxu0 0
    %1316 = vmatpush2.bf16.xpose.msra.mxu0 0
    %1317 = vmatprep.subr.bf16.mxu0 0
    %1318 = vmatpush2.bf16.xpose.msra.mxu0 0
    %1319 = vmatprep.mubr.bf16.mxu0 0
    %1320 = vmatmul.mubr.bf16.gmra.mxu0 %v1279
    %v1321 = vpop.f32.mrf.mxu0
    %v1322 = vadd.f32 %v165, %v1321
    %v1323 = vpop.f32.mrf.mxu0
    %v1324 = vpop.f32.mrf.mxu0
    %v1325 = vadd.f32 %v166, %v1324
    %v1326 = vpop.f32.mrf.mxu0
    %1327 = vdwg.mxu0
    %v1328 = vsel %vm752, %v1322, -inf
    %1329 = vmax.xlane.f32.xlu0 %v1328
    %v1330 = vpop.xlane.xlu0 %1329
    %v1331 = vsel %vm752, %v1325, -inf
    %1332 = vmax.xlane.f32.xlu0 %v1331
    %v1333 = vpop.xlane.xlu0 %1332
    %v1334 = vsub.f32 %v1322, %v1330
    %v1335 = vsub.f32 %v1325, %v1333
    %v1336 = vmul.f32 %v1334, 1.442695
    %v1337 = vpow.pop %v1336
    %v1338 = vmul.f32 %v1335, 1.442695
    %v1339 = vpow.pop %v1338
    %v1340 = vsel %vm752, %v1337, 0.0
    %1341 = vadd.xlane.f32.xlu0 %v1340
    %v1342 = vpop.xlane.xlu0 %1341
    %v1343 = vsel %vm752, %v1339, 0.0
    %1344 = vadd.xlane.f32.xlu0 %v1343
    %v1345 = vpop.xlane.xlu0 %1344
    %v1346 = vrcp.pop %v1342
    %v1347 = vrcp.pop %v1345
    %v1348 = vmul.f32 %v1337, %v1346
    %v1349 = vmul.f32 %v1339, %v1347
    %v1350 = vpack.c.bf16 %v1349, %v1348
    %1351 = vrot.lane.b32.xlu0 %v1006, 80
    %v1352 = vpop.permute.xlu0 %1351
    %1353 = vrot.lane.b32.xlu0 %v1007, 80
    %v1354 = vpop.permute.xlu0 %1353
    %v1357 = vsel %vm752, %v1350, 0
    %v1360 = vsel %vm1095, %v1354, 0
    %1362 = vmatprep.subr.bf16.mxu0 0
    %1363 = vmatpush1.bf16.msra.mxu0 0
    %1364 = vmatprep.subr.bf16.mxu0 0
    %1365 = vmatpush1.bf16.msra.mxu0 0
    %1366 = vmatprep.subr.bf16.mxu0 0
    %1367 = vmatpush1.bf16.msra.mxu0 0
    %1368 = vmatprep.subr.bf16.mxu0 0
    %1369 = vmatpush1.bf16.msra.mxu0 0
    %1370 = vmatprep.subr.bf16.mxu0 0
    %1371 = vmatpush1.bf16.msra.mxu0 0
    %1372 = vmatprep.subr.bf16.mxu0 0
    %1373 = vmatpush1.bf16.msra.mxu0 0
    %1374 = vmatprep.subr.bf16.mxu0 0
    %1375 = vmatpush1.bf16.msra.mxu0 %v1360
    %1376 = vmatprep.subr.bf16.mxu0 0
    %1377 = vmatpush1.bf16.msra.mxu0 %v1352
    %1378 = vmatprep.subr.bf16.mxu0 0
    %1379 = vmatpush2.bf16.msra.mxu0 0
    %1380 = vmatprep.subr.bf16.mxu0 0
    %1381 = vmatpush2.bf16.msra.mxu0 0
    %1382 = vmatprep.subr.bf16.mxu0 0
    %1383 = vmatpush2.bf16.msra.mxu0 0
    %1384 = vmatprep.subr.bf16.mxu0 0
    %1385 = vmatpush2.bf16.msra.mxu0 0
    %1386 = vmatprep.subr.bf16.mxu0 0
    %1387 = vmatpush2.bf16.msra.mxu0 0
    %1388 = vmatprep.subr.bf16.mxu0 0
    %1389 = vmatpush2.bf16.msra.mxu0 0
    %1390 = vmatprep.subr.bf16.mxu0 0
    %1391 = vmatpush2.bf16.msra.mxu0 0
    %1392 = vmatprep.subr.bf16.mxu0 0
    %1393 = vmatpush2.bf16.msra.mxu0 0
    %1394 = vmatprep.mubr.bf16.mxu0 0
    %1395 = vmatmul.mubr.bf16.gmra.mxu0 %v1357
    %v1396 = vpop.f32.mrf.mxu0
    %v1397 = vadd.f32 0.0, %v1396
    %v1398 = vpop.f32.mrf.mxu0
    %v1399 = vpop.f32.mrf.mxu0
    %v1400 = vadd.f32 0.0, %v1399
    %v1401 = vpop.f32.mrf.mxu0
    %1402 = vdwg.mxu0
    %1403 = vrot.lane.b32.xlu0 %v928, 104
    %v1404 = vpop.permute.xlu0 %1403
    %1405 = vrot.lane.b32.xlu0 %v1006, 104
    %v1406 = vpop.permute.xlu0 %1405
    %1407 = vrot.lane.b32.xlu0 %v1007, 104
    %v1408 = vpop.permute.xlu0 %1407
    %v1410 = vsel %vm242, %v1404, 0
    %v1413 = vsel %vm242, %v1406, 0
    %v1416 = vsel %vm242, %v1408, 0
    %1418 = vmatprep.subr.bf16.mxu0 0
    %1419 = vmatpush1.bf16.xpose.msra.mxu0 0
    %1420 = vmatprep.subr.bf16.mxu0 0
    %1421 = vmatpush1.bf16.xpose.msra.mxu0 0
    %1422 = vmatprep.subr.bf16.mxu0 0
    %1423 = vmatpush1.bf16.xpose.msra.mxu0 0
    %1424 = vmatprep.subr.bf16.mxu0 0
    %1425 = vmatpush1.bf16.xpose.msra.mxu0 0
    %1426 = vmatprep.subr.bf16.mxu0 0
    %1427 = vmatpush1.bf16.xpose.msra.mxu0 0
    %1428 = vmatprep.subr.bf16.mxu0 0
    %1429 = vmatpush1.bf16.xpose.msra.mxu0 0
    %1430 = vmatprep.subr.bf16.mxu0 0
    %1431 = vmatpush1.bf16.xpose.msra.mxu0 %v1416
    %1432 = vmatprep.subr.bf16.mxu0 0
    %1433 = vmatpush1.bf16.xpose.msra.mxu0 %v1413
    %1434 = vmatprep.subr.bf16.mxu0 0
    %1435 = vmatpush2.bf16.xpose.msra.mxu0 0
    %1436 = vmatprep.subr.bf16.mxu0 0
    %1437 = vmatpush2.bf16.xpose.msra.mxu0 0
    %1438 = vmatprep.subr.bf16.mxu0 0
    %1439 = vmatpush2.bf16.xpose.msra.mxu0 0
    %1440 = vmatprep.subr.bf16.mxu0 0
    %1441 = vmatpush2.bf16.xpose.msra.mxu0 0
    %1442 = vmatprep.subr.bf16.mxu0 0
    %1443 = vmatpush2.bf16.xpose.msra.mxu0 0
    %1444 = vmatprep.subr.bf16.mxu0 0
    %1445 = vmatpush2.bf16.xpose.msra.mxu0 0
    %1446 = vmatprep.subr.bf16.mxu0 0
    %1447 = vmatpush2.bf16.xpose.msra.mxu0 0
    %1448 = vmatprep.subr.bf16.mxu0 0
    %1449 = vmatpush2.bf16.xpose.msra.mxu0 0
    %1450 = vmatprep.mubr.bf16.mxu0 0
    %1451 = vmatmul.mubr.bf16.gmra.mxu0 %v1410
    %v1452 = vpop.f32.mrf.mxu0
    %v1453 = vadd.f32 %v165, %v1452
    %v1454 = vpop.f32.mrf.mxu0
    %v1455 = vpop.f32.mrf.mxu0
    %v1456 = vadd.f32 %v166, %v1455
    %v1457 = vpop.f32.mrf.mxu0
    %1458 = vdwg.mxu0
    %v1459 = vsel %vm752, %v1453, -inf
    %1460 = vmax.xlane.f32.xlu0 %v1459
    %v1461 = vpop.xlane.xlu0 %1460
    %v1462 = vsel %vm752, %v1456, -inf
    %1463 = vmax.xlane.f32.xlu0 %v1462
    %v1464 = vpop.xlane.xlu0 %1463
    %v1465 = vsub.f32 %v1453, %v1461
    %v1466 = vsub.f32 %v1456, %v1464
    %v1467 = vmul.f32 %v1465, 1.442695
    %v1468 = vpow.pop %v1467
    %v1469 = vmul.f32 %v1466, 1.442695
    %v1470 = vpow.pop %v1469
    %v1471 = vsel %vm752, %v1468, 0.0
    %1472 = vadd.xlane.f32.xlu0 %v1471
    %v1473 = vpop.xlane.xlu0 %1472
    %v1474 = vsel %vm752, %v1470, 0.0
    %1475 = vadd.xlane.f32.xlu0 %v1474
    %v1476 = vpop.xlane.xlu0 %1475
    %v1477 = vrcp.pop %v1473
    %v1478 = vrcp.pop %v1476
    %v1479 = vmul.f32 %v1468, %v1477
    %v1480 = vmul.f32 %v1470, %v1478
    %v1481 = vpack.c.bf16 %v1480, %v1479
    %1482 = vrot.lane.b32.xlu0 %v1006, 72
    %v1483 = vpop.permute.xlu0 %1482
    %1484 = vrot.lane.b32.xlu0 %v1007, 72
    %v1485 = vpop.permute.xlu0 %1484
    %v1488 = vsel %vm752, %v1481, 0
    %v1491 = vsel %vm1095, %v1485, 0
    %1493 = vmatprep.subr.bf16.mxu0 0
    %1494 = vmatpush1.bf16.msra.mxu0 0
    %1495 = vmatprep.subr.bf16.mxu0 0
    %1496 = vmatpush1.bf16.msra.mxu0 0
    %1497 = vmatprep.subr.bf16.mxu0 0
    %1498 = vmatpush1.bf16.msra.mxu0 0
    %1499 = vmatprep.subr.bf16.mxu0 0
    %1500 = vmatpush1.bf16.msra.mxu0 0
    %1501 = vmatprep.subr.bf16.mxu0 0
    %1502 = vmatpush1.bf16.msra.mxu0 0
    %1503 = vmatprep.subr.bf16.mxu0 0
    %1504 = vmatpush1.bf16.msra.mxu0 0
    %1505 = vmatprep.subr.bf16.mxu0 0
    %1506 = vmatpush1.bf16.msra.mxu0 %v1491
    %1507 = vmatprep.subr.bf16.mxu0 0
    %1508 = vmatpush1.bf16.msra.mxu0 %v1483
    %1509 = vmatprep.subr.bf16.mxu0 0
    %1510 = vmatpush2.bf16.msra.mxu0 0
    %1511 = vmatprep.subr.bf16.mxu0 0
    %1512 = vmatpush2.bf16.msra.mxu0 0
    %1513 = vmatprep.subr.bf16.mxu0 0
    %1514 = vmatpush2.bf16.msra.mxu0 0
    %1515 = vmatprep.subr.bf16.mxu0 0
    %1516 = vmatpush2.bf16.msra.mxu0 0
    %1517 = vmatprep.subr.bf16.mxu0 0
    %1518 = vmatpush2.bf16.msra.mxu0 0
    %1519 = vmatprep.subr.bf16.mxu0 0
    %1520 = vmatpush2.bf16.msra.mxu0 0
    %1521 = vmatprep.subr.bf16.mxu0 0
    %1522 = vmatpush2.bf16.msra.mxu0 0
    %1523 = vmatprep.subr.bf16.mxu0 0
    %1524 = vmatpush2.bf16.msra.mxu0 0
    %1525 = vmatprep.mubr.bf16.mxu0 0
    %1526 = vmatmul.mubr.bf16.gmra.mxu0 %v1488
    %v1527 = vpop.f32.mrf.mxu0
    %v1528 = vadd.f32 0.0, %v1527
    %v1529 = vpop.f32.mrf.mxu0
    %v1530 = vpop.f32.mrf.mxu0
    %v1531 = vadd.f32 0.0, %v1530
    %v1532 = vpop.f32.mrf.mxu0
    %1533 = vdwg.mxu0
    %1536 = vrot.lane.b32.xlu0 %v1266, 8
    %v1537 = vpop.permute.xlu0 %1536
    %1538 = vrot.lane.b32.xlu0 %v1269, 8
    %v1539 = vpop.permute.xlu0 %1538
    %1544 = vrot.lane.b32.xlu0 %v1397, 16
    %v1545 = vpop.permute.xlu0 %1544
    %1546 = vrot.lane.b32.xlu0 %v1400, 16
    %v1547 = vpop.permute.xlu0 %1546
    %1552 = vrot.lane.b32.xlu0 %v1528, 24
    %v1553 = vpop.permute.xlu0 %1552
    %1554 = vrot.lane.b32.xlu0 %v1531, 24
    %v1555 = vpop.permute.xlu0 %1554
    %v1558 = vsel %vm242, %v1134, %v1537
    %v1559 = vsel %vm242, %v1137, %v1539
    %v1560 = vsel %vm290, %v1558, %v1545
    %v1561 = vsel %vm290, %v1559, %v1547
    %v1562 = vsel %vm752, %v1560, %v1553
    %v1563 = vsel %vm752, %v1561, %v1555
    %v1564 = vpack.c.bf16 %v1563, %v1562
    %v1569 = vunpack.c.l.b16 %v1008
    %v1570 = vunpack.c.l.b16 %v1009
    %v1571 = vunpack.c.l.b16 %v1010
    %v1572 = vunpack.c.l.b16 %v1011
    %v1573 = vpack.c.b16 %v1570, %v1569
    %v1574 = vpack.c.b16 %v1572, %v1571
    %v1578 = vsel %vm189, %v1564, 0
    %1580 = vmatprep.subr.bf16.mxu0 0
    %1581 = vmatpush1.bf16.msra.mxu0 0
    %1582 = vmatprep.subr.bf16.mxu0 0
    %1583 = vmatpush1.bf16.msra.mxu0 0
    %1584 = vmatprep.subr.bf16.mxu0 0
    %1585 = vmatpush1.bf16.msra.mxu0 0
    %1586 = vmatprep.subr.bf16.mxu0 0
    %1587 = vmatpush1.bf16.msra.mxu0 0
    %1588 = vmatprep.subr.bf16.mxu0 0
    %1589 = vmatpush1.bf16.msra.mxu0 0
    %1590 = vmatprep.subr.bf16.mxu0 0
    %1591 = vmatpush1.bf16.msra.mxu0 0
    %1592 = vmatprep.subr.bf16.mxu0 0
    %1593 = vmatpush1.bf16.msra.mxu0 %v1574
    %1594 = vmatprep.subr.bf16.mxu0 0
    %1595 = vmatpush1.bf16.msra.mxu0 %v1573
    %1596 = vmatprep.subr.bf16.mxu0 0
    %1597 = vmatpush2.bf16.msra.mxu0 0
    %1598 = vmatprep.subr.bf16.mxu0 0
    %1599 = vmatpush2.bf16.msra.mxu0 0
    %1600 = vmatprep.subr.bf16.mxu0 0
    %1601 = vmatpush2.bf16.msra.mxu0 0
    %1602 = vmatprep.subr.bf16.mxu0 0
    %1603 = vmatpush2.bf16.msra.mxu0 0
    %1604 = vmatprep.subr.bf16.mxu0 0
    %1605 = vmatpush2.bf16.msra.mxu0 0
    %1606 = vmatprep.subr.bf16.mxu0 0
    %1607 = vmatpush2.bf16.msra.mxu0 0
    %1608 = vmatprep.subr.bf16.mxu0 0
    %1609 = vmatpush2.bf16.msra.mxu0 0
    %1610 = vmatprep.subr.bf16.mxu0 0
    %1611 = vmatpush2.bf16.msra.mxu0 0
    %1612 = vmatprep.mubr.bf16.mxu0 0
    %1613 = vmatmul.mubr.bf16.gmra.mxu0 %v1578
    %v1614 = vpop.f32.mrf.mxu0
    %v1615 = vadd.f32 0.0, %v1614
    %v1616 = vpop.f32.mrf.mxu0
    %v1617 = vpop.f32.mrf.mxu0
    %v1618 = vadd.f32 0.0, %v1617
    %v1619 = vpop.f32.mrf.mxu0
    %1620 = vdwg.mxu0
    %v1621 = vadd.f32 %v860, %v1615
    %v1622 = vadd.f32 %v861, %v1618
    %v1623 = vld [vmem:[%s4 + $0x4] sm:$0x1]
    %v1624 = vlaneseq
    %v1625 = vshrl.u32 %v1624, 7
    %v1626 = vsub.s32 0, %v1625
    %v1627 = vrot.slane %v1623, %v1626
    %v1628 = vadd.f32 %v1621, %v1627
    %v1629 = vadd.f32 %v1622, %v1627
    %v1630 = vld [vmem:[%s4 + $0x8] sm:$0x1]
    %v1631 = vld [vmem:[%s4 + $0xb] sm:$0x1]
    %v1632 = vsel %vm189, %v1628, 0.0
    %1633 = vadd.xlane.f32.xlu0 %v1632
    %v1634 = vpop.xlane.xlu0 %1633
    %v1635 = vsel %vm189, %v1629, 0.0
    %1636 = vadd.xlane.f32.xlu0 %v1635
    %v1637 = vpop.xlane.xlu0 %1636
    %v1638 = vmul.f32 %v1634, %v829
    %v1639 = vmul.f32 %v1637, %v829
    %v1640 = vsub.f32 %v1628, %v1638
    %v1641 = vsub.f32 %v1629, %v1639
    %v1642 = vmul.f32 %v1640, %v1640
    %v1643 = vmul.f32 %v1641, %v1641
    %v1644 = vsel %vm189, %v1642, 0.0
    %1645 = vadd.xlane.f32.xlu0 %v1644
    %v1646 = vpop.xlane.xlu0 %1645
    %v1647 = vsel %vm189, %v1643, 0.0
    %1648 = vadd.xlane.f32.xlu0 %v1647
    %v1649 = vpop.xlane.xlu0 %1648
    %v1650 = vmul.f32 %v1646, %v829
    %v1651 = vmul.f32 %v1649, %v829
    %v1652 = vadd.f32 %v1650, 1e-05
    %v1653 = vadd.f32 %v1651, 1e-05
    %v1654 = vrsqrt.pop %v1652
    %v1655 = vrsqrt.pop %v1653
    %v1656 = vmul.f32 %v1640, %v1654
    %v1657 = vmul.f32 %v1641, %v1655
    %v1658 = vlaneseq
    %v1659 = vshrl.u32 %v1658, 7
    %v1660 = vsub.s32 0, %v1659
    %v1661 = vrot.slane %v1630, %v1660
    %v1662 = vmul.f32 %v1656, %v1661
    %v1663 = vmul.f32 %v1657, %v1661
    %v1664 = vlaneseq
    %v1665 = vshrl.u32 %v1664, 7
    %v1666 = vsub.s32 0, %v1665
    %v1667 = vrot.slane %v1631, %v1666
    %v1668 = vadd.f32 %v1662, %v1667
    %v1669 = vadd.f32 %v1663, %v1667
    %v1670 = vld [vmem:[#allocation14] sm:$0xf]
    %v1671 = vld [vmem:[#allocation14 + $0x4] sm:$0xf]
    %v1672 = vld [vmem:[#allocation14 + $0x8] sm:$0xf]
    %v1673 = vld [vmem:[#allocation14 + $0xc] sm:$0xf]
    %v1674 = vld [vmem:[%s4 + $0x5] sm:$0x1]
    %v1675 = vpack.c.bf16 %v1669, %v1668
    %v1676 = vlaneseq
    %v1677 = vshrl.u32 %v1676, 7
    %v1678 = vsub.s32 0, %v1677
    %v1679 = vrot.slane %v1674, %v1678
    %v1684 = vunpack.c.l.b16 %v1670
    %v1685 = vunpack.c.l.b16 %v1671
    %v1686 = vunpack.c.l.b16 %v1672
    %v1687 = vunpack.c.l.b16 %v1673
    %v1688 = vpack.c.b16 %v1685, %v1684
    %v1689 = vpack.c.b16 %v1687, %v1686
    %v1693 = vsel %vm189, %v1675, 0
    %1695 = vmatprep.subr.bf16.mxu0 0
    %1696 = vmatpush1.bf16.msra.mxu0 0
    %1697 = vmatprep.subr.bf16.mxu0 0
    %1698 = vmatpush1.bf16.msra.mxu0 0
    %1699 = vmatprep.subr.bf16.mxu0 0
    %1700 = vmatpush1.bf16.msra.mxu0 0
    %1701 = vmatprep.subr.bf16.mxu0 0
    %1702 = vmatpush1.bf16.msra.mxu0 0
    %1703 = vmatprep.subr.bf16.mxu0 0
    %1704 = vmatpush1.bf16.msra.mxu0 0
    %1705 = vmatprep.subr.bf16.mxu0 0
    %1706 = vmatpush1.bf16.msra.mxu0 0
    %1707 = vmatprep.subr.bf16.mxu0 0
    %1708 = vmatpush1.bf16.msra.mxu0 %v1689
    %1709 = vmatprep.subr.bf16.mxu0 0
    %1710 = vmatpush1.bf16.msra.mxu0 %v1688
    %1711 = vmatprep.subr.bf16.mxu0 0
    %1712 = vmatpush2.bf16.msra.mxu0 0
    %1713 = vmatprep.subr.bf16.mxu0 0
    %1714 = vmatpush2.bf16.msra.mxu0 0
    %1715 = vmatprep.subr.bf16.mxu0 0
    %1716 = vmatpush2.bf16.msra.mxu0 0
    %1717 = vmatprep.subr.bf16.mxu0 0
    %1718 = vmatpush2.bf16.msra.mxu0 0
    %1719 = vmatprep.subr.bf16.mxu0 0
    %1720 = vmatpush2.bf16.msra.mxu0 0
    %1721 = vmatprep.subr.bf16.mxu0 0
    %1722 = vmatpush2.bf16.msra.mxu0 0
    %1723 = vmatprep.subr.bf16.mxu0 0
    %1724 = vmatpush2.bf16.msra.mxu0 0
    %1725 = vmatprep.subr.bf16.mxu0 0
    %1726 = vmatpush2.bf16.msra.mxu0 0
    %1727 = vmatprep.mubr.bf16.mxu0 0
    %1728 = vmatmul.mubr.bf16.gmra.mxu0 %v1693
    %v1729 = vpop.f32.mrf.mxu0
    %v1730 = vadd.f32 %v1679, %v1729
    %v1731 = vpop.f32.mrf.mxu0
    %v1732 = vpop.f32.mrf.mxu0
    %v1733 = vadd.f32 %v1679, %v1732
    %v1734 = vpop.f32.mrf.mxu0
    %1735 = vdwg.mxu0
    %v1736 = vmax.f32 %v1730, 0.0
    %v1737 = vmax.f32 %v1733, 0.0
    %v1738 = vld [vmem:[%s11] sm:$0xf]
    %v1739 = vld [vmem:[%s11 + $0x4] sm:$0xf]
    %v1740 = vld [vmem:[%s11 + $0x8] sm:$0xf]
    %v1741 = vld [vmem:[%s11 + $0xc] sm:$0xf]
    %v1742 = vld [vmem:[%s11 + $0x10] sm:$0xf]
    %v1743 = vld [vmem:[%s11 + $0x14] sm:$0xf]
    %v1744 = vld [vmem:[%s11 + $0x18] sm:$0xf]
    %v1745 = vld [vmem:[%s11 + $0x1c] sm:$0xf]
    %v1746 = vld [vmem:[%s4 + $0x6] sm:$0x1]
    %v1747 = vpack.c.bf16 %v1737, %v1736
    %v1748 = vlaneseq
    %v1749 = vshrl.u32 %v1748, 7
    %v1750 = vsub.s32 0, %v1749
    %v1751 = vrot.slane %v1746, %v1750
    %v1760 = vunpack.c.l.b16 %v1738
    %v1761 = vunpack.c.l.b16 %v1739
    %v1762 = vunpack.c.l.b16 %v1740
    %v1763 = vunpack.c.l.b16 %v1741
    %v1764 = vunpack.c.l.b16 %v1742
    %v1765 = vunpack.c.l.b16 %v1743
    %v1766 = vunpack.c.l.b16 %v1744
    %v1767 = vunpack.c.l.b16 %v1745
    %v1768 = vpack.c.b16 %v1761, %v1760
    %v1769 = vpack.c.b16 %v1763, %v1762
    %v1770 = vpack.c.b16 %v1765, %v1764
    %v1771 = vpack.c.b16 %v1767, %v1766
    %vm1776 = vcmask 523264
    %v1778 = vsel %vm1776, %v1747, 0
    %1780 = vmatprep.subr.bf16.mxu0 0
    %1781 = vmatpush1.bf16.msra.mxu0 0
    %1782 = vmatprep.subr.bf16.mxu0 0
    %1783 = vmatpush1.bf16.msra.mxu0 0
    %1784 = vmatprep.subr.bf16.mxu0 0
    %1785 = vmatpush1.bf16.msra.mxu0 0
    %1786 = vmatprep.subr.bf16.mxu0 0
    %1787 = vmatpush1.bf16.msra.mxu0 0
    %1788 = vmatprep.subr.bf16.mxu0 0
    %1789 = vmatpush1.bf16.msra.mxu0 %v1771
    %1790 = vmatprep.subr.bf16.mxu0 0
    %1791 = vmatpush1.bf16.msra.mxu0 %v1770
    %1792 = vmatprep.subr.bf16.mxu0 0
    %1793 = vmatpush1.bf16.msra.mxu0 %v1769
    %1794 = vmatprep.subr.bf16.mxu0 0
    %1795 = vmatpush1.bf16.msra.mxu0 %v1768
    %1796 = vmatprep.subr.bf16.mxu0 0
    %1797 = vmatpush2.bf16.msra.mxu0 0
    %1798 = vmatprep.subr.bf16.mxu0 0
    %1799 = vmatpush2.bf16.msra.mxu0 0
    %1800 = vmatprep.subr.bf16.mxu0 0
    %1801 = vmatpush2.bf16.msra.mxu0 0
    %1802 = vmatprep.subr.bf16.mxu0 0
    %1803 = vmatpush2.bf16.msra.mxu0 0
    %1804 = vmatprep.subr.bf16.mxu0 0
    %1805 = vmatpush2.bf16.msra.mxu0 0
    %1806 = vmatprep.subr.bf16.mxu0 0
    %1807 = vmatpush2.bf16.msra.mxu0 0
    %1808 = vmatprep.subr.bf16.mxu0 0
    %1809 = vmatpush2.bf16.msra.mxu0 0
    %1810 = vmatprep.subr.bf16.mxu0 0
    %1811 = vmatpush2.bf16.msra.mxu0 0
    %1812 = vmatprep.mubr.bf16.mxu0 0
    %1813 = vmatmul.mubr.bf16.gmra.mxu0 %v1778
    %v1814 = vpop.f32.mrf.mxu0
    %v1815 = vadd.f32 %v1751, %v1814
    %v1816 = vpop.f32.mrf.mxu0
    %v1817 = vpop.f32.mrf.mxu0
    %v1818 = vadd.f32 %v1751, %v1817
    %v1819 = vpop.f32.mrf.mxu0
    %1820 = vdwg.mxu0
    %v1821 = vadd.f32 %v1668, %v1815
    %v1822 = vadd.f32 %v1669, %v1818
    %v1823 = vld [vmem:[%s4 + $0x9] sm:$0x1]
    %v1824 = vld [vmem:[%s4 + $0xc] sm:$0x1]
    %v1825 = vsel %vm189, %v1821, 0.0
    %1826 = vadd.xlane.f32.xlu0 %v1825
    %v1827 = vpop.xlane.xlu0 %1826
    %v1828 = vsel %vm189, %v1822, 0.0
    %1829 = vadd.xlane.f32.xlu0 %v1828
    %v1830 = vpop.xlane.xlu0 %1829
    %v1831 = vmul.f32 %v1827, %v829
    %v1832 = vmul.f32 %v1830, %v829
    %v1833 = vsub.f32 %v1821, %v1831
    %v1834 = vsub.f32 %v1822, %v1832
    %v1835 = vmul.f32 %v1833, %v1833
    %v1836 = vmul.f32 %v1834, %v1834
    %v1837 = vsel %vm189, %v1835, 0.0
    %1838 = vadd.xlane.f32.xlu0 %v1837
    %v1839 = vpop.xlane.xlu0 %1838
    %v1840 = vsel %vm189, %v1836, 0.0
    %1841 = vadd.xlane.f32.xlu0 %v1840
    %v1842 = vpop.xlane.xlu0 %1841
    %v1843 = vmul.f32 %v1839, %v829
    %v1844 = vmul.f32 %v1842, %v829
    %v1845 = vadd.f32 %v1843, 1e-05
    %v1846 = vadd.f32 %v1844, 1e-05
    %v1847 = vrsqrt.pop %v1845
    %v1848 = vrsqrt.pop %v1846
    %v1849 = vmul.f32 %v1833, %v1847
    %v1850 = vmul.f32 %v1834, %v1848
    %v1851 = vlaneseq
    %v1852 = vshrl.u32 %v1851, 7
    %v1853 = vsub.s32 0, %v1852
    %v1854 = vrot.slane %v1823, %v1853
    %v1855 = vmul.f32 %v1849, %v1854
    %v1856 = vmul.f32 %v1850, %v1854
    %v1857 = vlaneseq
    %v1858 = vshrl.u32 %v1857, 7
    %v1859 = vsub.s32 0, %v1858
    %v1860 = vrot.slane %v1824, %v1859
    %v1861 = vadd.f32 %v1855, %v1860
    %v1862 = vadd.f32 %v1856, %v1860
    %s1863 = scalar_lea.vmem %s5, 16
    %v1864 = vld [vmem:[%s1863] sm:$0xf]
    %v1865 = vld [vmem:[%s1863 + $0x4] sm:$0xf]
    %v1866 = vld [vmem:[%s1863 + $0x8] sm:$0xf]
    %v1867 = vld [vmem:[%s1863 + $0xc] sm:$0xf]
    %v1868 = vld [vmem:[%s4 + $0xd] sm:$0x1]
    %v1869 = vpack.c.bf16 %v1862, %v1861
    %v1870 = vlaneseq
    %v1871 = vshrl.u32 %v1870, 7
    %v1872 = vsub.s32 0, %v1871
    %v1873 = vrot.slane %v1868, %v1872
    %v1878 = vunpack.c.l.b16 %v1864
    %v1879 = vunpack.c.l.b16 %v1865
    %v1880 = vunpack.c.l.b16 %v1866
    %v1881 = vunpack.c.l.b16 %v1867
    %v1882 = vpack.c.b16 %v1879, %v1878
    %v1883 = vpack.c.b16 %v1881, %v1880
    %v1887 = vsel %vm189, %v1869, 0
    %1889 = vmatprep.subr.bf16.mxu0 0
    %1890 = vmatpush1.bf16.msra.mxu0 0
    %1891 = vmatprep.subr.bf16.mxu0 0
    %1892 = vmatpush1.bf16.msra.mxu0 0
    %1893 = vmatprep.subr.bf16.mxu0 0
    %1894 = vmatpush1.bf16.msra.mxu0 0
    %1895 = vmatprep.subr.bf16.mxu0 0
    %1896 = vmatpush1.bf16.msra.mxu0 0
    %1897 = vmatprep.subr.bf16.mxu0 0
    %1898 = vmatpush1.bf16.msra.mxu0 0
    %1899 = vmatprep.subr.bf16.mxu0 0
    %1900 = vmatpush1.bf16.msra.mxu0 0
    %1901 = vmatprep.subr.bf16.mxu0 0
    %1902 = vmatpush1.bf16.msra.mxu0 %v1883
    %1903 = vmatprep.subr.bf16.mxu0 0
    %1904 = vmatpush1.bf16.msra.mxu0 %v1882
    %1905 = vmatprep.subr.bf16.mxu0 0
    %1906 = vmatpush2.bf16.msra.mxu0 0
    %1907 = vmatprep.subr.bf16.mxu0 0
    %1908 = vmatpush2.bf16.msra.mxu0 0
    %1909 = vmatprep.subr.bf16.mxu0 0
    %1910 = vmatpush2.bf16.msra.mxu0 0
    %1911 = vmatprep.subr.bf16.mxu0 0
    %1912 = vmatpush2.bf16.msra.mxu0 0
    %1913 = vmatprep.subr.bf16.mxu0 0
    %1914 = vmatpush2.bf16.msra.mxu0 0
    %1915 = vmatprep.subr.bf16.mxu0 0
    %1916 = vmatpush2.bf16.msra.mxu0 0
    %1917 = vmatprep.subr.bf16.mxu0 0
    %1918 = vmatpush2.bf16.msra.mxu0 0
    %1919 = vmatprep.subr.bf16.mxu0 0
    %1920 = vmatpush2.bf16.msra.mxu0 0
    %1921 = vmatprep.mubr.bf16.mxu0 0
    %1922 = vmatmul.mubr.bf16.gmra.mxu0 %v1887
    %v1923 = vpop.f32.mrf.mxu0
    %v1924 = vadd.f32 %v1873, %v1923
    %v1925 = vpop.f32.mrf.mxu0
    %v1926 = vpop.f32.mrf.mxu0
    %v1927 = vadd.f32 %v1873, %v1926
    %v1928 = vpop.f32.mrf.mxu0
    %1929 = vdwg.mxu0
    %v1930 = vpack.c.bf16 %v1927, %v1924
    %s1931 = scalar_lea.vmem %s6, 16
    %v1932 = vld [vmem:[%s1931] sm:$0xf]
    %v1933 = vld [vmem:[%s1931 + $0x4] sm:$0xf]
    %v1934 = vld [vmem:[%s1931 + $0x8] sm:$0xf]
    %v1935 = vld [vmem:[%s1931 + $0xc] sm:$0xf]
    %1937 = vrot.lane.b32.xlu0 %v1930, 96
    %v1938 = vpop.permute.xlu0 %1937
    %v1940 = vsel %vm242, %v1930, 0
    %v1943 = vsel %vm242, %v1938, 0
    %1945 = vmatprep.subr.bf16.mxu0 0
    %1946 = vmatpush1.bf16.xpose.msra.mxu0 0
    %1947 = vmatprep.subr.bf16.mxu0 0
    %1948 = vmatpush1.bf16.xpose.msra.mxu0 0
    %1949 = vmatprep.subr.bf16.mxu0 0
    %1950 = vmatpush1.bf16.xpose.msra.mxu0 0
    %1951 = vmatprep.subr.bf16.mxu0 0
    %1952 = vmatpush1.bf16.xpose.msra.mxu0 0
    %1953 = vmatprep.subr.bf16.mxu0 0
    %1954 = vmatpush1.bf16.xpose.msra.mxu0 0
    %1955 = vmatprep.subr.bf16.mxu0 0
    %1956 = vmatpush1.bf16.xpose.msra.mxu0 0
    %1957 = vmatprep.subr.bf16.mxu0 0
    %1958 = vmatpush1.bf16.xpose.msra.mxu0 0
    %1959 = vmatprep.subr.bf16.mxu0 0
    %1960 = vmatpush1.bf16.xpose.msra.mxu0 %v1943
    %1961 = vmatprep.subr.bf16.mxu0 0
    %1962 = vmatpush2.bf16.xpose.msra.mxu0 0
    %1963 = vmatprep.subr.bf16.mxu0 0
    %1964 = vmatpush2.bf16.xpose.msra.mxu0 0
    %1965 = vmatprep.subr.bf16.mxu0 0
    %1966 = vmatpush2.bf16.xpose.msra.mxu0 0
    %1967 = vmatprep.subr.bf16.mxu0 0
    %1968 = vmatpush2.bf16.xpose.msra.mxu0 0
    %1969 = vmatprep.subr.bf16.mxu0 0
    %1970 = vmatpush2.bf16.xpose.msra.mxu0 0
    %1971 = vmatprep.subr.bf16.mxu0 0
    %1972 = vmatpush2.bf16.xpose.msra.mxu0 0
    %1973 = vmatprep.subr.bf16.mxu0 0
    %1974 = vmatpush2.bf16.xpose.msra.mxu0 0
    %1975 = vmatprep.subr.bf16.mxu0 0
    %1976 = vmatpush2.bf16.xpose.msra.mxu0 0
    %1977 = vmatprep.mubr.bf16.mxu0 0
    %1978 = vmatmul.mubr.bf16.gmra.mxu0 %v1940
    %v1979 = vpop.f32.mrf.mxu0
    %v1980 = vadd.f32 %v163, %v1979
    %v1981 = vpop.f32.mrf.mxu0
    %v1982 = vpop.f32.mrf.mxu0
    %v1983 = vadd.f32 %v164, %v1982
    %v1984 = vpop.f32.mrf.mxu0
    %1985 = vdwg.mxu0
    %v1986 = vsel %vm290, %v1980, -inf
    %1987 = vmax.xlane.f32.xlu0 %v1986
    %v1988 = vpop.xlane.xlu0 %1987
    %v1989 = vsel %vm290, %v1983, -inf
    %1990 = vmax.xlane.f32.xlu0 %v1989
    %v1991 = vpop.xlane.xlu0 %1990
    %v1992 = vsub.f32 %v1980, %v1988
    %v1993 = vsub.f32 %v1983, %v1991
    %v1994 = vmul.f32 %v1992, 1.442695
    %v1995 = vpow.pop %v1994
    %v1996 = vmul.f32 %v1993, 1.442695
    %v1997 = vpow.pop %v1996
    %v1998 = vsel %vm290, %v1995, 0.0
    %1999 = vadd.xlane.f32.xlu0 %v1998
    %v2000 = vpop.xlane.xlu0 %1999
    %v2001 = vsel %vm290, %v1997, 0.0
    %2002 = vadd.xlane.f32.xlu0 %v2001
    %v2003 = vpop.xlane.xlu0 %2002
    %v2004 = vrcp.pop %v2000
    %v2005 = vrcp.pop %v2003
    %v2006 = vmul.f32 %v1995, %v2004
    %v2007 = vmul.f32 %v1997, %v2005
    %v2008 = vpack.c.bf16 %v2007, %v2006
    %2009 = vrot.lane.b32.xlu0 %v1930, 64
    %v2010 = vpop.permute.xlu0 %2009
    %v2013 = vsel %vm290, %v2008, 0
    %2015 = vmatprep.subr.bf16.mxu0 0
    %2016 = vmatpush1.bf16.msra.mxu0 0
    %2017 = vmatprep.subr.bf16.mxu0 0
    %2018 = vmatpush1.bf16.msra.mxu0 0
    %2019 = vmatprep.subr.bf16.mxu0 0
    %2020 = vmatpush1.bf16.msra.mxu0 0
    %2021 = vmatprep.subr.bf16.mxu0 0
    %2022 = vmatpush1.bf16.msra.mxu0 0
    %2023 = vmatprep.subr.bf16.mxu0 0
    %2024 = vmatpush1.bf16.msra.mxu0 0
    %2025 = vmatprep.subr.bf16.mxu0 0
    %2026 = vmatpush1.bf16.msra.mxu0 0
    %2027 = vmatprep.subr.bf16.mxu0 0
    %2028 = vmatpush1.bf16.msra.mxu0 0
    %2029 = vmatprep.subr.bf16.mxu0 0
    %2030 = vmatpush1.bf16.msra.mxu0 %v2010
    %2031 = vmatprep.subr.bf16.mxu0 0
    %2032 = vmatpush2.bf16.msra.mxu0 0
    %2033 = vmatprep.subr.bf16.mxu0 0
    %2034 = vmatpush2.bf16.msra.mxu0 0
    %2035 = vmatprep.subr.bf16.mxu0 0
    %2036 = vmatpush2.bf16.msra.mxu0 0
    %2037 = vmatprep.subr.bf16.mxu0 0
    %2038 = vmatpush2.bf16.msra.mxu0 0
    %2039 = vmatprep.subr.bf16.mxu0 0
    %2040 = vmatpush2.bf16.msra.mxu0 0
    %2041 = vmatprep.subr.bf16.mxu0 0
    %2042 = vmatpush2.bf16.msra.mxu0 0
    %2043 = vmatprep.subr.bf16.mxu0 0
    %2044 = vmatpush2.bf16.msra.mxu0 0
    %2045 = vmatprep.subr.bf16.mxu0 0
    %2046 = vmatpush2.bf16.msra.mxu0 0
    %2047 = vmatprep.mubr.bf16.mxu0 0
    %2048 = vmatmul.mubr.bf16.gmra.mxu0 %v2013
    %v2049 = vpop.f32.mrf.mxu0
    %v2050 = vadd.f32 0.0, %v2049
    %v2051 = vpop.f32.mrf.mxu0
    %v2052 = vpop.f32.mrf.mxu0
    %v2053 = vadd.f32 0.0, %v2052
    %v2054 = vpop.f32.mrf.mxu0
    %2055 = vdwg.mxu0
    %2056 = vrot.lane.b32.xlu0 %v1930, 120
    %v2057 = vpop.permute.xlu0 %2056
    %2058 = vrot.lane.b32.xlu0 %v1930, 88
    %v2059 = vpop.permute.xlu0 %2058
    %v2061 = vsel %vm242, %v2057, 0
    %v2064 = vsel %vm242, %v2059, 0
    %2066 = vmatprep.subr.bf16.mxu0 0
    %2067 = vmatpush1.bf16.xpose.msra.mxu0 0
    %2068 = vmatprep.subr.bf16.mxu0 0
    %2069 = vmatpush1.bf16.xpose.msra.mxu0 0
    %2070 = vmatprep.subr.bf16.mxu0 0
    %2071 = vmatpush1.bf16.xpose.msra.mxu0 0
    %2072 = vmatprep.subr.bf16.mxu0 0
    %2073 = vmatpush1.bf16.xpose.msra.mxu0 0
    %2074 = vmatprep.subr.bf16.mxu0 0
    %2075 = vmatpush1.bf16.xpose.msra.mxu0 0
    %2076 = vmatprep.subr.bf16.mxu0 0
    %2077 = vmatpush1.bf16.xpose.msra.mxu0 0
    %2078 = vmatprep.subr.bf16.mxu0 0
    %2079 = vmatpush1.bf16.xpose.msra.mxu0 0
    %2080 = vmatprep.subr.bf16.mxu0 0
    %2081 = vmatpush1.bf16.xpose.msra.mxu0 %v2064
    %2082 = vmatprep.subr.bf16.mxu0 0
    %2083 = vmatpush2.bf16.xpose.msra.mxu0 0
    %2084 = vmatprep.subr.bf16.mxu0 0
    %2085 = vmatpush2.bf16.xpose.msra.mxu0 0
    %2086 = vmatprep.subr.bf16.mxu0 0
    %2087 = vmatpush2.bf16.xpose.msra.mxu0 0
    %2088 = vmatprep.subr.bf16.mxu0 0
    %2089 = vmatpush2.bf16.xpose.msra.mxu0 0
    %2090 = vmatprep.subr.bf16.mxu0 0
    %2091 = vmatpush2.bf16.xpose.msra.mxu0 0
    %2092 = vmatprep.subr.bf16.mxu0 0
    %2093 = vmatpush2.bf16.xpose.msra.mxu0 0
    %2094 = vmatprep.subr.bf16.mxu0 0
    %2095 = vmatpush2.bf16.xpose.msra.mxu0 0
    %2096 = vmatprep.subr.bf16.mxu0 0
    %2097 = vmatpush2.bf16.xpose.msra.mxu0 0
    %2098 = vmatprep.mubr.bf16.mxu0 0
    %2099 = vmatmul.mubr.bf16.gmra.mxu0 %v2061
    %v2100 = vpop.f32.mrf.mxu0
    %v2101 = vadd.f32 %v163, %v2100
    %v2102 = vpop.f32.mrf.mxu0
    %v2103 = vpop.f32.mrf.mxu0
    %v2104 = vadd.f32 %v164, %v2103
    %v2105 = vpop.f32.mrf.mxu0
    %2106 = vdwg.mxu0
    %v2107 = vsel %vm290, %v2101, -inf
    %2108 = vmax.xlane.f32.xlu0 %v2107
    %v2109 = vpop.xlane.xlu0 %2108
    %v2110 = vsel %vm290, %v2104, -inf
    %2111 = vmax.xlane.f32.xlu0 %v2110
    %v2112 = vpop.xlane.xlu0 %2111
    %v2113 = vsub.f32 %v2101, %v2109
    %v2114 = vsub.f32 %v2104, %v2112
    %v2115 = vmul.f32 %v2113, 1.442695
    %v2116 = vpow.pop %v2115
    %v2117 = vmul.f32 %v2114, 1.442695
    %v2118 = vpow.pop %v2117
    %v2119 = vsel %vm290, %v2116, 0.0
    %2120 = vadd.xlane.f32.xlu0 %v2119
    %v2121 = vpop.xlane.xlu0 %2120
    %v2122 = vsel %vm290, %v2118, 0.0
    %2123 = vadd.xlane.f32.xlu0 %v2122
    %v2124 = vpop.xlane.xlu0 %2123
    %v2125 = vrcp.pop %v2121
    %v2126 = vrcp.pop %v2124
    %v2127 = vmul.f32 %v2116, %v2125
    %v2128 = vmul.f32 %v2118, %v2126
    %v2129 = vpack.c.bf16 %v2128, %v2127
    %2130 = vrot.lane.b32.xlu0 %v1930, 56
    %v2131 = vpop.permute.xlu0 %2130
    %v2134 = vsel %vm290, %v2129, 0
    %2136 = vmatprep.subr.bf16.mxu0 0
    %2137 = vmatpush1.bf16.msra.mxu0 0
    %2138 = vmatprep.subr.bf16.mxu0 0
    %2139 = vmatpush1.bf16.msra.mxu0 0
    %2140 = vmatprep.subr.bf16.mxu0 0
    %2141 = vmatpush1.bf16.msra.mxu0 0
    %2142 = vmatprep.subr.bf16.mxu0 0
    %2143 = vmatpush1.bf16.msra.mxu0 0
    %2144 = vmatprep.subr.bf16.mxu0 0
    %2145 = vmatpush1.bf16.msra.mxu0 0
    %2146 = vmatprep.subr.bf16.mxu0 0
    %2147 = vmatpush1.bf16.msra.mxu0 0
    %2148 = vmatprep.subr.bf16.mxu0 0
    %2149 = vmatpush1.bf16.msra.mxu0 0
    %2150 = vmatprep.subr.bf16.mxu0 0
    %2151 = vmatpush1.bf16.msra.mxu0 %v2131
    %2152 = vmatprep.subr.bf16.mxu0 0
    %2153 = vmatpush2.bf16.msra.mxu0 0
    %2154 = vmatprep.subr.bf16.mxu0 0
    %2155 = vmatpush2.bf16.msra.mxu0 0
    %2156 = vmatprep.subr.bf16.mxu0 0
    %2157 = vmatpush2.bf16.msra.mxu0 0
    %2158 = vmatprep.subr.bf16.mxu0 0
    %2159 = vmatpush2.bf16.msra.mxu0 0
    %2160 = vmatprep.subr.bf16.mxu0 0
    %2161 = vmatpush2.bf16.msra.mxu0 0
    %2162 = vmatprep.subr.bf16.mxu0 0
    %2163 = vmatpush2.bf16.msra.mxu0 0
    %2164 = vmatprep.subr.bf16.mxu0 0
    %2165 = vmatpush2.bf16.msra.mxu0 0
    %2166 = vmatprep.subr.bf16.mxu0 0
    %2167 = vmatpush2.bf16.msra.mxu0 0
    %2168 = vmatprep.mubr.bf16.mxu0 0
    %2169 = vmatmul.mubr.bf16.gmra.mxu0 %v2134
    %v2170 = vpop.f32.mrf.mxu0
    %v2171 = vadd.f32 0.0, %v2170
    %v2172 = vpop.f32.mrf.mxu0
    %v2173 = vpop.f32.mrf.mxu0
    %v2174 = vadd.f32 0.0, %v2173
    %v2175 = vpop.f32.mrf.mxu0
    %2176 = vdwg.mxu0
    %2177 = vrot.lane.b32.xlu0 %v1930, 112
    %v2178 = vpop.permute.xlu0 %2177
    %2179 = vrot.lane.b32.xlu0 %v1930, 80
    %v2180 = vpop.permute.xlu0 %2179
    %v2182 = vsel %vm242, %v2178, 0
    %v2185 = vsel %vm242, %v2180, 0
    %2187 = vmatprep.subr.bf16.mxu0 0
    %2188 = vmatpush1.bf16.xpose.msra.mxu0 0
    %2189 = vmatprep.subr.bf16.mxu0 0
    %2190 = vmatpush1.bf16.xpose.msra.mxu0 0
    %2191 = vmatprep.subr.bf16.mxu0 0
    %2192 = vmatpush1.bf16.xpose.msra.mxu0 0
    %2193 = vmatprep.subr.bf16.mxu0 0
    %2194 = vmatpush1.bf16.xpose.msra.mxu0 0
    %2195 = vmatprep.subr.bf16.mxu0 0
    %2196 = vmatpush1.bf16.xpose.msra.mxu0 0
    %2197 = vmatprep.subr.bf16.mxu0 0
    %2198 = vmatpush1.bf16.xpose.msra.mxu0 0
    %2199 = vmatprep.subr.bf16.mxu0 0
    %2200 = vmatpush1.bf16.xpose.msra.mxu0 0
    %2201 = vmatprep.subr.bf16.mxu0 0
    %2202 = vmatpush1.bf16.xpose.msra.mxu0 %v2185
    %2203 = vmatprep.subr.bf16.mxu0 0
    %2204 = vmatpush2.bf16.xpose.msra.mxu0 0
    %2205 = vmatprep.subr.bf16.mxu0 0
    %2206 = vmatpush2.bf16.xpose.msra.mxu0 0
    %2207 = vmatprep.subr.bf16.mxu0 0
    %2208 = vmatpush2.bf16.xpose.msra.mxu0 0
    %2209 = vmatprep.subr.bf16.mxu0 0
    %2210 = vmatpush2.bf16.xpose.msra.mxu0 0
    %2211 = vmatprep.subr.bf16.mxu0 0
    %2212 = vmatpush2.bf16.xpose.msra.mxu0 0
    %2213 = vmatprep.subr.bf16.mxu0 0
    %2214 = vmatpush2.bf16.xpose.msra.mxu0 0
    %2215 = vmatprep.subr.bf16.mxu0 0
    %2216 = vmatpush2.bf16.xpose.msra.mxu0 0
    %2217 = vmatprep.subr.bf16.mxu0 0
    %2218 = vmatpush2.bf16.xpose.msra.mxu0 0
    %2219 = vmatprep.mubr.bf16.mxu0 0
    %2220 = vmatmul.mubr.bf16.gmra.mxu0 %v2182
    %v2221 = vpop.f32.mrf.mxu0
    %v2222 = vadd.f32 %v163, %v2221
    %v2223 = vpop.f32.mrf.mxu0
    %v2224 = vpop.f32.mrf.mxu0
    %v2225 = vadd.f32 %v164, %v2224
    %v2226 = vpop.f32.mrf.mxu0
    %2227 = vdwg.mxu0
    %v2228 = vsel %vm290, %v2222, -inf
    %2229 = vmax.xlane.f32.xlu0 %v2228
    %v2230 = vpop.xlane.xlu0 %2229
    %v2231 = vsel %vm290, %v2225, -inf
    %2232 = vmax.xlane.f32.xlu0 %v2231
    %v2233 = vpop.xlane.xlu0 %2232
    %v2234 = vsub.f32 %v2222, %v2230
    %v2235 = vsub.f32 %v2225, %v2233
    %v2236 = vmul.f32 %v2234, 1.442695
    %v2237 = vpow.pop %v2236
    %v2238 = vmul.f32 %v2235, 1.442695
    %v2239 = vpow.pop %v2238
    %v2240 = vsel %vm290, %v2237, 0.0
    %2241 = vadd.xlane.f32.xlu0 %v2240
    %v2242 = vpop.xlane.xlu0 %2241
    %v2243 = vsel %vm290, %v2239, 0.0
    %2244 = vadd.xlane.f32.xlu0 %v2243
    %v2245 = vpop.xlane.xlu0 %2244
    %v2246 = vrcp.pop %v2242
    %v2247 = vrcp.pop %v2245
    %v2248 = vmul.f32 %v2237, %v2246
    %v2249 = vmul.f32 %v2239, %v2247
    %v2250 = vpack.c.bf16 %v2249, %v2248
    %2251 = vrot.lane.b32.xlu0 %v1930, 48
    %v2252 = vpop.permute.xlu0 %2251
    %v2255 = vsel %vm290, %v2250, 0
    %2257 = vmatprep.subr.bf16.mxu0 0
    %2258 = vmatpush1.bf16.msra.mxu0 0
    %2259 = vmatprep.subr.bf16.mxu0 0
    %2260 = vmatpush1.bf16.msra.mxu0 0
    %2261 = vmatprep.subr.bf16.mxu0 0
    %2262 = vmatpush1.bf16.msra.mxu0 0
    %2263 = vmatprep.subr.bf16.mxu0 0
    %2264 = vmatpush1.bf16.msra.mxu0 0
    %2265 = vmatprep.subr.bf16.mxu0 0
    %2266 = vmatpush1.bf16.msra.mxu0 0
    %2267 = vmatprep.subr.bf16.mxu0 0
    %2268 = vmatpush1.bf16.msra.mxu0 0
    %2269 = vmatprep.subr.bf16.mxu0 0
    %2270 = vmatpush1.bf16.msra.mxu0 0
    %2271 = vmatprep.subr.bf16.mxu0 0
    %2272 = vmatpush1.bf16.msra.mxu0 %v2252
    %2273 = vmatprep.subr.bf16.mxu0 0
    %2274 = vmatpush2.bf16.msra.mxu0 0
    %2275 = vmatprep.subr.bf16.mxu0 0
    %2276 = vmatpush2.bf16.msra.mxu0 0
    %2277 = vmatprep.subr.bf16.mxu0 0
    %2278 = vmatpush2.bf16.msra.mxu0 0
    %2279 = vmatprep.subr.bf16.mxu0 0
    %2280 = vmatpush2.bf16.msra.mxu0 0
    %2281 = vmatprep.subr.bf16.mxu0 0
    %2282 = vmatpush2.bf16.msra.mxu0 0
    %2283 = vmatprep.subr.bf16.mxu0 0
    %2284 = vmatpush2.bf16.msra.mxu0 0
    %2285 = vmatprep.subr.bf16.mxu0 0
    %2286 = vmatpush2.bf16.msra.mxu0 0
    %2287 = vmatprep.subr.bf16.mxu0 0
    %2288 = vmatpush2.bf16.msra.mxu0 0
    %2289 = vmatprep.mubr.bf16.mxu0 0
    %2290 = vmatmul.mubr.bf16.gmra.mxu0 %v2255
    %v2291 = vpop.f32.mrf.mxu0
    %v2292 = vadd.f32 0.0, %v2291
    %v2293 = vpop.f32.mrf.mxu0
    %v2294 = vpop.f32.mrf.mxu0
    %v2295 = vadd.f32 0.0, %v2294
    %v2296 = vpop.f32.mrf.mxu0
    %2297 = vdwg.mxu0
    %2298 = vrot.lane.b32.xlu0 %v1930, 104
    %v2299 = vpop.permute.xlu0 %2298
    %2300 = vrot.lane.b32.xlu0 %v1930, 72
    %v2301 = vpop.permute.xlu0 %2300
    %v2303 = vsel %vm242, %v2299, 0
    %v2306 = vsel %vm242, %v2301, 0
    %2308 = vmatprep.subr.bf16.mxu0 0
    %2309 = vmatpush1.bf16.xpose.msra.mxu0 0
    %2310 = vmatprep.subr.bf16.mxu0 0
    %2311 = vmatpush1.bf16.xpose.msra.mxu0 0
    %2312 = vmatprep.subr.bf16.mxu0 0
    %2313 = vmatpush1.bf16.xpose.msra.mxu0 0
    %2314 = vmatprep.subr.bf16.mxu0 0
    %2315 = vmatpush1.bf16.xpose.msra.mxu0 0
    %2316 = vmatprep.subr.bf16.mxu0 0
    %2317 = vmatpush1.bf16.xpose.msra.mxu0 0
    %2318 = vmatprep.subr.bf16.mxu0 0
    %2319 = vmatpush1.bf16.xpose.msra.mxu0 0
    %2320 = vmatprep.subr.bf16.mxu0 0
    %2321 = vmatpush1.bf16.xpose.msra.mxu0 0
    %2322 = vmatprep.subr.bf16.mxu0 0
    %2323 = vmatpush1.bf16.xpose.msra.mxu0 %v2306
    %2324 = vmatprep.subr.bf16.mxu0 0
    %2325 = vmatpush2.bf16.xpose.msra.mxu0 0
    %2326 = vmatprep.subr.bf16.mxu0 0
    %2327 = vmatpush2.bf16.xpose.msra.mxu0 0
    %2328 = vmatprep.subr.bf16.mxu0 0
    %2329 = vmatpush2.bf16.xpose.msra.mxu0 0
    %2330 = vmatprep.subr.bf16.mxu0 0
    %2331 = vmatpush2.bf16.xpose.msra.mxu0 0
    %2332 = vmatprep.subr.bf16.mxu0 0
    %2333 = vmatpush2.bf16.xpose.msra.mxu0 0
    %2334 = vmatprep.subr.bf16.mxu0 0
    %2335 = vmatpush2.bf16.xpose.msra.mxu0 0
    %2336 = vmatprep.subr.bf16.mxu0 0
    %2337 = vmatpush2.bf16.xpose.msra.mxu0 0
    %2338 = vmatprep.subr.bf16.mxu0 0
    %2339 = vmatpush2.bf16.xpose.msra.mxu0 0
    %2340 = vmatprep.mubr.bf16.mxu0 0
    %2341 = vmatmul.mubr.bf16.gmra.mxu0 %v2303
    %v2342 = vpop.f32.mrf.mxu0
    %v2343 = vadd.f32 %v163, %v2342
    %v2344 = vpop.f32.mrf.mxu0
    %v2345 = vpop.f32.mrf.mxu0
    %v2346 = vadd.f32 %v164, %v2345
    %v2347 = vpop.f32.mrf.mxu0
    %2348 = vdwg.mxu0
    %v2349 = vsel %vm290, %v2343, -inf
    %2350 = vmax.xlane.f32.xlu0 %v2349
    %v2351 = vpop.xlane.xlu0 %2350
    %v2352 = vsel %vm290, %v2346, -inf
    %2353 = vmax.xlane.f32.xlu0 %v2352
    %v2354 = vpop.xlane.xlu0 %2353
    %v2355 = vsub.f32 %v2343, %v2351
    %v2356 = vsub.f32 %v2346, %v2354
    %v2357 = vmul.f32 %v2355, 1.442695
    %v2358 = vpow.pop %v2357
    %v2359 = vmul.f32 %v2356, 1.442695
    %v2360 = vpow.pop %v2359
    %v2361 = vsel %vm290, %v2358, 0.0
    %2362 = vadd.xlane.f32.xlu0 %v2361
    %v2363 = vpop.xlane.xlu0 %2362
    %v2364 = vsel %vm290, %v2360, 0.0
    %2365 = vadd.xlane.f32.xlu0 %v2364
    %v2366 = vpop.xlane.xlu0 %2365
    %v2367 = vrcp.pop %v2363
    %v2368 = vrcp.pop %v2366
    %v2369 = vmul.f32 %v2358, %v2367
    %v2370 = vmul.f32 %v2360, %v2368
    %v2371 = vpack.c.bf16 %v2370, %v2369
    %2372 = vrot.lane.b32.xlu0 %v1930, 40
    %v2373 = vpop.permute.xlu0 %2372
    %v2376 = vsel %vm290, %v2371, 0
    %2378 = vmatprep.subr.bf16.mxu0 0
    %2379 = vmatpush1.bf16.msra.mxu0 0
    %2380 = vmatprep.subr.bf16.mxu0 0
    %2381 = vmatpush1.bf16.msra.mxu0 0
    %2382 = vmatprep.subr.bf16.mxu0 0
    %2383 = vmatpush1.bf16.msra.mxu0 0
    %2384 = vmatprep.subr.bf16.mxu0 0
    %2385 = vmatpush1.bf16.msra.mxu0 0
    %2386 = vmatprep.subr.bf16.mxu0 0
    %2387 = vmatpush1.bf16.msra.mxu0 0
    %2388 = vmatprep.subr.bf16.mxu0 0
    %2389 = vmatpush1.bf16.msra.mxu0 0
    %2390 = vmatprep.subr.bf16.mxu0 0
    %2391 = vmatpush1.bf16.msra.mxu0 0
    %2392 = vmatprep.subr.bf16.mxu0 0
    %2393 = vmatpush1.bf16.msra.mxu0 %v2373
    %2394 = vmatprep.subr.bf16.mxu0 0
    %2395 = vmatpush2.bf16.msra.mxu0 0
    %2396 = vmatprep.subr.bf16.mxu0 0
    %2397 = vmatpush2.bf16.msra.mxu0 0
    %2398 = vmatprep.subr.bf16.mxu0 0
    %2399 = vmatpush2.bf16.msra.mxu0 0
    %2400 = vmatprep.subr.bf16.mxu0 0
    %2401 = vmatpush2.bf16.msra.mxu0 0
    %2402 = vmatprep.subr.bf16.mxu0 0
    %2403 = vmatpush2.bf16.msra.mxu0 0
    %2404 = vmatprep.subr.bf16.mxu0 0
    %2405 = vmatpush2.bf16.msra.mxu0 0
    %2406 = vmatprep.subr.bf16.mxu0 0
    %2407 = vmatpush2.bf16.msra.mxu0 0
    %2408 = vmatprep.subr.bf16.mxu0 0
    %2409 = vmatpush2.bf16.msra.mxu0 0
    %2410 = vmatprep.mubr.bf16.mxu0 0
    %2411 = vmatmul.mubr.bf16.gmra.mxu0 %v2376
    %v2412 = vpop.f32.mrf.mxu0
    %v2413 = vadd.f32 0.0, %v2412
    %v2414 = vpop.f32.mrf.mxu0
    %v2415 = vpop.f32.mrf.mxu0
    %v2416 = vadd.f32 0.0, %v2415
    %v2417 = vpop.f32.mrf.mxu0
    %2418 = vdwg.mxu0
    %2421 = vrot.lane.b32.xlu0 %v2171, 8
    %v2422 = vpop.permute.xlu0 %2421
    %2423 = vrot.lane.b32.xlu0 %v2174, 8
    %v2424 = vpop.permute.xlu0 %2423
    %2429 = vrot.lane.b32.xlu0 %v2292, 16
    %v2430 = vpop.permute.xlu0 %2429
    %2431 = vrot.lane.b32.xlu0 %v2295, 16
    %v2432 = vpop.permute.xlu0 %2431
    %2437 = vrot.lane.b32.xlu0 %v2413, 24
    %v2438 = vpop.permute.xlu0 %2437
    %2439 = vrot.lane.b32.xlu0 %v2416, 24
    %v2440 = vpop.permute.xlu0 %2439
    %v2443 = vsel %vm242, %v2050, %v2422
    %v2444 = vsel %vm242, %v2053, %v2424
    %v2445 = vsel %vm290, %v2443, %v2430
    %v2446 = vsel %vm290, %v2444, %v2432
    %v2447 = vsel %vm752, %v2445, %v2438
    %v2448 = vsel %vm752, %v2446, %v2440
    %v2449 = vpack.c.bf16 %v2448, %v2447
    %v2454 = vunpack.c.l.b16 %v1932
    %v2455 = vunpack.c.l.b16 %v1933
    %v2456 = vunpack.c.l.b16 %v1934
    %v2457 = vunpack.c.l.b16 %v1935
    %v2458 = vpack.c.b16 %v2455, %v2454
    %v2459 = vpack.c.b16 %v2457, %v2456
    %v2463 = vsel %vm189, %v2449, 0
    %2465 = vmatprep.subr.bf16.mxu0 0
    %2466 = vmatpush1.bf16.msra.mxu0 0
    %2467 = vmatprep.subr.bf16.mxu0 0
    %2468 = vmatpush1.bf16.msra.mxu0 0
    %2469 = vmatprep.subr.bf16.mxu0 0
    %2470 = vmatpush1.bf16.msra.mxu0 0
    %2471 = vmatprep.subr.bf16.mxu0 0
    %2472 = vmatpush1.bf16.msra.mxu0 0
    %2473 = vmatprep.subr.bf16.mxu0 0
    %2474 = vmatpush1.bf16.msra.mxu0 0
    %2475 = vmatprep.subr.bf16.mxu0 0
    %2476 = vmatpush1.bf16.msra.mxu0 0
    %2477 = vmatprep.subr.bf16.mxu0 0
    %2478 = vmatpush1.bf16.msra.mxu0 %v2459
    %2479 = vmatprep.subr.bf16.mxu0 0
    %2480 = vmatpush1.bf16.msra.mxu0 %v2458
    %2481 = vmatprep.subr.bf16.mxu0 0
    %2482 = vmatpush2.bf16.msra.mxu0 0
    %2483 = vmatprep.subr.bf16.mxu0 0
    %2484 = vmatpush2.bf16.msra.mxu0 0
    %2485 = vmatprep.subr.bf16.mxu0 0
    %2486 = vmatpush2.bf16.msra.mxu0 0
    %2487 = vmatprep.subr.bf16.mxu0 0
    %2488 = vmatpush2.bf16.msra.mxu0 0
    %2489 = vmatprep.subr.bf16.mxu0 0
    %2490 = vmatpush2.bf16.msra.mxu0 0
    %2491 = vmatprep.subr.bf16.mxu0 0
    %2492 = vmatpush2.bf16.msra.mxu0 0
    %2493 = vmatprep.subr.bf16.mxu0 0
    %2494 = vmatpush2.bf16.msra.mxu0 0
    %2495 = vmatprep.subr.bf16.mxu0 0
    %2496 = vmatpush2.bf16.msra.mxu0 0
    %2497 = vmatprep.mubr.bf16.mxu0 0
    %2498 = vmatmul.mubr.bf16.gmra.mxu0 %v2463
    %v2499 = vpop.f32.mrf.mxu0
    %v2500 = vadd.f32 0.0, %v2499
    %v2501 = vpop.f32.mrf.mxu0
    %v2502 = vpop.f32.mrf.mxu0
    %v2503 = vadd.f32 0.0, %v2502
    %v2504 = vpop.f32.mrf.mxu0
    %2505 = vdwg.mxu0
    %v2506 = vadd.f32 %v1861, %v2500
    %v2507 = vadd.f32 %v1862, %v2503
    %v2508 = vld [vmem:[%s4 + $0xe] sm:$0x1]
    %v2509 = vlaneseq
    %v2510 = vshrl.u32 %v2509, 7
    %v2511 = vsub.s32 0, %v2510
    %v2512 = vrot.slane %v2508, %v2511
    %v2513 = vadd.f32 %v2506, %v2512
    %v2514 = vadd.f32 %v2507, %v2512
    %v2515 = vld [vmem:[%s4 + $0x14] sm:$0x1]
    %v2516 = vld [vmem:[%s4 + $0x17] sm:$0x1]
    %v2517 = vsel %vm189, %v2513, 0.0
    %2518 = vadd.xlane.f32.xlu0 %v2517
    %v2519 = vpop.xlane.xlu0 %2518
    %v2520 = vsel %vm189, %v2514, 0.0
    %2521 = vadd.xlane.f32.xlu0 %v2520
    %v2522 = vpop.xlane.xlu0 %2521
    %v2523 = vmul.f32 %v2519, %v829
    %v2524 = vmul.f32 %v2522, %v829
    %v2525 = vsub.f32 %v2513, %v2523
    %v2526 = vsub.f32 %v2514, %v2524
    %v2527 = vmul.f32 %v2525, %v2525
    %v2528 = vmul.f32 %v2526, %v2526
    %v2529 = vsel %vm189, %v2527, 0.0
    %2530 = vadd.xlane.f32.xlu0 %v2529
    %v2531 = vpop.xlane.xlu0 %2530
    %v2532 = vsel %vm189, %v2528, 0.0
    %2533 = vadd.xlane.f32.xlu0 %v2532
    %v2534 = vpop.xlane.xlu0 %2533
    %v2535 = vmul.f32 %v2531, %v829
    %v2536 = vmul.f32 %v2534, %v829
    %v2537 = vadd.f32 %v2535, 1e-05
    %v2538 = vadd.f32 %v2536, 1e-05
    %v2539 = vrsqrt.pop %v2537
    %v2540 = vrsqrt.pop %v2538
    %v2541 = vmul.f32 %v2525, %v2539
    %v2542 = vmul.f32 %v2526, %v2540
    %v2543 = vlaneseq
    %v2544 = vshrl.u32 %v2543, 7
    %v2545 = vsub.s32 0, %v2544
    %v2546 = vrot.slane %v2515, %v2545
    %v2547 = vmul.f32 %v2541, %v2546
    %v2548 = vmul.f32 %v2542, %v2546
    %v2549 = vlaneseq
    %v2550 = vshrl.u32 %v2549, 7
    %v2551 = vsub.s32 0, %v2550
    %v2552 = vrot.slane %v2516, %v2551
    %v2553 = vadd.f32 %v2547, %v2552
    %v2554 = vadd.f32 %v2548, %v2552
    %s2555 = scalar_lea.vmem [#allocation10], 16
    %v2556 = vld [vmem:[%s2555] sm:$0xf]
    %v2557 = vld [vmem:[%s2555 + $0x4] sm:$0xf]
    %v2558 = vld [vmem:[%s2555 + $0x8] sm:$0xf]
    %v2559 = vld [vmem:[%s2555 + $0xc] sm:$0xf]
    %v2560 = vld [vmem:[%s4 + $0xf] sm:$0x1]
    %v2561 = vpack.c.bf16 %v2554, %v2553
    %v2562 = vlaneseq
    %v2563 = vshrl.u32 %v2562, 7
    %v2564 = vsub.s32 0, %v2563
    %v2565 = vrot.slane %v2560, %v2564
    %v2570 = vunpack.c.l.b16 %v2556
    %v2571 = vunpack.c.l.b16 %v2557
    %v2572 = vunpack.c.l.b16 %v2558
    %v2573 = vunpack.c.l.b16 %v2559
    %v2574 = vpack.c.b16 %v2571, %v2570
    %v2575 = vpack.c.b16 %v2573, %v2572
    %v2579 = vsel %vm189, %v2561, 0
    %2581 = vmatprep.subr.bf16.mxu0 0
    %2582 = vmatpush1.bf16.msra.mxu0 0
    %2583 = vmatprep.subr.bf16.mxu0 0
    %2584 = vmatpush1.bf16.msra.mxu0 0
    %2585 = vmatprep.subr.bf16.mxu0 0
    %2586 = vmatpush1.bf16.msra.mxu0 0
    %2587 = vmatprep.subr.bf16.mxu0 0
    %2588 = vmatpush1.bf16.msra.mxu0 0
    %2589 = vmatprep.subr.bf16.mxu0 0
    %2590 = vmatpush1.bf16.msra.mxu0 0
    %2591 = vmatprep.subr.bf16.mxu0 0
    %2592 = vmatpush1.bf16.msra.mxu0 0
    %2593 = vmatprep.subr.bf16.mxu0 0
    %2594 = vmatpush1.bf16.msra.mxu0 %v2575
    %2595 = vmatprep.subr.bf16.mxu0 0
    %2596 = vmatpush1.bf16.msra.mxu0 %v2574
    %2597 = vmatprep.subr.bf16.mxu0 0
    %2598 = vmatpush2.bf16.msra.mxu0 0
    %2599 = vmatprep.subr.bf16.mxu0 0
    %2600 = vmatpush2.bf16.msra.mxu0 0
    %2601 = vmatprep.subr.bf16.mxu0 0
    %2602 = vmatpush2.bf16.msra.mxu0 0
    %2603 = vmatprep.subr.bf16.mxu0 0
    %2604 = vmatpush2.bf16.msra.mxu0 0
    %2605 = vmatprep.subr.bf16.mxu0 0
    %2606 = vmatpush2.bf16.msra.mxu0 0
    %2607 = vmatprep.subr.bf16.mxu0 0
    %2608 = vmatpush2.bf16.msra.mxu0 0
    %2609 = vmatprep.subr.bf16.mxu0 0
    %2610 = vmatpush2.bf16.msra.mxu0 0
    %2611 = vmatprep.subr.bf16.mxu0 0
    %2612 = vmatpush2.bf16.msra.mxu0 0
    %2613 = vmatprep.mubr.bf16.mxu0 0
    %2614 = vmatmul.mubr.bf16.gmra.mxu0 %v2579
    %v2615 = vpop.f32.mrf.mxu0
    %v2616 = vadd.f32 %v2565, %v2615
    %v2617 = vpop.f32.mrf.mxu0
    %v2618 = vpop.f32.mrf.mxu0
    %v2619 = vadd.f32 %v2565, %v2618
    %v2620 = vpop.f32.mrf.mxu0
    %2621 = vdwg.mxu0
    %v2622 = vpack.c.bf16 %v2619, %v2616
    %s2623 = scalar_lea.vmem [#allocation11], 16
    %v2624 = vld [vmem:[%s2623] sm:$0xf]
    %v2625 = vld [vmem:[%s2623 + $0x4] sm:$0xf]
    %v2626 = vld [vmem:[%s2623 + $0x8] sm:$0xf]
    %v2627 = vld [vmem:[%s2623 + $0xc] sm:$0xf]
    %v2628 = vld [vmem:[%s4 + $0x10] sm:$0x1]
    %v2629 = vlaneseq
    %v2630 = vshrl.u32 %v2629, 7
    %v2631 = vsub.s32 0, %v2630
    %v2632 = vrot.slane %v2628, %v2631
    %v2637 = vunpack.c.l.b16 %v2624
    %v2638 = vunpack.c.l.b16 %v2625
    %v2639 = vunpack.c.l.b16 %v2626
    %v2640 = vunpack.c.l.b16 %v2627
    %v2641 = vpack.c.b16 %v2638, %v2637
    %v2642 = vpack.c.b16 %v2640, %v2639
    %2645 = vmatprep.subr.bf16.mxu0 0
    %2646 = vmatpush1.bf16.msra.mxu0 0
    %2647 = vmatprep.subr.bf16.mxu0 0
    %2648 = vmatpush1.bf16.msra.mxu0 0
    %2649 = vmatprep.subr.bf16.mxu0 0
    %2650 = vmatpush1.bf16.msra.mxu0 0
    %2651 = vmatprep.subr.bf16.mxu0 0
    %2652 = vmatpush1.bf16.msra.mxu0 0
    %2653 = vmatprep.subr.bf16.mxu0 0
    %2654 = vmatpush1.bf16.msra.mxu0 0
    %2655 = vmatprep.subr.bf16.mxu0 0
    %2656 = vmatpush1.bf16.msra.mxu0 0
    %2657 = vmatprep.subr.bf16.mxu0 0
    %2658 = vmatpush1.bf16.msra.mxu0 %v2642
    %2659 = vmatprep.subr.bf16.mxu0 0
    %2660 = vmatpush1.bf16.msra.mxu0 %v2641
    %2661 = vmatprep.subr.bf16.mxu0 0
    %2662 = vmatpush2.bf16.msra.mxu0 0
    %2663 = vmatprep.subr.bf16.mxu0 0
    %2664 = vmatpush2.bf16.msra.mxu0 0
    %2665 = vmatprep.subr.bf16.mxu0 0
    %2666 = vmatpush2.bf16.msra.mxu0 0
    %2667 = vmatprep.subr.bf16.mxu0 0
    %2668 = vmatpush2.bf16.msra.mxu0 0
    %2669 = vmatprep.subr.bf16.mxu0 0
    %2670 = vmatpush2.bf16.msra.mxu0 0
    %2671 = vmatprep.subr.bf16.mxu0 0
    %2672 = vmatpush2.bf16.msra.mxu0 0
    %2673 = vmatprep.subr.bf16.mxu0 0
    %2674 = vmatpush2.bf16.msra.mxu0 0
    %2675 = vmatprep.subr.bf16.mxu0 0
    %2676 = vmatpush2.bf16.msra.mxu0 0
    %2677 = vmatprep.mubr.bf16.mxu0 0
    %2678 = vmatmul.mubr.bf16.gmra.mxu0 %v953
    %v2679 = vpop.f32.mrf.mxu0
    %v2680 = vadd.f32 %v2632, %v2679
    %v2681 = vpop.f32.mrf.mxu0
    %v2682 = vpop.f32.mrf.mxu0
    %v2683 = vadd.f32 %v2632, %v2682
    %v2684 = vpop.f32.mrf.mxu0
    %2685 = vmatprep.mubr.bf16.mxu0 0
    %2686 = vmatmul.mubr.bf16.gmra.mxu0 %v956
    %v2687 = vpop.f32.mrf.mxu0
    %v2688 = vadd.f32 %v2632, %v2687
    %v2689 = vpop.f32.mrf.mxu0
    %v2690 = vpop.f32.mrf.mxu0
    %v2691 = vpop.f32.mrf.mxu0
    %2692 = vdwg.mxu0
    %v2693 = vpack.c.bf16 %v2683, %v2680
    %v2694 = vpack.c.bf16 %v2688, %v2688
    %s2695 = scalar_lea.vmem [#allocation13], 16
    %v2696 = vld [vmem:[%s2695] sm:$0xf]
    %v2697 = vld [vmem:[%s2695 + $0x4] sm:$0xf]
    %v2698 = vld [vmem:[%s2695 + $0x8] sm:$0xf]
    %v2699 = vld [vmem:[%s2695 + $0xc] sm:$0xf]
    %v2701 = vsel %vm242, %v2622, 0
    %v2704 = vsel %vm242, %v2693, 0
    %v2707 = vsel %vm242, %v2694, 0
    %2709 = vmatprep.subr.bf16.mxu0 0
    %2710 = vmatpush1.bf16.xpose.msra.mxu0 0
    %2711 = vmatprep.subr.bf16.mxu0 0
    %2712 = vmatpush1.bf16.xpose.msra.mxu0 0
    %2713 = vmatprep.subr.bf16.mxu0 0
    %2714 = vmatpush1.bf16.xpose.msra.mxu0 0
    %2715 = vmatprep.subr.bf16.mxu0 0
    %2716 = vmatpush1.bf16.xpose.msra.mxu0 0
    %2717 = vmatprep.subr.bf16.mxu0 0
    %2718 = vmatpush1.bf16.xpose.msra.mxu0 0
    %2719 = vmatprep.subr.bf16.mxu0 0
    %2720 = vmatpush1.bf16.xpose.msra.mxu0 0
    %2721 = vmatprep.subr.bf16.mxu0 0
    %2722 = vmatpush1.bf16.xpose.msra.mxu0 %v2707
    %2723 = vmatprep.subr.bf16.mxu0 0
    %2724 = vmatpush1.bf16.xpose.msra.mxu0 %v2704
    %2725 = vmatprep.subr.bf16.mxu0 0
    %2726 = vmatpush2.bf16.xpose.msra.mxu0 0
    %2727 = vmatprep.subr.bf16.mxu0 0
    %2728 = vmatpush2.bf16.xpose.msra.mxu0 0
    %2729 = vmatprep.subr.bf16.mxu0 0
    %2730 = vmatpush2.bf16.xpose.msra.mxu0 0
    %2731 = vmatprep.subr.bf16.mxu0 0
    %2732 = vmatpush2.bf16.xpose.msra.mxu0 0
    %2733 = vmatprep.subr.bf16.mxu0 0
    %2734 = vmatpush2.bf16.xpose.msra.mxu0 0
    %2735 = vmatprep.subr.bf16.mxu0 0
    %2736 = vmatpush2.bf16.xpose.msra.mxu0 0
    %2737 = vmatprep.subr.bf16.mxu0 0
    %2738 = vmatpush2.bf16.xpose.msra.mxu0 0
    %2739 = vmatprep.subr.bf16.mxu0 0
    %2740 = vmatpush2.bf16.xpose.msra.mxu0 0
    %2741 = vmatprep.mubr.bf16.mxu0 0
    %2742 = vmatmul.mubr.bf16.gmra.mxu0 %v2701
    %v2743 = vpop.f32.mrf.mxu0
    %v2744 = vadd.f32 %v165, %v2743
    %v2745 = vpop.f32.mrf.mxu0
    %v2746 = vpop.f32.mrf.mxu0
    %v2747 = vadd.f32 %v166, %v2746
    %v2748 = vpop.f32.mrf.mxu0
    %2749 = vdwg.mxu0
    %v2750 = vsel %vm752, %v2744, -inf
    %2751 = vmax.xlane.f32.xlu0 %v2750
    %v2752 = vpop.xlane.xlu0 %2751
    %v2753 = vsel %vm752, %v2747, -inf
    %2754 = vmax.xlane.f32.xlu0 %v2753
    %v2755 = vpop.xlane.xlu0 %2754
    %v2756 = vsub.f32 %v2744, %v2752
    %v2757 = vsub.f32 %v2747, %v2755
    %v2758 = vmul.f32 %v2756, 1.442695
    %v2759 = vpow.pop %v2758
    %v2760 = vmul.f32 %v2757, 1.442695
    %v2761 = vpow.pop %v2760
    %v2762 = vsel %vm752, %v2759, 0.0
    %2763 = vadd.xlane.f32.xlu0 %v2762
    %v2764 = vpop.xlane.xlu0 %2763
    %v2765 = vsel %vm752, %v2761, 0.0
    %2766 = vadd.xlane.f32.xlu0 %v2765
    %v2767 = vpop.xlane.xlu0 %2766
    %v2768 = vrcp.pop %v2764
    %v2769 = vrcp.pop %v2767
    %v2770 = vmul.f32 %v2759, %v2768
    %v2771 = vmul.f32 %v2761, %v2769
    %v2772 = vpack.c.bf16 %v2771, %v2770
    %2775 = vrot.lane.b32.xlu0 %v2693, 96
    %v2776 = vpop.permute.xlu0 %2775
    %2777 = vrot.lane.b32.xlu0 %v2694, 96
    %v2778 = vpop.permute.xlu0 %2777
    %v2781 = vsel %vm752, %v2772, 0
    %v2784 = vsel %vm1095, %v2778, 0
    %2786 = vmatprep.subr.bf16.mxu0 0
    %2787 = vmatpush1.bf16.msra.mxu0 0
    %2788 = vmatprep.subr.bf16.mxu0 0
    %2789 = vmatpush1.bf16.msra.mxu0 0
    %2790 = vmatprep.subr.bf16.mxu0 0
    %2791 = vmatpush1.bf16.msra.mxu0 0
    %2792 = vmatprep.subr.bf16.mxu0 0
    %2793 = vmatpush1.bf16.msra.mxu0 0
    %2794 = vmatprep.subr.bf16.mxu0 0
    %2795 = vmatpush1.bf16.msra.mxu0 0
    %2796 = vmatprep.subr.bf16.mxu0 0
    %2797 = vmatpush1.bf16.msra.mxu0 0
    %2798 = vmatprep.subr.bf16.mxu0 0
    %2799 = vmatpush1.bf16.msra.mxu0 %v2784
    %2800 = vmatprep.subr.bf16.mxu0 0
    %2801 = vmatpush1.bf16.msra.mxu0 %v2776
    %2802 = vmatprep.subr.bf16.mxu0 0
    %2803 = vmatpush2.bf16.msra.mxu0 0
    %2804 = vmatprep.subr.bf16.mxu0 0
    %2805 = vmatpush2.bf16.msra.mxu0 0
    %2806 = vmatprep.subr.bf16.mxu0 0
    %2807 = vmatpush2.bf16.msra.mxu0 0
    %2808 = vmatprep.subr.bf16.mxu0 0
    %2809 = vmatpush2.bf16.msra.mxu0 0
    %2810 = vmatprep.subr.bf16.mxu0 0
    %2811 = vmatpush2.bf16.msra.mxu0 0
    %2812 = vmatprep.subr.bf16.mxu0 0
    %2813 = vmatpush2.bf16.msra.mxu0 0
    %2814 = vmatprep.subr.bf16.mxu0 0
    %2815 = vmatpush2.bf16.msra.mxu0 0
    %2816 = vmatprep.subr.bf16.mxu0 0
    %2817 = vmatpush2.bf16.msra.mxu0 0
    %2818 = vmatprep.mubr.bf16.mxu0 0
    %2819 = vmatmul.mubr.bf16.gmra.mxu0 %v2781
    %v2820 = vpop.f32.mrf.mxu0
    %v2821 = vadd.f32 0.0, %v2820
    %v2822 = vpop.f32.mrf.mxu0
    %v2823 = vpop.f32.mrf.mxu0
    %v2824 = vadd.f32 0.0, %v2823
    %v2825 = vpop.f32.mrf.mxu0
    %2826 = vdwg.mxu0
    %2828 = vrot.lane.b32.xlu0 %v2622, 120
    %v2829 = vpop.permute.xlu0 %2828
    %2830 = vrot.lane.b32.xlu0 %v2693, 120
    %v2831 = vpop.permute.xlu0 %2830
    %2832 = vrot.lane.b32.xlu0 %v2694, 120
    %v2833 = vpop.permute.xlu0 %2832
    %v2835 = vsel %vm242, %v2829, 0
    %v2838 = vsel %vm242, %v2831, 0
    %v2841 = vsel %vm242, %v2833, 0
    %2843 = vmatprep.subr.bf16.mxu0 0
    %2844 = vmatpush1.bf16.xpose.msra.mxu0 0
    %2845 = vmatprep.subr.bf16.mxu0 0
    %2846 = vmatpush1.bf16.xpose.msra.mxu0 0
    %2847 = vmatprep.subr.bf16.mxu0 0
    %2848 = vmatpush1.bf16.xpose.msra.mxu0 0
    %2849 = vmatprep.subr.bf16.mxu0 0
    %2850 = vmatpush1.bf16.xpose.msra.mxu0 0
    %2851 = vmatprep.subr.bf16.mxu0 0
    %2852 = vmatpush1.bf16.xpose.msra.mxu0 0
    %2853 = vmatprep.subr.bf16.mxu0 0
    %2854 = vmatpush1.bf16.xpose.msra.mxu0 0
    %2855 = vmatprep.subr.bf16.mxu0 0
    %2856 = vmatpush1.bf16.xpose.msra.mxu0 %v2841
    %2857 = vmatprep.subr.bf16.mxu0 0
    %2858 = vmatpush1.bf16.xpose.msra.mxu0 %v2838
    %2859 = vmatprep.subr.bf16.mxu0 0
    %2860 = vmatpush2.bf16.xpose.msra.mxu0 0
    %2861 = vmatprep.subr.bf16.mxu0 0
    %2862 = vmatpush2.bf16.xpose.msra.mxu0 0
    %2863 = vmatprep.subr.bf16.mxu0 0
    %2864 = vmatpush2.bf16.xpose.msra.mxu0 0
    %2865 = vmatprep.subr.bf16.mxu0 0
    %2866 = vmatpush2.bf16.xpose.msra.mxu0 0
    %2867 = vmatprep.subr.bf16.mxu0 0
    %2868 = vmatpush2.bf16.xpose.msra.mxu0 0
    %2869 = vmatprep.subr.bf16.mxu0 0
    %2870 = vmatpush2.bf16.xpose.msra.mxu0 0
    %2871 = vmatprep.subr.bf16.mxu0 0
    %2872 = vmatpush2.bf16.xpose.msra.mxu0 0
    %2873 = vmatprep.subr.bf16.mxu0 0
    %2874 = vmatpush2.bf16.xpose.msra.mxu0 0
    %2875 = vmatprep.mubr.bf16.mxu0 0
    %2876 = vmatmul.mubr.bf16.gmra.mxu0 %v2835
    %v2877 = vpop.f32.mrf.mxu0
    %v2878 = vadd.f32 %v165, %v2877
    %v2879 = vpop.f32.mrf.mxu0
    %v2880 = vpop.f32.mrf.mxu0
    %v2881 = vadd.f32 %v166, %v2880
    %v2882 = vpop.f32.mrf.mxu0
    %2883 = vdwg.mxu0
    %v2884 = vsel %vm752, %v2878, -inf
    %2885 = vmax.xlane.f32.xlu0 %v2884
    %v2886 = vpop.xlane.xlu0 %2885
    %v2887 = vsel %vm752, %v2881, -inf
    %2888 = vmax.xlane.f32.xlu0 %v2887
    %v2889 = vpop.xlane.xlu0 %2888
    %v2890 = vsub.f32 %v2878, %v2886
    %v2891 = vsub.f32 %v2881, %v2889
    %v2892 = vmul.f32 %v2890, 1.442695
    %v2893 = vpow.pop %v2892
    %v2894 = vmul.f32 %v2891, 1.442695
    %v2895 = vpow.pop %v2894
    %v2896 = vsel %vm752, %v2893, 0.0
    %2897 = vadd.xlane.f32.xlu0 %v2896
    %v2898 = vpop.xlane.xlu0 %2897
    %v2899 = vsel %vm752, %v2895, 0.0
    %2900 = vadd.xlane.f32.xlu0 %v2899
    %v2901 = vpop.xlane.xlu0 %2900
    %v2902 = vrcp.pop %v2898
    %v2903 = vrcp.pop %v2901
    %v2904 = vmul.f32 %v2893, %v2902
    %v2905 = vmul.f32 %v2895, %v2903
    %v2906 = vpack.c.bf16 %v2905, %v2904
    %2907 = vrot.lane.b32.xlu0 %v2693, 88
    %v2908 = vpop.permute.xlu0 %2907
    %2909 = vrot.lane.b32.xlu0 %v2694, 88
    %v2910 = vpop.permute.xlu0 %2909
    %v2913 = vsel %vm752, %v2906, 0
    %v2916 = vsel %vm1095, %v2910, 0
    %2918 = vmatprep.subr.bf16.mxu0 0
    %2919 = vmatpush1.bf16.msra.mxu0 0
    %2920 = vmatprep.subr.bf16.mxu0 0
    %2921 = vmatpush1.bf16.msra.mxu0 0
    %2922 = vmatprep.subr.bf16.mxu0 0
    %2923 = vmatpush1.bf16.msra.mxu0 0
    %2924 = vmatprep.subr.bf16.mxu0 0
    %2925 = vmatpush1.bf16.msra.mxu0 0
    %2926 = vmatprep.subr.bf16.mxu0 0
    %2927 = vmatpush1.bf16.msra.mxu0 0
    %2928 = vmatprep.subr.bf16.mxu0 0
    %2929 = vmatpush1.bf16.msra.mxu0 0
    %2930 = vmatprep.subr.bf16.mxu0 0
    %2931 = vmatpush1.bf16.msra.mxu0 %v2916
    %2932 = vmatprep.subr.bf16.mxu0 0
    %2933 = vmatpush1.bf16.msra.mxu0 %v2908
    %2934 = vmatprep.subr.bf16.mxu0 0
    %2935 = vmatpush2.bf16.msra.mxu0 0
    %2936 = vmatprep.subr.bf16.mxu0 0
    %2937 = vmatpush2.bf16.msra.mxu0 0
    %2938 = vmatprep.subr.bf16.mxu0 0
    %2939 = vmatpush2.bf16.msra.mxu0 0
    %2940 = vmatprep.subr.bf16.mxu0 0
    %2941 = vmatpush2.bf16.msra.mxu0 0
    %2942 = vmatprep.subr.bf16.mxu0 0
    %2943 = vmatpush2.bf16.msra.mxu0 0
    %2944 = vmatprep.subr.bf16.mxu0 0
    %2945 = vmatpush2.bf16.msra.mxu0 0
    %2946 = vmatprep.subr.bf16.mxu0 0
    %2947 = vmatpush2.bf16.msra.mxu0 0
    %2948 = vmatprep.subr.bf16.mxu0 0
    %2949 = vmatpush2.bf16.msra.mxu0 0
    %2950 = vmatprep.mubr.bf16.mxu0 0
    %2951 = vmatmul.mubr.bf16.gmra.mxu0 %v2913
    %v2952 = vpop.f32.mrf.mxu0
    %v2953 = vadd.f32 0.0, %v2952
    %v2954 = vpop.f32.mrf.mxu0
    %v2955 = vpop.f32.mrf.mxu0
    %v2956 = vadd.f32 0.0, %v2955
    %v2957 = vpop.f32.mrf.mxu0
    %2958 = vdwg.mxu0
    %2959 = vrot.lane.b32.xlu0 %v2622, 112
    %v2960 = vpop.permute.xlu0 %2959
    %2961 = vrot.lane.b32.xlu0 %v2693, 112
    %v2962 = vpop.permute.xlu0 %2961
    %2963 = vrot.lane.b32.xlu0 %v2694, 112
    %v2964 = vpop.permute.xlu0 %2963
    %v2966 = vsel %vm242, %v2960, 0
    %v2969 = vsel %vm242, %v2962, 0
    %v2972 = vsel %vm242, %v2964, 0
    %2974 = vmatprep.subr.bf16.mxu0 0
    %2975 = vmatpush1.bf16.xpose.msra.mxu0 0
    %2976 = vmatprep.subr.bf16.mxu0 0
    %2977 = vmatpush1.bf16.xpose.msra.mxu0 0
    %2978 = vmatprep.subr.bf16.mxu0 0
    %2979 = vmatpush1.bf16.xpose.msra.mxu0 0
    %2980 = vmatprep.subr.bf16.mxu0 0
    %2981 = vmatpush1.bf16.xpose.msra.mxu0 0
    %2982 = vmatprep.subr.bf16.mxu0 0
    %2983 = vmatpush1.bf16.xpose.msra.mxu0 0
    %2984 = vmatprep.subr.bf16.mxu0 0
    %2985 = vmatpush1.bf16.xpose.msra.mxu0 0
    %2986 = vmatprep.subr.bf16.mxu0 0
    %2987 = vmatpush1.bf16.xpose.msra.mxu0 %v2972
    %2988 = vmatprep.subr.bf16.mxu0 0
    %2989 = vmatpush1.bf16.xpose.msra.mxu0 %v2969
    %2990 = vmatprep.subr.bf16.mxu0 0
    %2991 = vmatpush2.bf16.xpose.msra.mxu0 0
    %2992 = vmatprep.subr.bf16.mxu0 0
    %2993 = vmatpush2.bf16.xpose.msra.mxu0 0
    %2994 = vmatprep.subr.bf16.mxu0 0
    %2995 = vmatpush2.bf16.xpose.msra.mxu0 0
    %2996 = vmatprep.subr.bf16.mxu0 0
    %2997 = vmatpush2.bf16.xpose.msra.mxu0 0
    %2998 = vmatprep.subr.bf16.mxu0 0
    %2999 = vmatpush2.bf16.xpose.msra.mxu0 0
    %3000 = vmatprep.subr.bf16.mxu0 0
    %3001 = vmatpush2.bf16.xpose.msra.mxu0 0
    %3002 = vmatprep.subr.bf16.mxu0 0
    %3003 = vmatpush2.bf16.xpose.msra.mxu0 0
    %3004 = vmatprep.subr.bf16.mxu0 0
    %3005 = vmatpush2.bf16.xpose.msra.mxu0 0
    %3006 = vmatprep.mubr.bf16.mxu0 0
    %3007 = vmatmul.mubr.bf16.gmra.mxu0 %v2966
    %v3008 = vpop.f32.mrf.mxu0
    %v3009 = vadd.f32 %v165, %v3008
    %v3010 = vpop.f32.mrf.mxu0
    %v3011 = vpop.f32.mrf.mxu0
    %v3012 = vadd.f32 %v166, %v3011
    %v3013 = vpop.f32.mrf.mxu0
    %3014 = vdwg.mxu0
    %v3015 = vsel %vm752, %v3009, -inf
    %3016 = vmax.xlane.f32.xlu0 %v3015
    %v3017 = vpop.xlane.xlu0 %3016
    %v3018 = vsel %vm752, %v3012, -inf
    %3019 = vmax.xlane.f32.xlu0 %v3018
    %v3020 = vpop.xlane.xlu0 %3019
    %v3021 = vsub.f32 %v3009, %v3017
    %v3022 = vsub.f32 %v3012, %v3020
    %v3023 = vmul.f32 %v3021, 1.442695
    %v3024 = vpow.pop %v3023
    %v3025 = vmul.f32 %v3022, 1.442695
    %v3026 = vpow.pop %v3025
    %v3027 = vsel %vm752, %v3024, 0.0
    %3028 = vadd.xlane.f32.xlu0 %v3027
    %v3029 = vpop.xlane.xlu0 %3028
    %v3030 = vsel %vm752, %v3026, 0.0
    %3031 = vadd.xlane.f32.xlu0 %v3030
    %v3032 = vpop.xlane.xlu0 %3031
    %v3033 = vrcp.pop %v3029
    %v3034 = vrcp.pop %v3032
    %v3035 = vmul.f32 %v3024, %v3033
    %v3036 = vmul.f32 %v3026, %v3034
    %v3037 = vpack.c.bf16 %v3036, %v3035
    %3038 = vrot.lane.b32.xlu0 %v2693, 80
    %v3039 = vpop.permute.xlu0 %3038
    %3040 = vrot.lane.b32.xlu0 %v2694, 80
    %v3041 = vpop.permute.xlu0 %3040
    %v3044 = vsel %vm752, %v3037, 0
    %v3047 = vsel %vm1095, %v3041, 0
    %3049 = vmatprep.subr.bf16.mxu0 0
    %3050 = vmatpush1.bf16.msra.mxu0 0
    %3051 = vmatprep.subr.bf16.mxu0 0
    %3052 = vmatpush1.bf16.msra.mxu0 0
    %3053 = vmatprep.subr.bf16.mxu0 0
    %3054 = vmatpush1.bf16.msra.mxu0 0
    %3055 = vmatprep.subr.bf16.mxu0 0
    %3056 = vmatpush1.bf16.msra.mxu0 0
    %3057 = vmatprep.subr.bf16.mxu0 0
    %3058 = vmatpush1.bf16.msra.mxu0 0
    %3059 = vmatprep.subr.bf16.mxu0 0
    %3060 = vmatpush1.bf16.msra.mxu0 0
    %3061 = vmatprep.subr.bf16.mxu0 0
    %3062 = vmatpush1.bf16.msra.mxu0 %v3047
    %3063 = vmatprep.subr.bf16.mxu0 0
    %3064 = vmatpush1.bf16.msra.mxu0 %v3039
    %3065 = vmatprep.subr.bf16.mxu0 0
    %3066 = vmatpush2.bf16.msra.mxu0 0
    %3067 = vmatprep.subr.bf16.mxu0 0
    %3068 = vmatpush2.bf16.msra.mxu0 0
    %3069 = vmatprep.subr.bf16.mxu0 0
    %3070 = vmatpush2.bf16.msra.mxu0 0
    %3071 = vmatprep.subr.bf16.mxu0 0
    %3072 = vmatpush2.bf16.msra.mxu0 0
    %3073 = vmatprep.subr.bf16.mxu0 0
    %3074 = vmatpush2.bf16.msra.mxu0 0
    %3075 = vmatprep.subr.bf16.mxu0 0
    %3076 = vmatpush2.bf16.msra.mxu0 0
    %3077 = vmatprep.subr.bf16.mxu0 0
    %3078 = vmatpush2.bf16.msra.mxu0 0
    %3079 = vmatprep.subr.bf16.mxu0 0
    %3080 = vmatpush2.bf16.msra.mxu0 0
    %3081 = vmatprep.mubr.bf16.mxu0 0
    %3082 = vmatmul.mubr.bf16.gmra.mxu0 %v3044
    %v3083 = vpop.f32.mrf.mxu0
    %v3084 = vadd.f32 0.0, %v3083
    %v3085 = vpop.f32.mrf.mxu0
    %v3086 = vpop.f32.mrf.mxu0
    %v3087 = vadd.f32 0.0, %v3086
    %v3088 = vpop.f32.mrf.mxu0
    %3089 = vdwg.mxu0
    %3090 = vrot.lane.b32.xlu0 %v2622, 104
    %v3091 = vpop.permute.xlu0 %3090
    %3092 = vrot.lane.b32.xlu0 %v2693, 104
    %v3093 = vpop.permute.xlu0 %3092
    %3094 = vrot.lane.b32.xlu0 %v2694, 104
    %v3095 = vpop.permute.xlu0 %3094
    %v3097 = vsel %vm242, %v3091, 0
    %v3100 = vsel %vm242, %v3093, 0
    %v3103 = vsel %vm242, %v3095, 0
    %3105 = vmatprep.subr.bf16.mxu0 0
    %3106 = vmatpush1.bf16.xpose.msra.mxu0 0
    %3107 = vmatprep.subr.bf16.mxu0 0
    %3108 = vmatpush1.bf16.xpose.msra.mxu0 0
    %3109 = vmatprep.subr.bf16.mxu0 0
    %3110 = vmatpush1.bf16.xpose.msra.mxu0 0
    %3111 = vmatprep.subr.bf16.mxu0 0
    %3112 = vmatpush1.bf16.xpose.msra.mxu0 0
    %3113 = vmatprep.subr.bf16.mxu0 0
    %3114 = vmatpush1.bf16.xpose.msra.mxu0 0
    %3115 = vmatprep.subr.bf16.mxu0 0
    %3116 = vmatpush1.bf16.xpose.msra.mxu0 0
    %3117 = vmatprep.subr.bf16.mxu0 0
    %3118 = vmatpush1.bf16.xpose.msra.mxu0 %v3103
    %3119 = vmatprep.subr.bf16.mxu0 0
    %3120 = vmatpush1.bf16.xpose.msra.mxu0 %v3100
    %3121 = vmatprep.subr.bf16.mxu0 0
    %3122 = vmatpush2.bf16.xpose.msra.mxu0 0
    %3123 = vmatprep.subr.bf16.mxu0 0
    %3124 = vmatpush2.bf16.xpose.msra.mxu0 0
    %3125 = vmatprep.subr.bf16.mxu0 0
    %3126 = vmatpush2.bf16.xpose.msra.mxu0 0
    %3127 = vmatprep.subr.bf16.mxu0 0
    %3128 = vmatpush2.bf16.xpose.msra.mxu0 0
    %3129 = vmatprep.subr.bf16.mxu0 0
    %3130 = vmatpush2.bf16.xpose.msra.mxu0 0
    %3131 = vmatprep.subr.bf16.mxu0 0
    %3132 = vmatpush2.bf16.xpose.msra.mxu0 0
    %3133 = vmatprep.subr.bf16.mxu0 0
    %3134 = vmatpush2.bf16.xpose.msra.mxu0 0
    %3135 = vmatprep.subr.bf16.mxu0 0
    %3136 = vmatpush2.bf16.xpose.msra.mxu0 0
    %3137 = vmatprep.mubr.bf16.mxu0 0
    %3138 = vmatmul.mubr.bf16.gmra.mxu0 %v3097
    %v3139 = vpop.f32.mrf.mxu0
    %v3140 = vadd.f32 %v165, %v3139
    %v3141 = vpop.f32.mrf.mxu0
    %v3142 = vpop.f32.mrf.mxu0
    %v3143 = vadd.f32 %v166, %v3142
    %v3144 = vpop.f32.mrf.mxu0
    %3145 = vdwg.mxu0
    %v3146 = vsel %vm752, %v3140, -inf
    %3147 = vmax.xlane.f32.xlu0 %v3146
    %v3148 = vpop.xlane.xlu0 %3147
    %v3149 = vsel %vm752, %v3143, -inf
    %3150 = vmax.xlane.f32.xlu0 %v3149
    %v3151 = vpop.xlane.xlu0 %3150
    %v3152 = vsub.f32 %v3140, %v3148
    %v3153 = vsub.f32 %v3143, %v3151
    %v3154 = vmul.f32 %v3152, 1.442695
    %v3155 = vpow.pop %v3154
    %v3156 = vmul.f32 %v3153, 1.442695
    %v3157 = vpow.pop %v3156
    %v3158 = vsel %vm752, %v3155, 0.0
    %3159 = vadd.xlane.f32.xlu0 %v3158
    %v3160 = vpop.xlane.xlu0 %3159
    %v3161 = vsel %vm752, %v3157, 0.0
    %3162 = vadd.xlane.f32.xlu0 %v3161
    %v3163 = vpop.xlane.xlu0 %3162
    %v3164 = vrcp.pop %v3160
    %v3165 = vrcp.pop %v3163
    %v3166 = vmul.f32 %v3155, %v3164
    %v3167 = vmul.f32 %v3157, %v3165
    %v3168 = vpack.c.bf16 %v3167, %v3166
    %3169 = vrot.lane.b32.xlu0 %v2693, 72
    %v3170 = vpop.permute.xlu0 %3169
    %3171 = vrot.lane.b32.xlu0 %v2694, 72
    %v3172 = vpop.permute.xlu0 %3171
    %v3175 = vsel %vm752, %v3168, 0
    %v3178 = vsel %vm1095, %v3172, 0
    %3180 = vmatprep.subr.bf16.mxu0 0
    %3181 = vmatpush1.bf16.msra.mxu0 0
    %3182 = vmatprep.subr.bf16.mxu0 0
    %3183 = vmatpush1.bf16.msra.mxu0 0
    %3184 = vmatprep.subr.bf16.mxu0 0
    %3185 = vmatpush1.bf16.msra.mxu0 0
    %3186 = vmatprep.subr.bf16.mxu0 0
    %3187 = vmatpush1.bf16.msra.mxu0 0
    %3188 = vmatprep.subr.bf16.mxu0 0
    %3189 = vmatpush1.bf16.msra.mxu0 0
    %3190 = vmatprep.subr.bf16.mxu0 0
    %3191 = vmatpush1.bf16.msra.mxu0 0
    %3192 = vmatprep.subr.bf16.mxu0 0
    %3193 = vmatpush1.bf16.msra.mxu0 %v3178
    %3194 = vmatprep.subr.bf16.mxu0 0
    %3195 = vmatpush1.bf16.msra.mxu0 %v3170
    %3196 = vmatprep.subr.bf16.mxu0 0
    %3197 = vmatpush2.bf16.msra.mxu0 0
    %3198 = vmatprep.subr.bf16.mxu0 0
    %3199 = vmatpush2.bf16.msra.mxu0 0
    %3200 = vmatprep.subr.bf16.mxu0 0
    %3201 = vmatpush2.bf16.msra.mxu0 0
    %3202 = vmatprep.subr.bf16.mxu0 0
    %3203 = vmatpush2.bf16.msra.mxu0 0
    %3204 = vmatprep.subr.bf16.mxu0 0
    %3205 = vmatpush2.bf16.msra.mxu0 0
    %3206 = vmatprep.subr.bf16.mxu0 0
    %3207 = vmatpush2.bf16.msra.mxu0 0
    %3208 = vmatprep.subr.bf16.mxu0 0
    %3209 = vmatpush2.bf16.msra.mxu0 0
    %3210 = vmatprep.subr.bf16.mxu0 0
    %3211 = vmatpush2.bf16.msra.mxu0 0
    %3212 = vmatprep.mubr.bf16.mxu0 0
    %3213 = vmatmul.mubr.bf16.gmra.mxu0 %v3175
    %v3214 = vpop.f32.mrf.mxu0
    %v3215 = vadd.f32 0.0, %v3214
    %v3216 = vpop.f32.mrf.mxu0
    %v3217 = vpop.f32.mrf.mxu0
    %v3218 = vadd.f32 0.0, %v3217
    %v3219 = vpop.f32.mrf.mxu0
    %3220 = vdwg.mxu0
    %3223 = vrot.lane.b32.xlu0 %v2953, 8
    %v3224 = vpop.permute.xlu0 %3223
    %3225 = vrot.lane.b32.xlu0 %v2956, 8
    %v3226 = vpop.permute.xlu0 %3225
    %3231 = vrot.lane.b32.xlu0 %v3084, 16
    %v3232 = vpop.permute.xlu0 %3231
    %3233 = vrot.lane.b32.xlu0 %v3087, 16
    %v3234 = vpop.permute.xlu0 %3233
    %3239 = vrot.lane.b32.xlu0 %v3215, 24
    %v3240 = vpop.permute.xlu0 %3239
    %3241 = vrot.lane.b32.xlu0 %v3218, 24
    %v3242 = vpop.permute.xlu0 %3241
    %v3245 = vsel %vm242, %v2821, %v3224
    %v3246 = vsel %vm242, %v2824, %v3226
    %v3247 = vsel %vm290, %v3245, %v3232
    %v3248 = vsel %vm290, %v3246, %v3234
    %v3249 = vsel %vm752, %v3247, %v3240
    %v3250 = vsel %vm752, %v3248, %v3242
    %v3251 = vpack.c.bf16 %v3250, %v3249
    %v3256 = vunpack.c.l.b16 %v2696
    %v3257 = vunpack.c.l.b16 %v2697
    %v3258 = vunpack.c.l.b16 %v2698
    %v3259 = vunpack.c.l.b16 %v2699
    %v3260 = vpack.c.b16 %v3257, %v3256
    %v3261 = vpack.c.b16 %v3259, %v3258
    %v3265 = vsel %vm189, %v3251, 0
    %3267 = vmatprep.subr.bf16.mxu0 0
    %3268 = vmatpush1.bf16.msra.mxu0 0
    %3269 = vmatprep.subr.bf16.mxu0 0
    %3270 = vmatpush1.bf16.msra.mxu0 0
    %3271 = vmatprep.subr.bf16.mxu0 0
    %3272 = vmatpush1.bf16.msra.mxu0 0
    %3273 = vmatprep.subr.bf16.mxu0 0
    %3274 = vmatpush1.bf16.msra.mxu0 0
    %3275 = vmatprep.subr.bf16.mxu0 0
    %3276 = vmatpush1.bf16.msra.mxu0 0
    %3277 = vmatprep.subr.bf16.mxu0 0
    %3278 = vmatpush1.bf16.msra.mxu0 0
    %3279 = vmatprep.subr.bf16.mxu0 0
    %3280 = vmatpush1.bf16.msra.mxu0 %v3261
    %3281 = vmatprep.subr.bf16.mxu0 0
    %3282 = vmatpush1.bf16.msra.mxu0 %v3260
    %3283 = vmatprep.subr.bf16.mxu0 0
    %3284 = vmatpush2.bf16.msra.mxu0 0
    %3285 = vmatprep.subr.bf16.mxu0 0
    %3286 = vmatpush2.bf16.msra.mxu0 0
    %3287 = vmatprep.subr.bf16.mxu0 0
    %3288 = vmatpush2.bf16.msra.mxu0 0
    %3289 = vmatprep.subr.bf16.mxu0 0
    %3290 = vmatpush2.bf16.msra.mxu0 0
    %3291 = vmatprep.subr.bf16.mxu0 0
    %3292 = vmatpush2.bf16.msra.mxu0 0
    %3293 = vmatprep.subr.bf16.mxu0 0
    %3294 = vmatpush2.bf16.msra.mxu0 0
    %3295 = vmatprep.subr.bf16.mxu0 0
    %3296 = vmatpush2.bf16.msra.mxu0 0
    %3297 = vmatprep.subr.bf16.mxu0 0
    %3298 = vmatpush2.bf16.msra.mxu0 0
    %3299 = vmatprep.mubr.bf16.mxu0 0
    %3300 = vmatmul.mubr.bf16.gmra.mxu0 %v3265
    %v3301 = vpop.f32.mrf.mxu0
    %v3302 = vadd.f32 0.0, %v3301
    %v3303 = vpop.f32.mrf.mxu0
    %v3304 = vpop.f32.mrf.mxu0
    %v3305 = vadd.f32 0.0, %v3304
    %v3306 = vpop.f32.mrf.mxu0
    %3307 = vdwg.mxu0
    %3310 = vrot.lane.b32.xlu0 %v2904, 24
    %v3311 = vpop.permute.xlu0 %3310
    %3312 = vrot.lane.b32.xlu0 %v2905, 24
    %v3313 = vpop.permute.xlu0 %3312
    %3318 = vrot.lane.b32.xlu0 %v3035, 48
    %v3319 = vpop.permute.xlu0 %3318
    %3320 = vrot.lane.b32.xlu0 %v3036, 48
    %v3321 = vpop.permute.xlu0 %3320
    %3326 = vrot.lane.b32.xlu0 %v3166, 72
    %v3327 = vpop.permute.xlu0 %3326
    %3328 = vrot.lane.b32.xlu0 %v3167, 72
    %v3329 = vpop.permute.xlu0 %3328
    %v3332 = vsel %vm752, %v2770, %v3311
    %v3333 = vsel %vm752, %v2771, %v3313
    %vm3334 = vcmask 392192
    %v3335 = vsel %vm3334, %v3332, %v3319
    %v3336 = vsel %vm3334, %v3333, %v3321
    %vm3337 = vcmask 588800
    %v3338 = vsel %vm3337, %v3335, %v3327
    %v3339 = vsel %vm3337, %v3336, %v3329
    %v3340 = vadd.f32 %v2553, %v3302
    %v3341 = vadd.f32 %v2554, %v3305
    %v3342 = vld [vmem:[%s4 + $0x11] sm:$0x1]
    %v3343 = vlaneseq
    %v3344 = vshrl.u32 %v3343, 7
    %v3345 = vsub.s32 0, %v3344
    %v3346 = vrot.slane %v3342, %v3345
    %v3347 = vadd.f32 %v3340, %v3346
    %v3348 = vadd.f32 %v3341, %v3346
    %v3349 = vld [vmem:[%s4 + $0x15] sm:$0x1]
    %v3350 = vld [vmem:[%s4 + $0x18] sm:$0x1]
    %v3351 = vsel %vm189, %v3347, 0.0
    %3352 = vadd.xlane.f32.xlu0 %v3351
    %v3353 = vpop.xlane.xlu0 %3352
    %v3354 = vsel %vm189, %v3348, 0.0
    %3355 = vadd.xlane.f32.xlu0 %v3354
    %v3356 = vpop.xlane.xlu0 %3355
    %v3357 = vmul.f32 %v3353, %v829
    %v3358 = vmul.f32 %v3356, %v829
    %v3359 = vsub.f32 %v3347, %v3357
    %v3360 = vsub.f32 %v3348, %v3358
    %v3361 = vmul.f32 %v3359, %v3359
    %v3362 = vmul.f32 %v3360, %v3360
    %v3363 = vsel %vm189, %v3361, 0.0
    %3364 = vadd.xlane.f32.xlu0 %v3363
    %v3365 = vpop.xlane.xlu0 %3364
    %v3366 = vsel %vm189, %v3362, 0.0
    %3367 = vadd.xlane.f32.xlu0 %v3366
    %v3368 = vpop.xlane.xlu0 %3367
    %v3369 = vmul.f32 %v3365, %v829
    %v3370 = vmul.f32 %v3368, %v829
    %v3371 = vadd.f32 %v3369, 1e-05
    %v3372 = vadd.f32 %v3370, 1e-05
    %v3373 = vrsqrt.pop %v3371
    %v3374 = vrsqrt.pop %v3372
    %v3375 = vmul.f32 %v3359, %v3373
    %v3376 = vmul.f32 %v3360, %v3374
    %v3377 = vlaneseq
    %v3378 = vshrl.u32 %v3377, 7
    %v3379 = vsub.s32 0, %v3378
    %v3380 = vrot.slane %v3349, %v3379
    %v3381 = vmul.f32 %v3375, %v3380
    %v3382 = vmul.f32 %v3376, %v3380
    %v3383 = vlaneseq
    %v3384 = vshrl.u32 %v3383, 7
    %v3385 = vsub.s32 0, %v3384
    %v3386 = vrot.slane %v3350, %v3385
    %v3387 = vadd.f32 %v3381, %v3386
    %v3388 = vadd.f32 %v3382, %v3386
    %vm3389 = vcmask 785408
    %3390 = vst.msk [vmem:[#allocation17] sm:$0xff] %vm3389, %v3338
    %3391 = vst.msk [vmem:[#allocation17 + $0x8] sm:$0xff] %vm3389, %v3339
    %s3392 = scalar_lea.vmem [#allocation14], 16
    %v3393 = vld [vmem:[%s3392] sm:$0xf]
    %v3394 = vld [vmem:[%s3392 + $0x4] sm:$0xf]
    %v3395 = vld [vmem:[%s3392 + $0x8] sm:$0xf]
    %v3396 = vld [vmem:[%s3392 + $0xc] sm:$0xf]
    %v3397 = vld [vmem:[%s4 + $0x12] sm:$0x1]
    %v3398 = vpack.c.bf16 %v3388, %v3387
    %v3399 = vlaneseq
    %v3400 = vshrl.u32 %v3399, 7
    %v3401 = vsub.s32 0, %v3400
    %v3402 = vrot.slane %v3397, %v3401
    %v3407 = vunpack.c.l.b16 %v3393
    %v3408 = vunpack.c.l.b16 %v3394
    %v3409 = vunpack.c.l.b16 %v3395
    %v3410 = vunpack.c.l.b16 %v3396
    %v3411 = vpack.c.b16 %v3408, %v3407
    %v3412 = vpack.c.b16 %v3410, %v3409
    %v3416 = vsel %vm189, %v3398, 0
    %3418 = vmatprep.subr.bf16.mxu0 0
    %3419 = vmatpush1.bf16.msra.mxu0 0
    %3420 = vmatprep.subr.bf16.mxu0 0
    %3421 = vmatpush1.bf16.msra.mxu0 0
    %3422 = vmatprep.subr.bf16.mxu0 0
    %3423 = vmatpush1.bf16.msra.mxu0 0
    %3424 = vmatprep.subr.bf16.mxu0 0
    %3425 = vmatpush1.bf16.msra.mxu0 0
    %3426 = vmatprep.subr.bf16.mxu0 0
    %3427 = vmatpush1.bf16.msra.mxu0 0
    %3428 = vmatprep.subr.bf16.mxu0 0
    %3429 = vmatpush1.bf16.msra.mxu0 0
    %3430 = vmatprep.subr.bf16.mxu0 0
    %3431 = vmatpush1.bf16.msra.mxu0 %v3412
    %3432 = vmatprep.subr.bf16.mxu0 0
    %3433 = vmatpush1.bf16.msra.mxu0 %v3411
    %3434 = vmatprep.subr.bf16.mxu0 0
    %3435 = vmatpush2.bf16.msra.mxu0 0
    %3436 = vmatprep.subr.bf16.mxu0 0
    %3437 = vmatpush2.bf16.msra.mxu0 0
    %3438 = vmatprep.subr.bf16.mxu0 0
    %3439 = vmatpush2.bf16.msra.mxu0 0
    %3440 = vmatprep.subr.bf16.mxu0 0
    %3441 = vmatpush2.bf16.msra.mxu0 0
    %3442 = vmatprep.subr.bf16.mxu0 0
    %3443 = vmatpush2.bf16.msra.mxu0 0
    %3444 = vmatprep.subr.bf16.mxu0 0
    %3445 = vmatpush2.bf16.msra.mxu0 0
    %3446 = vmatprep.subr.bf16.mxu0 0
    %3447 = vmatpush2.bf16.msra.mxu0 0
    %3448 = vmatprep.subr.bf16.mxu0 0
    %3449 = vmatpush2.bf16.msra.mxu0 0
    %3450 = vmatprep.mubr.bf16.mxu0 0
    %3451 = vmatmul.mubr.bf16.gmra.mxu0 %v3416
    %v3452 = vpop.f32.mrf.mxu0
    %v3453 = vadd.f32 %v3402, %v3452
    %v3454 = vpop.f32.mrf.mxu0
    %v3455 = vpop.f32.mrf.mxu0
    %v3456 = vadd.f32 %v3402, %v3455
    %v3457 = vpop.f32.mrf.mxu0
    %3458 = vdwg.mxu0
    %v3459 = vmax.f32 %v3453, 0.0
    %v3460 = vmax.f32 %v3456, 0.0
    %s3461 = scalar_lea.vmem %s11, 32
    %v3462 = vld [vmem:[%s3461] sm:$0xf]
    %v3463 = vld [vmem:[%s3461 + $0x4] sm:$0xf]
    %v3464 = vld [vmem:[%s3461 + $0x8] sm:$0xf]
    %v3465 = vld [vmem:[%s3461 + $0xc] sm:$0xf]
    %v3466 = vld [vmem:[%s3461 + $0x10] sm:$0xf]
    %v3467 = vld [vmem:[%s3461 + $0x14] sm:$0xf]
    %v3468 = vld [vmem:[%s3461 + $0x18] sm:$0xf]
    %v3469 = vld [vmem:[%s3461 + $0x1c] sm:$0xf]
    %v3470 = vld [vmem:[%s4 + $0x13] sm:$0x1]
    %v3471 = vpack.c.bf16 %v3460, %v3459
    %v3472 = vlaneseq
    %v3473 = vshrl.u32 %v3472, 7
    %v3474 = vsub.s32 0, %v3473
    %v3475 = vrot.slane %v3470, %v3474
    %v3484 = vunpack.c.l.b16 %v3462
    %v3485 = vunpack.c.l.b16 %v3463
    %v3486 = vunpack.c.l.b16 %v3464
    %v3487 = vunpack.c.l.b16 %v3465
    %v3488 = vunpack.c.l.b16 %v3466
    %v3489 = vunpack.c.l.b16 %v3467
    %v3490 = vunpack.c.l.b16 %v3468
    %v3491 = vunpack.c.l.b16 %v3469
    %v3492 = vpack.c.b16 %v3485, %v3484
    %v3493 = vpack.c.b16 %v3487, %v3486
    %v3494 = vpack.c.b16 %v3489, %v3488
    %v3495 = vpack.c.b16 %v3491, %v3490
    %v3501 = vsel %vm1776, %v3471, 0
    %3503 = vmatprep.subr.bf16.mxu0 0
    %3504 = vmatpush1.bf16.msra.mxu0 0
    %3505 = vmatprep.subr.bf16.mxu0 0
    %3506 = vmatpush1.bf16.msra.mxu0 0
    %3507 = vmatprep.subr.bf16.mxu0 0
    %3508 = vmatpush1.bf16.msra.mxu0 0
    %3509 = vmatprep.subr.bf16.mxu0 0
    %3510 = vmatpush1.bf16.msra.mxu0 0
    %3511 = vmatprep.subr.bf16.mxu0 0
    %3512 = vmatpush1.bf16.msra.mxu0 %v3495
    %3513 = vmatprep.subr.bf16.mxu0 0
    %3514 = vmatpush1.bf16.msra.mxu0 %v3494
    %3515 = vmatprep.subr.bf16.mxu0 0
    %3516 = vmatpush1.bf16.msra.mxu0 %v3493
    %3517 = vmatprep.subr.bf16.mxu0 0
    %3518 = vmatpush1.bf16.msra.mxu0 %v3492
    %3519 = vmatprep.subr.bf16.mxu0 0
    %3520 = vmatpush2.bf16.msra.mxu0 0
    %3521 = vmatprep.subr.bf16.mxu0 0
    %3522 = vmatpush2.bf16.msra.mxu0 0
    %3523 = vmatprep.subr.bf16.mxu0 0
    %3524 = vmatpush2.bf16.msra.mxu0 0
    %3525 = vmatprep.subr.bf16.mxu0 0
    %3526 = vmatpush2.bf16.msra.mxu0 0
    %3527 = vmatprep.subr.bf16.mxu0 0
    %3528 = vmatpush2.bf16.msra.mxu0 0
    %3529 = vmatprep.subr.bf16.mxu0 0
    %3530 = vmatpush2.bf16.msra.mxu0 0
    %3531 = vmatprep.subr.bf16.mxu0 0
    %3532 = vmatpush2.bf16.msra.mxu0 0
    %3533 = vmatprep.subr.bf16.mxu0 0
    %3534 = vmatpush2.bf16.msra.mxu0 0
    %3535 = vmatprep.mubr.bf16.mxu0 0
    %3536 = vmatmul.mubr.bf16.gmra.mxu0 %v3501
    %v3537 = vpop.f32.mrf.mxu0
    %v3538 = vadd.f32 %v3475, %v3537
    %v3539 = vpop.f32.mrf.mxu0
    %v3540 = vpop.f32.mrf.mxu0
    %v3541 = vadd.f32 %v3475, %v3540
    %v3542 = vpop.f32.mrf.mxu0
    %3543 = vdwg.mxu0
    %v3544 = vadd.f32 %v3387, %v3538
    %v3545 = vadd.f32 %v3388, %v3541
    %v3546 = vld [vmem:[%s4 + $0x16] sm:$0x1]
    %v3547 = vld [vmem:[%s4 + $0x19] sm:$0x1]
    %v3548 = vsel %vm189, %v3544, 0.0
    %3549 = vadd.xlane.f32.xlu0 %v3548
    %v3550 = vpop.xlane.xlu0 %3549
    %v3551 = vsel %vm189, %v3545, 0.0
    %3552 = vadd.xlane.f32.xlu0 %v3551
    %v3553 = vpop.xlane.xlu0 %3552
    %v3554 = vmul.f32 %v3550, %v829
    %v3555 = vmul.f32 %v3553, %v829
    %v3556 = vsub.f32 %v3544, %v3554
    %v3557 = vsub.f32 %v3545, %v3555
    %v3558 = vmul.f32 %v3556, %v3556
    %v3559 = vmul.f32 %v3557, %v3557
    %v3560 = vsel %vm189, %v3558, 0.0
    %3561 = vadd.xlane.f32.xlu0 %v3560
    %v3562 = vpop.xlane.xlu0 %3561
    %v3563 = vsel %vm189, %v3559, 0.0
    %3564 = vadd.xlane.f32.xlu0 %v3563
    %v3565 = vpop.xlane.xlu0 %3564
    %v3566 = vmul.f32 %v3562, %v829
    %v3567 = vmul.f32 %v3565, %v829
    %v3568 = vadd.f32 %v3566, 1e-05
    %v3569 = vadd.f32 %v3567, 1e-05
    %v3570 = vrsqrt.pop %v3568
    %v3571 = vrsqrt.pop %v3569
    %v3572 = vmul.f32 %v3556, %v3570
    %v3573 = vmul.f32 %v3557, %v3571
    %v3574 = vlaneseq
    %v3575 = vshrl.u32 %v3574, 7
    %v3576 = vsub.s32 0, %v3575
    %v3577 = vrot.slane %v3546, %v3576
    %v3578 = vmul.f32 %v3572, %v3577
    %v3579 = vmul.f32 %v3573, %v3577
    %v3580 = vlaneseq
    %v3581 = vshrl.u32 %v3580, 7
    %v3582 = vsub.s32 0, %v3581
    %v3583 = vrot.slane %v3547, %v3582
    %v3584 = vadd.f32 %v3578, %v3583
    %v3585 = vadd.f32 %v3579, %v3583
    %v3586 = vld [vmem:[%s12] sm:$0xf]
    %v3587 = vld [vmem:[%s12 + $0x4] sm:$0xf]
    %v3588 = vld [vmem:[%s12 + $0x8] sm:$0xf]
    %v3589 = vld [vmem:[%s12 + $0xc] sm:$0xf]
    %v3590 = vld [vmem:[%s4 + $0x1a] sm:$0x1]
    %v3591 = vpack.c.bf16 %v3585, %v3584
    %v3592 = vlaneseq
    %v3593 = vshrl.u32 %v3592, 7
    %v3594 = vsub.s32 0, %v3593
    %v3595 = vrot.slane %v3590, %v3594
    %v3600 = vunpack.c.l.b16 %v3586
    %v3601 = vunpack.c.l.b16 %v3587
    %v3602 = vunpack.c.l.b16 %v3588
    %v3603 = vunpack.c.l.b16 %v3589
    %v3604 = vpack.c.b16 %v3601, %v3600
    %v3605 = vpack.c.b16 %v3603, %v3602
    %v3609 = vsel %vm189, %v3591, 0
    %3611 = vmatprep.subr.bf16.mxu0 0
    %3612 = vmatpush1.bf16.msra.mxu0 0
    %3613 = vmatprep.subr.bf16.mxu0 0
    %3614 = vmatpush1.bf16.msra.mxu0 0
    %3615 = vmatprep.subr.bf16.mxu0 0
    %3616 = vmatpush1.bf16.msra.mxu0 0
    %3617 = vmatprep.subr.bf16.mxu0 0
    %3618 = vmatpush1.bf16.msra.mxu0 0
    %3619 = vmatprep.subr.bf16.mxu0 0
    %3620 = vmatpush1.bf16.msra.mxu0 0
    %3621 = vmatprep.subr.bf16.mxu0 0
    %3622 = vmatpush1.bf16.msra.mxu0 0
    %3623 = vmatprep.subr.bf16.mxu0 0
    %3624 = vmatpush1.bf16.msra.mxu0 %v3605
    %3625 = vmatprep.subr.bf16.mxu0 0
    %3626 = vmatpush1.bf16.msra.mxu0 %v3604
    %3627 = vmatprep.subr.bf16.mxu0 0
    %3628 = vmatpush2.bf16.msra.mxu0 0
    %3629 = vmatprep.subr.bf16.mxu0 0
    %3630 = vmatpush2.bf16.msra.mxu0 0
    %3631 = vmatprep.subr.bf16.mxu0 0
    %3632 = vmatpush2.bf16.msra.mxu0 0
    %3633 = vmatprep.subr.bf16.mxu0 0
    %3634 = vmatpush2.bf16.msra.mxu0 0
    %3635 = vmatprep.subr.bf16.mxu0 0
    %3636 = vmatpush2.bf16.msra.mxu0 0
    %3637 = vmatprep.subr.bf16.mxu0 0
    %3638 = vmatpush2.bf16.msra.mxu0 0
    %3639 = vmatprep.subr.bf16.mxu0 0
    %3640 = vmatpush2.bf16.msra.mxu0 0
    %3641 = vmatprep.subr.bf16.mxu0 0
    %3642 = vmatpush2.bf16.msra.mxu0 0
    %3643 = vmatprep.mubr.bf16.mxu0 0
    %3644 = vmatmul.mubr.bf16.gmra.mxu0 %v3609
    %v3645 = vpop.f32.mrf.mxu0
    %v3646 = vadd.f32 %v3595, %v3645
    %v3647 = vpop.f32.mrf.mxu0
    %v3648 = vpop.f32.mrf.mxu0
    %v3649 = vadd.f32 %v3595, %v3648
    %v3650 = vpop.f32.mrf.mxu0
    %3651 = vdwg.mxu0
    %3652 = vst [vmem:[#allocation16] sm:$0xff] %v3646
    %3653 = vst [vmem:[#allocation16 + $0x8] sm:$0xff] %v3649
    // Predicated region
    $region86: #{tpu_custom_call.1} parent=1 // pred_check
      _
    $region87: #{tpu_custom_call.1} parent=1 // pred_check_branch
      %3655 = sbr.rel (0) target = $region89
    $region88: #{tpu_custom_call.1} parent=1 // pred_region
      %s3657 = ssub.s32 256, 256
      %3658 = vsyncadd [#allocation4], %s3657
      %s3659 = sshll.u32 [#allocation16], 4
      %s3660 = int_to_ptr.vmem [resolvable:$true] %s3659
      %3665 = dma.vmem_to_hbm [thread:$0]  %s3660, 256, %s13, [#allocation4], 128, 128, 8
    $region89: #{tpu_custom_call.1} parent=1 // pred_fallthru
      _
    // Predicated region
    $region90: #{tpu_custom_call.1} parent=1 // pred_check
      _
    $region91: #{tpu_custom_call.1} parent=1 // pred_check_branch
      %3667 = sbr.rel (0) target = $region93
    $region92: #{tpu_custom_call.1} parent=1 // pred_region
      %s3669 = ssub.s32 256, 256
      %3670 = vsyncadd [#allocation18], %s3669
      %s3671 = sshll.u32 [#allocation17], 4
      %s3672 = int_to_ptr.vmem [resolvable:$true] %s3671
      %3677 = dma.vmem_to_hbm [thread:$0]  %s3672, 256, %s14, [#allocation18], 128, 128, 8
    $region93: #{tpu_custom_call.1} parent=1 // pred_fallthru
      _
    // Predicated region
    $region94: #{tpu_custom_call.1} parent=1 // pred_check
      _
    $region95: #{tpu_custom_call.1} parent=1 // pred_check_branch
      %3679 = sbr.rel (0) target = $region97
    $region96: #{tpu_custom_call.1} parent=1 // pred_region
      %3680 = dma.done [#allocation4], 256
    $region97: #{tpu_custom_call.1} parent=1 // pred_fallthru
      _
    // Predicated region
    $region98: #{tpu_custom_call.1} parent=1 // pred_check
      _
    $region99: #{tpu_custom_call.1} parent=1 // pred_check_branch
      %3682 = sbr.rel (0) target = $region101
    $region100: #{tpu_custom_call.1} parent=1 // pred_region
      %3683 = dma.done [#allocation18], 256
    $region101: #{tpu_custom_call.1} parent=1 // pred_fallthru
      _
    %3684 = vsyncpa [#allocation3], 1
    %3685 = vsyncpa [#allocation6], 1
    %3686 = vsyncpa [#allocation9], 1
    %3687 = vsyncpa [#allocation12], 1
    %3688 = vsyncpa [#allocation15], 1
    %3689 = vsyncpa [#allocation4], 1
    %3690 = vsyncpa [#allocation18], 1

</llo_original>
